<compile_context>
chip_gen: v7x
topology: tpu7x:2x2x1
jax: 0.10.0
libtpu: 0.0.40
codegen_flags: <defaults>
</compile_context>

<pallas_src>
import functools

import jax
import jax.numpy as jnp
from jax.experimental import pallas as pl
from jax.experimental.pallas import tpu as pltpu


# ----------------------------- Pallas kernel ---------------------------------

def _matmul_bias_act_kernel(a_ref, w_ref, b_ref, o_ref, *, relu):
    """o = [relu](a @ w + b) for one M-tile; bf16 inputs, f32 accumulate."""
    acc = jnp.dot(a_ref[...], w_ref[...], preferred_element_type=jnp.float32)
    acc = acc + b_ref[...]
    if relu:
        acc = jnp.maximum(acc, 0.0)
    o_ref[...] = acc.astype(o_ref.dtype)


_TM_MAX = 2048      # upper bound on the M tile (review: raise 512 -> 1024-2048)
_SUBLANE = 16       # bf16 sublane tile; multiples of 16 keep bf16 & f32 blocks legal


def _round_up(x, m):
    return (x + m - 1) // m * m


def _choose_tm(M):
    """Full block for tiny M; otherwise >=2 grid steps (v7x megacore), capped at _TM_MAX."""
    if M <= 2 * _SUBLANE:
        return M                                  # single full block (fc layers at small B)
    half = _round_up(-(-M // 2), _SUBLANE)        # cdiv(M, 2) rounded up to 16
    return min(_TM_MAX, half)


def pallas_matmul_bias_act(a, w, b, *, relu, out_dtype):
    """a: (M, K), w: (K, N) bf16, b: (1, N) f32 -> (M, N) out_dtype."""
    M, K = a.shape
    K2, N = w.shape
    assert K == K2 and b.shape == (1, N)
    a = a.astype(w.dtype)                         # bf16 feed to the MXU
    tm = _choose_tm(M)
    grid = (pl.cdiv(M, tm),)
    return pl.pallas_call(
        functools.partial(_matmul_bias_act_kernel, relu=relu),
        out_shape=jax.ShapeDtypeStruct((M, N), out_dtype),
        grid_spec=pltpu.PrefetchScalarGridSpec(
            num_scalar_prefetch=0,
            grid=grid,
            in_specs=[
                pl.BlockSpec((tm, K), lambda i: (i, 0)),   # A: M-tiled, full K
                pl.BlockSpec((K, N), lambda i: (0, 0)),    # W: resident full block
                pl.BlockSpec((1, N), lambda i: (0, 0)),    # bias
            ],
            out_specs=pl.BlockSpec((tm, N), lambda i: (i, 0)),
        ),
        compiler_params=pltpu.CompilerParams(
            dimension_semantics=("parallel",),             # shard M across TCs on v7x
            vmem_limit_bytes=32 * 1024 * 1024,             # v5e scoped default is 16 MiB
        ),
    )(a, w, b)


# ------------------------------- JAX glue -------------------------------------

def im2col_nhwc(x, k):
    """x: (B, H, W, C) -> (B*Ho*Wo, k*k*C), columns ordered (kh, kw, c)."""
    B, H, W, C = x.shape
    Ho, Wo = H - k + 1, W - k + 1
    cols = jnp.concatenate(
        [x[:, kh:kh + Ho, kw:kw + Wo, :] for kh in range(k) for kw in range(k)],
        axis=-1)                                           # (B, Ho, Wo, k*k*C)
    return cols.reshape(B * Ho * Wo, k * k * C), (B, Ho, Wo)


def maxpool2x2_nhwc(x):
    B, H, W, C = x.shape
    return x.reshape(B, H // 2, 2, W // 2, 2, C).max(axis=(2, 4))


def conv_relu(x_nhwc, w_mat, b, *, k):
    cols, (B, Ho, Wo) = im2col_nhwc(x_nhwc, k)
    cout = w_mat.shape[1]
    out = pallas_matmul_bias_act(cols, w_mat, b, relu=True, out_dtype=jnp.bfloat16)
    return out.reshape(B, Ho, Wo, cout)


# --------------------------- Params & weight prep -----------------------------

def init_params(out_dim, key):
    """Random params in the PyTorch module's native layouts."""
    ks = jax.random.split(key, 10)
    s = 0.05
    return {
        "w1": jax.random.normal(ks[0], (32, 1, 5, 5), jnp.float32) * s,
        "b1": jax.random.normal(ks[1], (32,), jnp.float32) * s,
        "w2": jax.random.normal(ks[2], (32, 32, 5, 5), jnp.float32) * s,
        "b2": jax.random.normal(ks[3], (32,), jnp.float32) * s,
        "w3": jax.random.normal(ks[4], (64, 32, 5, 5), jnp.float32) * s,
        "b3": jax.random.normal(ks[5], (64,), jnp.float32) * s,
        # PyTorch Linear weight layout: (out_features, in_features).
        "fc1_w": jax.random.normal(ks[6], (256, 3 * 3 * 64), jnp.float32) * s,
        "fc1_b": jax.random.normal(ks[7], (256,), jnp.float32) * s,
        "fc2_w": jax.random.normal(ks[8], (out_dim, 256), jnp.float32) * s,
        "fc2_b": jax.random.normal(ks[9], (out_dim,), jnp.float32) * s,
    }


def prepare_params(p, compute_dtype=jnp.bfloat16):
    """One-time conversion of PyTorch-layout params into kernel layout."""
    def conv_w(w):
        # (Cout, Cin, kh, kw) -> (kh*kw*Cin, Cout), matching im2col (kh, kw, ci) order.
        cout, cin, kh, kw = w.shape
        return (jnp.transpose(w, (2, 3, 1, 0))
                .reshape(kh * kw * cin, cout).astype(compute_dtype))

    def bias(b):
        return b.reshape(1, -1).astype(jnp.float32)

    # fc1: PyTorch weight (256, 576) with input index c*9 + h*3 + w (NCHW flatten).
    # Permute rows once so the kernel consumes a plain NHWC flatten (h, w, c).
    fc1 = p["fc1_w"].reshape(-1, 64, 3, 3)                          # (256, c, h, w)
    fc1 = jnp.transpose(fc1, (2, 3, 1, 0)).reshape(3 * 3 * 64, -1)  # (h*w*c, 256)

    # fc2: transpose to (256, out_dim) and zero-pad N to a multiple of 128 so the final
    # store is lane-dense (no masked vst); logits are sliced back in the wrapper.
    out_dim = p["fc2_w"].shape[0]
    n_pad = _round_up(max(out_dim, 128), 128)
    fc2 = jnp.zeros((256, n_pad), jnp.float32).at[:, :out_dim].set(p["fc2_w"].T)
    fc2_b = jnp.zeros((1, n_pad), jnp.float32).at[:, :out_dim].set(p["fc2_b"][None, :])

    return {
        "w1": conv_w(p["w1"]), "b1": bias(p["b1"]),
        "w2": conv_w(p["w2"]), "b2": bias(p["b2"]),
        "w3": conv_w(p["w3"]), "b3": bias(p["b3"]),
        "fc1_w": fc1.astype(compute_dtype), "fc1_b": bias(p["fc1_b"]),
        "fc2_w": fc2.astype(compute_dtype), "fc2_b": fc2_b,
    }


# ------------------------------- Model ----------------------------------------

def cnn_forward(x_nchw, params, *, out_dim, return_features=False):
    # x_nchw: (B, 1, 28, 28) float32 (PyTorch NCHW convention).
    B = x_nchw.shape[0]
    x = jnp.transpose(x_nchw, (0, 2, 3, 1)).astype(jnp.bfloat16)    # -> NHWC bf16

    # conv1 + relu : (B, 24, 24, 32)
    x = conv_relu(x, params["w1"], params["b1"], k=5)

    # conv2 -> pool -> relu (ReLU fused in kernel; commutes with max-pool): (B, 10, 10, 32)
    x = conv_relu(x, params["w2"], params["b2"], k=5)
    x = maxpool2x2_nhwc(x)
    # dropout p=0.5: identity in eval mode

    # conv3 -> pool -> relu : (B, 3, 3, 64)
    x = conv_relu(x, params["w3"], params["b3"], k=5)
    x = maxpool2x2_nhwc(x)
    # dropout p=0.5: identity in eval mode

    # flatten (NHWC order; the PyTorch NCHW flatten is absorbed into fc1_w rows)
    flat = x.reshape(B, 3 * 3 * 64)

    # fc1 + relu -> features (f32)
    features = pallas_matmul_bias_act(flat, params["fc1_w"], params["fc1_b"],
                                      relu=True, out_dtype=jnp.float32)
    # dropout p=0.5: identity in eval mode

    # fc2 (logits, no activation); weights were padded to 128 lanes -> slice back
    logits = pallas_matmul_bias_act(features, params["fc2_w"], params["fc2_b"],
                                    relu=False, out_dtype=jnp.float32)[:, :out_dim]
    if return_features:
        return features, logits
    return logits


if __name__ == "__main__":
    out_dim = 10
    key = jax.random.PRNGKey(0)
    pkey, xkey = jax.random.split(key)

    params = prepare_params(init_params(out_dim, pkey))   # one-time layout prep
    x = jax.random.normal(xkey, (2, 1, 28, 28), jnp.float32)

    fwd = jax.jit(cnn_forward, static_argnames=("out_dim", "return_features"))

    logits = fwd(x, params, out_dim=out_dim)
    logits = jax.block_until_ready(logits)
    assert logits.shape == (2, out_dim), logits.shape

    features, logits2 = fwd(x, params, out_dim=out_dim, return_features=True)
    jax.block_until_ready((features, logits2))
    assert features.shape == (2, 256), features.shape
    assert logits2.shape == (2, out_dim), logits2.shape

    print("KERNEL_OK")
</pallas_src>

<mosaic_0001>
module attributes {stable_mosaic.version = 11 : i64} {
  func.func @_matmul_bias_act_kernel(%arg0: i32, %arg1: memref<576x25xbf16, #tpu.memory_space<vmem>>, %arg2: memref<25x32xbf16, #tpu.memory_space<vmem>>, %arg3: memref<1x32xf32, #tpu.memory_space<vmem>>, %arg4: memref<576x32xbf16, #tpu.memory_space<vmem>>) attributes {dimension_semantics = [#tpu.dimension_semantics<parallel>], iteration_bounds = array<i64: 2>, scalar_prefetch = 0 : i64, scratch_operands = 0 : i64, tpu.core_type = #tpu.core_type<tc>, window_params = [{transform_indices = @transform_0, window_bounds = array<i64: 576, 25>}, {pipeline_mode = #tpu.pipeline_mode<synchronous>, transform_indices = @transform_1, window_bounds = array<i64: 25, 32>}, {pipeline_mode = #tpu.pipeline_mode<synchronous>, transform_indices = @transform_2, window_bounds = array<i64: 1, 32>}, {transform_indices = @transform_3, window_bounds = array<i64: 576, 32>}]} {
    %c0 = arith.constant 0 : index
    %c0_0 = arith.constant 0 : index
    %0 = vector.load %arg1[%c0, %c0_0] : memref<576x25xbf16, #tpu.memory_space<vmem>>, vector<576x25xbf16>
    %c0_1 = arith.constant 0 : index
    %c0_2 = arith.constant 0 : index
    %1 = vector.load %arg2[%c0_1, %c0_2] : memref<25x32xbf16, #tpu.memory_space<vmem>>, vector<25x32xbf16>
    %cst = arith.constant dense<0.000000e+00> : vector<576x32xf32>
    %2 = tpu.matmul %0, %1, %cst {dimension_numbers = #tpu.dot_dimension_numbers<[1], [0], [0], [1], [0, 0, 1, 1], [], []>} : vector<576x25xbf16>, vector<25x32xbf16>, vector<576x32xf32> -> vector<576x32xf32>
    %c0_3 = arith.constant 0 : index
    %c0_4 = arith.constant 0 : index
    %3 = vector.load %arg3[%c0_3, %c0_4] : memref<1x32xf32, #tpu.memory_space<vmem>>, vector<1x32xf32>
    %4 = vector.broadcast %3 : vector<1x32xf32> to vector<576x32xf32>
    %5 = arith.addf %2, %4 : vector<576x32xf32>
    %cst_5 = arith.constant 0.000000e+00 : f32
    %6 = vector.broadcast %cst_5 : f32 to vector<576x32xf32>
    %7 = arith.maximumf %5, %6 : vector<576x32xf32>
    %8 = arith.truncf %7 : vector<576x32xf32> to vector<576x32xbf16>
    %c0_6 = arith.constant 0 : index
    %c0_7 = arith.constant 0 : index
    %9 = vector.load %arg4[%c0_6, %c0_7] : memref<576x32xbf16, #tpu.memory_space<vmem>>, vector<576x32xbf16>
    tpu.vector_store %arg4[%c0_6, %c0_7], %8 {strides = array<i32>} : memref<576x32xbf16, #tpu.memory_space<vmem>>, vector<576x32xbf16>,
    return
  }
  func.func @transform_0(%arg0: i32) -> (i32, i32) {
    %c0_i32 = arith.constant 0 : i32
    %c0_i32_0 = arith.constant 0 : i32
    return %arg0, %c0_i32 : i32, i32
  }
  func.func @transform_1(%arg0: i32) -> (i32, i32) {
    %c0_i32 = arith.constant 0 : i32
    %c0_i32_0 = arith.constant 0 : i32
    %c0_i32_1 = arith.constant 0 : i32
    return %c0_i32, %c0_i32_0 : i32, i32
  }
  func.func @transform_2(%arg0: i32) -> (i32, i32) {
    %c0_i32 = arith.constant 0 : i32
    %c0_i32_0 = arith.constant 0 : i32
    %c0_i32_1 = arith.constant 0 : i32
    return %c0_i32, %c0_i32_0 : i32, i32
  }
  func.func @transform_3(%arg0: i32) -> (i32, i32) {
    %c0_i32 = arith.constant 0 : i32
    %c0_i32_0 = arith.constant 0 : i32
    return %arg0, %c0_i32 : i32, i32
  }
}

module attributes {stable_mosaic.version = 11 : i64} {
  func.func @_matmul_bias_act_kernel(%arg0: i32, %arg1: memref<400x800xbf16, #tpu.memory_space<vmem>>, %arg2: memref<800x32xbf16, #tpu.memory_space<vmem>>, %arg3: memref<1x32xf32, #tpu.memory_space<vmem>>, %arg4: memref<400x32xbf16, #tpu.memory_space<vmem>>) attributes {dimension_semantics = [#tpu.dimension_semantics<parallel>], iteration_bounds = array<i64: 2>, scalar_prefetch = 0 : i64, scratch_operands = 0 : i64, tpu.core_type = #tpu.core_type<tc>, window_params = [{transform_indices = @transform_0, window_bounds = array<i64: 400, 800>}, {pipeline_mode = #tpu.pipeline_mode<synchronous>, transform_indices = @transform_1, window_bounds = array<i64: 800, 32>}, {pipeline_mode = #tpu.pipeline_mode<synchronous>, transform_indices = @transform_2, window_bounds = array<i64: 1, 32>}, {transform_indices = @transform_3, window_bounds = array<i64: 400, 32>}]} {
    %c0 = arith.constant 0 : index
    %c0_0 = arith.constant 0 : index
    %0 = vector.load %arg1[%c0, %c0_0] : memref<400x800xbf16, #tpu.memory_space<vmem>>, vector<400x800xbf16>
    %c0_1 = arith.constant 0 : index
    %c0_2 = arith.constant 0 : index
    %1 = vector.load %arg2[%c0_1, %c0_2] : memref<800x32xbf16, #tpu.memory_space<vmem>>, vector<800x32xbf16>
    %cst = arith.constant dense<0.000000e+00> : vector<400x32xf32>
    %2 = tpu.matmul %0, %1, %cst {dimension_numbers = #tpu.dot_dimension_numbers<[1], [0], [0], [1], [0, 0, 1, 1], [], []>} : vector<400x800xbf16>, vector<800x32xbf16>, vector<400x32xf32> -> vector<400x32xf32>
    %c0_3 = arith.constant 0 : index
    %c0_4 = arith.constant 0 : index
    %3 = vector.load %arg3[%c0_3, %c0_4] : memref<1x32xf32, #tpu.memory_space<vmem>>, vector<1x32xf32>
    %4 = vector.broadcast %3 : vector<1x32xf32> to vector<400x32xf32>
    %5 = arith.addf %2, %4 : vector<400x32xf32>
    %cst_5 = arith.constant 0.000000e+00 : f32
    %6 = vector.broadcast %cst_5 : f32 to vector<400x32xf32>
    %7 = arith.maximumf %5, %6 : vector<400x32xf32>
    %8 = arith.truncf %7 : vector<400x32xf32> to vector<400x32xbf16>
    %c0_6 = arith.constant 0 : index
    %c0_7 = arith.constant 0 : index
    %9 = vector.load %arg4[%c0_6, %c0_7] : memref<400x32xbf16, #tpu.memory_space<vmem>>, vector<400x32xbf16>
    tpu.vector_store %arg4[%c0_6, %c0_7], %8 {strides = array<i32>} : memref<400x32xbf16, #tpu.memory_space<vmem>>, vector<400x32xbf16>,
    return
  }
  func.func @transform_0(%arg0: i32) -> (i32, i32) {
    %c0_i32 = arith.constant 0 : i32
    %c0_i32_0 = arith.constant 0 : i32
    return %arg0, %c0_i32 : i32, i32
  }
  func.func @transform_1(%arg0: i32) -> (i32, i32) {
    %c0_i32 = arith.constant 0 : i32
    %c0_i32_0 = arith.constant 0 : i32
    %c0_i32_1 = arith.constant 0 : i32
    return %c0_i32, %c0_i32_0 : i32, i32
  }
  func.func @transform_2(%arg0: i32) -> (i32, i32) {
    %c0_i32 = arith.constant 0 : i32
    %c0_i32_0 = arith.constant 0 : i32
    %c0_i32_1 = arith.constant 0 : i32
    return %c0_i32, %c0_i32_0 : i32, i32
  }
  func.func @transform_3(%arg0: i32) -> (i32, i32) {
    %c0_i32 = arith.constant 0 : i32
    %c0_i32_0 = arith.constant 0 : i32
    return %arg0, %c0_i32 : i32, i32
  }
}

module attributes {stable_mosaic.version = 11 : i64} {
  func.func @_matmul_bias_act_kernel(%arg0: i32, %arg1: memref<48x800xbf16, #tpu.memory_space<vmem>>, %arg2: memref<800x64xbf16, #tpu.memory_space<vmem>>, %arg3: memref<1x64xf32, #tpu.memory_space<vmem>>, %arg4: memref<48x64xbf16, #tpu.memory_space<vmem>>) attributes {dimension_semantics = [#tpu.dimension_semantics<parallel>], iteration_bounds = array<i64: 2>, scalar_prefetch = 0 : i64, scratch_operands = 0 : i64, tpu.core_type = #tpu.core_type<tc>, window_params = [{transform_indices = @transform_0, window_bounds = array<i64: 48, 800>}, {pipeline_mode = #tpu.pipeline_mode<synchronous>, transform_indices = @transform_1, window_bounds = array<i64: 800, 64>}, {pipeline_mode = #tpu.pipeline_mode<synchronous>, transform_indices = @transform_2, window_bounds = array<i64: 1, 64>}, {transform_indices = @transform_3, window_bounds = array<i64: 48, 64>}]} {
    %c0 = arith.constant 0 : index
    %c0_0 = arith.constant 0 : index
    %0 = vector.load %arg1[%c0, %c0_0] : memref<48x800xbf16, #tpu.memory_space<vmem>>, vector<48x800xbf16>
    %c0_1 = arith.constant 0 : index
    %c0_2 = arith.constant 0 : index
    %1 = vector.load %arg2[%c0_1, %c0_2] : memref<800x64xbf16, #tpu.memory_space<vmem>>, vector<800x64xbf16>
    %cst = arith.constant dense<0.000000e+00> : vector<48x64xf32>
    %2 = tpu.matmul %0, %1, %cst {dimension_numbers = #tpu.dot_dimension_numbers<[1], [0], [0], [1], [0, 0, 1, 1], [], []>} : vector<48x800xbf16>, vector<800x64xbf16>, vector<48x64xf32> -> vector<48x64xf32>
    %c0_3 = arith.constant 0 : index
    %c0_4 = arith.constant 0 : index
    %3 = vector.load %arg3[%c0_3, %c0_4] : memref<1x64xf32, #tpu.memory_space<vmem>>, vector<1x64xf32>
    %4 = vector.broadcast %3 : vector<1x64xf32> to vector<48x64xf32>
    %5 = arith.addf %2, %4 : vector<48x64xf32>
    %cst_5 = arith.constant 0.000000e+00 : f32
    %6 = vector.broadcast %cst_5 : f32 to vector<48x64xf32>
    %7 = arith.maximumf %5, %6 : vector<48x64xf32>
    %8 = arith.truncf %7 : vector<48x64xf32> to vector<48x64xbf16>
    %c0_6 = arith.constant 0 : index
    %c0_7 = arith.constant 0 : index
    %9 = vector.load %arg4[%c0_6, %c0_7] : memref<48x64xbf16, #tpu.memory_space<vmem>>, vector<48x64xbf16>
    tpu.vector_store %arg4[%c0_6, %c0_7], %8 {strides = array<i32>} : memref<48x64xbf16, #tpu.memory_space<vmem>>, vector<48x64xbf16>,
    return
  }
  func.func @transform_0(%arg0: i32) -> (i32, i32) {
    %c0_i32 = arith.constant 0 : i32
    %c0_i32_0 = arith.constant 0 : i32
    return %arg0, %c0_i32 : i32, i32
  }
  func.func @transform_1(%arg0: i32) -> (i32, i32) {
    %c0_i32 = arith.constant 0 : i32
    %c0_i32_0 = arith.constant 0 : i32
    %c0_i32_1 = arith.constant 0 : i32
    return %c0_i32, %c0_i32_0 : i32, i32
  }
  func.func @transform_2(%arg0: i32) -> (i32, i32) {
    %c0_i32 = arith.constant 0 : i32
    %c0_i32_0 = arith.constant 0 : i32
    %c0_i32_1 = arith.constant 0 : i32
    return %c0_i32, %c0_i32_0 : i32, i32
  }
  func.func @transform_3(%arg0: i32) -> (i32, i32) {
    %c0_i32 = arith.constant 0 : i32
    %c0_i32_0 = arith.constant 0 : i32
    return %arg0, %c0_i32 : i32, i32
  }
}

module attributes {stable_mosaic.version = 11 : i64} {
  func.func @_matmul_bias_act_kernel(%arg0: i32, %arg1: memref<2x256xbf16, #tpu.memory_space<vmem>>, %arg2: memref<256x128xbf16, #tpu.memory_space<vmem>>, %arg3: memref<1x128xf32, #tpu.memory_space<vmem>>, %arg4: memref<2x128xf32, #tpu.memory_space<vmem>>) attributes {dimension_semantics = [#tpu.dimension_semantics<parallel>], iteration_bounds = array<i64: 1>, scalar_prefetch = 0 : i64, scratch_operands = 0 : i64, tpu.core_type = #tpu.core_type<tc>, window_params = [{transform_indices = @transform_0, window_bounds = array<i64: 2, 256>}, {pipeline_mode = #tpu.pipeline_mode<synchronous>, transform_indices = @transform_1, window_bounds = array<i64: 256, 128>}, {pipeline_mode = #tpu.pipeline_mode<synchronous>, transform_indices = @transform_2, window_bounds = array<i64: 1, 128>}, {transform_indices = @transform_3, window_bounds = array<i64: 2, 128>}]} {
    %c0 = arith.constant 0 : index
    %c0_0 = arith.constant 0 : index
    %0 = vector.load %arg1[%c0, %c0_0] : memref<2x256xbf16, #tpu.memory_space<vmem>>, vector<2x256xbf16>
    %c0_1 = arith.constant 0 : index
    %c0_2 = arith.constant 0 : index
    %1 = vector.load %arg2[%c0_1, %c0_2] : memref<256x128xbf16, #tpu.memory_space<vmem>>, vector<256x128xbf16>
    %cst = arith.constant dense<0.000000e+00> : vector<2x128xf32>
    %2 = tpu.matmul %0, %1, %cst {dimension_numbers = #tpu.dot_dimension_numbers<[1], [0], [0], [1], [0, 0, 1, 1], [], []>} : vector<2x256xbf16>, vector<256x128xbf16>, vector<2x128xf32> -> vector<2x128xf32>
    %c0_3 = arith.constant 0 : index
    %c0_4 = arith.constant 0 : index
    %3 = vector.load %arg3[%c0_3, %c0_4] : memref<1x128xf32, #tpu.memory_space<vmem>>, vector<1x128xf32>
    %4 = vector.broadcast %3 : vector<1x128xf32> to vector<2x128xf32>
    %5 = arith.addf %2, %4 : vector<2x128xf32>
    %c0_5 = arith.constant 0 : index
    %c0_6 = arith.constant 0 : index
    %6 = vector.load %arg4[%c0_5, %c0_6] : memref<2x128xf32, #tpu.memory_space<vmem>>, vector<2x128xf32>
    tpu.vector_store %arg4[%c0_5, %c0_6], %5 {strides = array<i32>} : memref<2x128xf32, #tpu.memory_space<vmem>>, vector<2x128xf32>,
    return
  }
  func.func @transform_0(%arg0: i32) -> (i32, i32) {
    %c0_i32 = arith.constant 0 : i32
    %c0_i32_0 = arith.constant 0 : i32
    return %arg0, %c0_i32 : i32, i32
  }
  func.func @transform_1(%arg0: i32) -> (i32, i32) {
    %c0_i32 = arith.constant 0 : i32
    %c0_i32_0 = arith.constant 0 : i32
    %c0_i32_1 = arith.constant 0 : i32
    return %c0_i32, %c0_i32_0 : i32, i32
  }
  func.func @transform_2(%arg0: i32) -> (i32, i32) {
    %c0_i32 = arith.constant 0 : i32
    %c0_i32_0 = arith.constant 0 : i32
    %c0_i32_1 = arith.constant 0 : i32
    return %c0_i32, %c0_i32_0 : i32, i32
  }
  func.func @transform_3(%arg0: i32) -> (i32, i32) {
    %c0_i32 = arith.constant 0 : i32
    %c0_i32_0 = arith.constant 0 : i32
    return %arg0, %c0_i32 : i32, i32
  }
}

module attributes {stable_mosaic.version = 11 : i64} {
  func.func @_matmul_bias_act_kernel(%arg0: i32, %arg1: memref<2x576xbf16, #tpu.memory_space<vmem>>, %arg2: memref<576x256xbf16, #tpu.memory_space<vmem>>, %arg3: memref<1x256xf32, #tpu.memory_space<vmem>>, %arg4: memref<2x256xf32, #tpu.memory_space<vmem>>) attributes {dimension_semantics = [#tpu.dimension_semantics<parallel>], iteration_bounds = array<i64: 1>, scalar_prefetch = 0 : i64, scratch_operands = 0 : i64, tpu.core_type = #tpu.core_type<tc>, window_params = [{transform_indices = @transform_0, window_bounds = array<i64: 2, 576>}, {pipeline_mode = #tpu.pipeline_mode<synchronous>, transform_indices = @transform_1, window_bounds = array<i64: 576, 256>}, {pipeline_mode = #tpu.pipeline_mode<synchronous>, transform_indices = @transform_2, window_bounds = array<i64: 1, 256>}, {transform_indices = @transform_3, window_bounds = array<i64: 2, 256>}]} {
    %c0 = arith.constant 0 : index
    %c0_0 = arith.constant 0 : index
    %0 = vector.load %arg1[%c0, %c0_0] : memref<2x576xbf16, #tpu.memory_space<vmem>>, vector<2x576xbf16>
    %c0_1 = arith.constant 0 : index
    %c0_2 = arith.constant 0 : index
    %1 = vector.load %arg2[%c0_1, %c0_2] : memref<576x256xbf16, #tpu.memory_space<vmem>>, vector<576x256xbf16>
    %cst = arith.constant dense<0.000000e+00> : vector<2x256xf32>
    %2 = tpu.matmul %0, %1, %cst {dimension_numbers = #tpu.dot_dimension_numbers<[1], [0], [0], [1], [0, 0, 1, 1], [], []>} : vector<2x576xbf16>, vector<576x256xbf16>, vector<2x256xf32> -> vector<2x256xf32>
    %c0_3 = arith.constant 0 : index
    %c0_4 = arith.constant 0 : index
    %3 = vector.load %arg3[%c0_3, %c0_4] : memref<1x256xf32, #tpu.memory_space<vmem>>, vector<1x256xf32>
    %4 = vector.broadcast %3 : vector<1x256xf32> to vector<2x256xf32>
    %5 = arith.addf %2, %4 : vector<2x256xf32>
    %cst_5 = arith.constant 0.000000e+00 : f32
    %6 = vector.broadcast %cst_5 : f32 to vector<2x256xf32>
    %7 = arith.maximumf %5, %6 : vector<2x256xf32>
    %c0_6 = arith.constant 0 : index
    %c0_7 = arith.constant 0 : index
    %8 = vector.load %arg4[%c0_6, %c0_7] : memref<2x256xf32, #tpu.memory_space<vmem>>, vector<2x256xf32>
    tpu.vector_store %arg4[%c0_6, %c0_7], %7 {strides = array<i32>} : memref<2x256xf32, #tpu.memory_space<vmem>>, vector<2x256xf32>,
    return
  }
  func.func @transform_0(%arg0: i32) -> (i32, i32) {
    %c0_i32 = arith.constant 0 : i32
    %c0_i32_0 = arith.constant 0 : i32
    return %arg0, %c0_i32 : i32, i32
  }
  func.func @transform_1(%arg0: i32) -> (i32, i32) {
    %c0_i32 = arith.constant 0 : i32
    %c0_i32_0 = arith.constant 0 : i32
    %c0_i32_1 = arith.constant 0 : i32
    return %c0_i32, %c0_i32_0 : i32, i32
  }
  func.func @transform_2(%arg0: i32) -> (i32, i32) {
    %c0_i32 = arith.constant 0 : i32
    %c0_i32_0 = arith.constant 0 : i32
    %c0_i32_1 = arith.constant 0 : i32
    return %c0_i32, %c0_i32_0 : i32, i32
  }
  func.func @transform_3(%arg0: i32) -> (i32, i32) {
    %c0_i32 = arith.constant 0 : i32
    %c0_i32_0 = arith.constant 0 : i32
    return %arg0, %c0_i32 : i32, i32
  }
}

</mosaic_0001>

<llo_original>
// kernel: cnn_forward.5
$region0: #{cnn_forward.5}
  #allocation0 [shape = 'u32[]', space=smem, size = 0x4, offset = 0x4, fixed_abs, tag = 'smem constant byte address 0x4 - core index']
  #allocation1 [shape = 'u32[144,128]{1,0:T(1,128)}', space=vmem, size = 0x12000, scoped, tag = 'internal scratch']
  %s0 = inlined_call_operand.vmem [shape: bf16[1152,25], index: 0, kind: input, shape index: {}]
  %s1 = inlined_call_operand.hbm [shape: bf16[25,32], index: 1, kind: input, shape index: {}]
  %s2 = inlined_call_operand.hbm [shape: f32[1,32], index: 2, kind: input, shape index: {}]
  %s3 = inlined_call_operand.vmem [shape: bf16[1152,32], index: 3, kind: output, shape index: {}]
  %s4 = sld [smem:[#allocation0]]
  $region53: #{cnn_forward.5} parent=0
    _
  %s6 = ssub.s32 1, %s4
  %s7 = scalar_select 0, %s6, %s4
  $region1: #{cnn_forward.5} parent=0
    #allocation2 [shape = 'u8[8192]{0}', space=vmem, size = 0x2000, scoped, tag = 'input window, operand 1, single buffered']
    #allocation3 [shape = 's32[2]{0}', space=sflag, size = 0x8, scoped, tag = 'scoped memory for cnn_forward.5']
    #allocation4 [shape = 'u8[512]{0}', space=vmem, size = 0x400, scoped, tag = 'input window, operand 2, single buffered']
    #allocation5 [shape = 's32[1]{0}', space=sflag, size = 0x4, scoped, tag = 'scoped memory for cnn_forward.5']
    %8 = vsyncpa [#allocation3], 0
    %9 = vsyncpa [#allocation5], 0
    loop: start=0, step=1, limit=4
    $region2: #{cnn_forward.5} parent=1 // loop_pre_header
      _
    $region3: #{cnn_forward.5} parent=1 // loop_header
      %s11 = sphi 0, %s15
      %p12 = scmp.ge.s32.totalorder %s11, 4
      %s21 = sphi 0, %s23
      %s24 = sphi 0, %s21
      %s25 = sphi 0, %s24
      %s41 = sphi 0, %s25
      %s45 = sphi 0, %s45
      %s47 = sphi 0, %s45
      %s48 = sphi 0, %s47
      %s62 = sphi 0, %s48
      %s66 = sphi 0, %s66
      %s68 = sphi 0, %s66
      %s69 = sphi 0, %s68
      %s83 = sphi 0, %s69
      %s89 = sphi 0, %s91
      %s92 = sphi 0, %s89
      %s93 = sphi 0, %s92
      %s109 = sphi 0, %s93
    $region4: #{cnn_forward.5} parent=1 // loop_header_branch
      %14 = sbr.rel (%p12) target = $region8
    $region5: #{cnn_forward.5} parent=1 // loop_body
      %s16 = ssub.s32 %s11, 1
      %s17 = ssub.s32 %s11, 2
      %s18 = sadd.s32 %s11, 1
      %s19 = ssub.s32 %s11, %s18
      %p20 = scmp.eq.s32.totalorder %s19, 0
      %s22 = sadd.s32 %s21, 1
      %s23 = scalar_select %p20, %s21, %s22
      %p26 = pneg %p20
      %p27 = scmp.eq.s32.totalorder %s11, 1
      %p28 = por %p26, %p27
      %p29 = scmp.ne.s32.totalorder %s21, %s24
      %p30 = scmp.eq.s32.totalorder %s11, 0
      %p31 = por %p29, %p30
      %p32 = scmp.ne.s32.totalorder %s21, %s24
      %p33 = scmp.eq.s32.totalorder %s16, 1
      %p34 = por %p32, %p33
      %p35 = scmp.ne.s32.totalorder %s24, %s25
      %p36 = scmp.eq.s32.totalorder %s16, 0
      %p37 = por %p35, %p36
      %p38 = scmp.ne.s32.totalorder %s24, %s25
      %p39 = scmp.eq.s32.totalorder %s17, 1
      %p40 = por %p38, %p39
      %p42 = scmp.ne.s32.totalorder %s25, %s41
      %p43 = scmp.eq.s32.totalorder %s17, 0
      %p44 = por %p42, %p43
      %s46 = sadd.s32 %s45, 1
      %p49 = scmp.eq.s32.totalorder %s11, 1
      %p50 = scmp.ne.s32.totalorder %s45, %s47
      %p51 = scmp.eq.s32.totalorder %s11, 0
      %p52 = por %p50, %p51
      %p53 = scmp.ne.s32.totalorder %s45, %s47
      %p54 = scmp.eq.s32.totalorder %s16, 1
      %p55 = por %p53, %p54
      %p56 = scmp.ne.s32.totalorder %s47, %s48
      %p57 = scmp.eq.s32.totalorder %s16, 0
      %p58 = por %p56, %p57
      %p59 = scmp.ne.s32.totalorder %s47, %s48
      %p60 = scmp.eq.s32.totalorder %s17, 1
      %p61 = por %p59, %p60
      %p63 = scmp.ne.s32.totalorder %s48, %s62
      %p64 = scmp.eq.s32.totalorder %s17, 0
      %p65 = por %p63, %p64
      %s67 = sadd.s32 %s66, 1
      %p70 = scmp.eq.s32.totalorder %s11, 1
      %p71 = scmp.ne.s32.totalorder %s66, %s68
      %p72 = scmp.eq.s32.totalorder %s11, 0
      %p73 = por %p71, %p72
      %p74 = scmp.ne.s32.totalorder %s66, %s68
      %p75 = scmp.eq.s32.totalorder %s16, 1
      %p76 = por %p74, %p75
      %p77 = scmp.ne.s32.totalorder %s68, %s69
      %p78 = scmp.eq.s32.totalorder %s16, 0
      %p79 = por %p77, %p78
      %p80 = scmp.ne.s32.totalorder %s68, %s69
      %p81 = scmp.eq.s32.totalorder %s17, 1
      %p82 = por %p80, %p81
      %p84 = scmp.ne.s32.totalorder %s69, %s83
      %p85 = scmp.eq.s32.totalorder %s17, 0
      %p86 = por %p84, %p85
      %s87 = ssub.s32 %s11, %s18
      %p88 = scmp.eq.s32.totalorder %s87, 0
      %s90 = sadd.s32 %s89, 1
      %s91 = scalar_select %p88, %s89, %s90
      %p94 = pneg %p88
      %p95 = scmp.eq.s32.totalorder %s11, 1
      %p96 = por %p94, %p95
      %p97 = scmp.ne.s32.totalorder %s89, %s92
      %p98 = scmp.eq.s32.totalorder %s11, 0
      %p99 = por %p97, %p98
      %p100 = scmp.ne.s32.totalorder %s89, %s92
      %p101 = scmp.eq.s32.totalorder %s16, 1
      %p102 = por %p100, %p101
      %p103 = scmp.ne.s32.totalorder %s92, %s93
      %p104 = scmp.eq.s32.totalorder %s16, 0
      %p105 = por %p103, %p104
      %p106 = scmp.ne.s32.totalorder %s92, %s93
      %p107 = scmp.eq.s32.totalorder %s17, 1
      %p108 = por %p106, %p107
      %p110 = scmp.ne.s32.totalorder %s93, %s109
      %p111 = scmp.eq.s32.totalorder %s17, 0
      %p112 = por %p110, %p111
      %p113 = scmp.le.s32.totalorder 1, %s11
      %p114 = scmp.lt.s32.totalorder %s11, 3
      %p115 = pnand %p113, %p114
      %p116 = pneg %p115
      // Predicated region
      $region9: #{cnn_forward.5} parent=5 // pred_check
        _
      $region10: #{cnn_forward.5} parent=5 // pred_check_branch
        %118 = sbr.rel (%p115) target = $region12
      $region11: #{cnn_forward.5} parent=5 // pred_region
        %s119 = ssub.s32 %s11, 1
        // Predicated region
        $region13: #{cnn_forward.5} parent=11 // pred_check
          %p120 = pneg %p58
        $region14: #{cnn_forward.5} parent=11 // pred_check_branch
          %122 = sbr.rel (%p120) target = $region16
        $region15: #{cnn_forward.5} parent=11 // pred_region
          %s124 = ssub.s32 256, 256
          %125 = vsyncadd [#allocation3], %s124
          %s126 = sshll.u32 [#allocation2], 4
          %s127 = int_to_ptr.vmem [resolvable:$true] %s126
          %132 = dma.hbm_to_vmem [thread:$0]  %s1, 256, %s127, [#allocation3], 64, 64, 4
        $region16: #{cnn_forward.5} parent=11 // pred_fallthru
          _
        // Predicated region
        $region17: #{cnn_forward.5} parent=11 // pred_check
          %p133 = pneg %p79
        $region18: #{cnn_forward.5} parent=11 // pred_check_branch
          %135 = sbr.rel (%p133) target = $region20
        $region19: #{cnn_forward.5} parent=11 // pred_region
          %s137 = ssub.s32 16, 16
          %138 = vsyncadd [#allocation5], %s137
          %s140 = sshll.u32 [#allocation4], 4
          %s141 = int_to_ptr.vmem [resolvable:$true] %s140
          %143 = dma.hbm_to_vmem [thread:$0]  %s2, 16, %s141, [#allocation5]
        $region20: #{cnn_forward.5} parent=11 // pred_fallthru
          _
      $region12: #{cnn_forward.5} parent=5 // pred_fallthru
        _
      %p144 = scmp.lt.s32.totalorder %s11, 2
      // Predicated region
      $region21: #{cnn_forward.5} parent=5 // pred_check
        %p145 = pneg %p144
      $region22: #{cnn_forward.5} parent=5 // pred_check_branch
        %147 = sbr.rel (%p145) target = $region24
      $region23: #{cnn_forward.5} parent=5 // pred_region
        // Predicated region
        $region25: #{cnn_forward.5} parent=23 // pred_check
          %p148 = pneg %p31
        $region26: #{cnn_forward.5} parent=23 // pred_check_branch
          %150 = sbr.rel (%p148) target = $region28
        $region27: #{cnn_forward.5} parent=23 // pred_region
          %s151 = smul.u32 72, %s11
          %p152 = scmp.lt.s32.totalorder %s151, 143
          %s153 = scalar_select %p152, %s151, 143
          %s154 = smul.addr %s153, 4
          %s155 = scalar_lea.vmem %s0, %s154
          %s156 = smul.u32 72, %s11
        $region28: #{cnn_forward.5} parent=23 // pred_fallthru
          _
      $region24: #{cnn_forward.5} parent=5 // pred_fallthru
        _
      %p157 = scmp.le.s32.totalorder 1, %s11
      %p158 = scmp.lt.s32.totalorder %s11, 3
      %p159 = pnand %p157, %p158
      %p160 = pneg %p159
      // Predicated region
      $region29: #{cnn_forward.5} parent=5 // pred_check
        _
      $region30: #{cnn_forward.5} parent=5 // pred_check_branch
        %162 = sbr.rel (%p159) target = $region32
      $region31: #{cnn_forward.5} parent=5 // pred_region
        %s163 = ssub.s32 %s11, 1
        // Predicated region
        $region33: #{cnn_forward.5} parent=31 // pred_check
          %p164 = pneg %p58
        $region34: #{cnn_forward.5} parent=31 // pred_check_branch
          %166 = sbr.rel (%p164) target = $region36
        $region35: #{cnn_forward.5} parent=31 // pred_region
          %167 = dma.done [#allocation3], 256
        $region36: #{cnn_forward.5} parent=31 // pred_fallthru
          _
        // Predicated region
        $region37: #{cnn_forward.5} parent=31 // pred_check
          %p168 = pneg %p79
        $region38: #{cnn_forward.5} parent=31 // pred_check_branch
          %170 = sbr.rel (%p168) target = $region40
        $region39: #{cnn_forward.5} parent=31 // pred_region
          %171 = dma.done [#allocation5], 16
        $region40: #{cnn_forward.5} parent=31 // pred_fallthru
          _
        %s172 = smul.u32 72, %s16
        %p173 = scmp.lt.s32.totalorder %s172, 143
        %s174 = scalar_select %p173, %s172, 143
        %s175 = smul.addr %s174, 4
        %s176 = scalar_lea.vmem %s0, %s175
        %p177 = pneg %p37
        %p178 = pneg %p34
        %p179 = pneg %p58
        %p180 = pneg %p55
        %p181 = pneg %p79
        %p182 = pneg %p76
        %p183 = pneg %p105
        %p184 = pneg %p102
        %s185 = smul.u32 72, %s16
        %p186 = scmp.lt.s32.totalorder %s185, 143
        %s187 = scalar_select %p186, %s185, 143
        %s188 = smul.addr %s187, 4
        %s189 = scalar_lea.vmem %s3, %s188
        %s190 = smul.u32 72, %s16
        %p191 = scmp.lt.s32.totalorder %s190, 143
        %s192 = scalar_select %p191, %s190, 143
        %s193 = smul.addr %s192, 4
        %s194 = scalar_lea.vmem %s0, %s193
        %s195 = smul.u32 72, %s16
        %s196 = smul.u32 72, %s16
        %p197 = scmp.lt.s32.totalorder %s196, 143
        %s198 = scalar_select %p197, %s196, 143
        %s199 = smul.addr %s198, 4
        %s200 = scalar_lea.vmem %s3, %s199
        %s201 = smul.u32 72, %s16
        %v203 = vld [vmem:[%s194] sm:$0xf]
        %v204 = vld [vmem:[%s194 + $0x4] sm:$0xf]
        %v205 = vld [vmem:[%s194 + $0x8] sm:$0xf]
        %v206 = vld [vmem:[%s194 + $0xc] sm:$0xf]
        %v207 = vld [vmem:[%s194 + $0x10] sm:$0xf]
        %v208 = vld [vmem:[%s194 + $0x14] sm:$0xf]
        %v209 = vld [vmem:[%s194 + $0x18] sm:$0xf]
        %v210 = vld [vmem:[%s194 + $0x1c] sm:$0xf]
        %v211 = vld [vmem:[%s194 + $0x20] sm:$0xf]
        %v212 = vld [vmem:[%s194 + $0x24] sm:$0xf]
        %v213 = vld [vmem:[%s194 + $0x28] sm:$0xf]
        %v214 = vld [vmem:[%s194 + $0x2c] sm:$0xf]
        %v215 = vld [vmem:[%s194 + $0x30] sm:$0xf]
        %v216 = vld [vmem:[%s194 + $0x34] sm:$0xf]
        %v217 = vld [vmem:[%s194 + $0x38] sm:$0xf]
        %v218 = vld [vmem:[%s194 + $0x3c] sm:$0xf]
        %v219 = vld [vmem:[%s194 + $0x40] sm:$0xf]
        %v220 = vld [vmem:[%s194 + $0x44] sm:$0xf]
        %v221 = vld [vmem:[%s194 + $0x48] sm:$0xf]
        %v222 = vld [vmem:[%s194 + $0x4c] sm:$0xf]
        %v223 = vld [vmem:[%s194 + $0x50] sm:$0xf]
        %v224 = vld [vmem:[%s194 + $0x54] sm:$0xf]
        %v225 = vld [vmem:[%s194 + $0x58] sm:$0xf]
        %v226 = vld [vmem:[%s194 + $0x5c] sm:$0xf]
        %v227 = vld [vmem:[%s194 + $0x60] sm:$0xf]
        %v228 = vld [vmem:[%s194 + $0x64] sm:$0xf]
        %v229 = vld [vmem:[%s194 + $0x68] sm:$0xf]
        %v230 = vld [vmem:[%s194 + $0x6c] sm:$0xf]
        %v231 = vld [vmem:[%s194 + $0x70] sm:$0xf]
        %v232 = vld [vmem:[%s194 + $0x74] sm:$0xf]
        %v233 = vld [vmem:[%s194 + $0x78] sm:$0xf]
        %v234 = vld [vmem:[%s194 + $0x7c] sm:$0xf]
        %v235 = vld [vmem:[%s194 + $0x80] sm:$0xf]
        %v236 = vld [vmem:[%s194 + $0x84] sm:$0xf]
        %v237 = vld [vmem:[%s194 + $0x88] sm:$0xf]
        %v238 = vld [vmem:[%s194 + $0x8c] sm:$0xf]
        %v239 = vld [vmem:[%s194 + $0x90] sm:$0xf]
        %v240 = vld [vmem:[%s194 + $0x94] sm:$0xf]
        %v241 = vld [vmem:[%s194 + $0x98] sm:$0xf]
        %v242 = vld [vmem:[%s194 + $0x9c] sm:$0xf]
        %v243 = vld [vmem:[%s194 + $0xa0] sm:$0xf]
        %v244 = vld [vmem:[%s194 + $0xa4] sm:$0xf]
        %v245 = vld [vmem:[%s194 + $0xa8] sm:$0xf]
        %v246 = vld [vmem:[%s194 + $0xac] sm:$0xf]
        %v247 = vld [vmem:[%s194 + $0xb0] sm:$0xf]
        %v248 = vld [vmem:[%s194 + $0xb4] sm:$0xf]
        %v249 = vld [vmem:[%s194 + $0xb8] sm:$0xf]
        %v250 = vld [vmem:[%s194 + $0xbc] sm:$0xf]
        %v251 = vld [vmem:[%s194 + $0xc0] sm:$0xf]
        %v252 = vld [vmem:[%s194 + $0xc4] sm:$0xf]
        %v253 = vld [vmem:[%s194 + $0xc8] sm:$0xf]
        %v254 = vld [vmem:[%s194 + $0xcc] sm:$0xf]
        %v255 = vld [vmem:[%s194 + $0xd0] sm:$0xf]
        %v256 = vld [vmem:[%s194 + $0xd4] sm:$0xf]
        %v257 = vld [vmem:[%s194 + $0xd8] sm:$0xf]
        %v258 = vld [vmem:[%s194 + $0xdc] sm:$0xf]
        %v259 = vld [vmem:[%s194 + $0xe0] sm:$0xf]
        %v260 = vld [vmem:[%s194 + $0xe4] sm:$0xf]
        %v261 = vld [vmem:[%s194 + $0xe8] sm:$0xf]
        %v262 = vld [vmem:[%s194 + $0xec] sm:$0xf]
        %v263 = vld [vmem:[%s194 + $0xf0] sm:$0xf]
        %v264 = vld [vmem:[%s194 + $0xf4] sm:$0xf]
        %v265 = vld [vmem:[%s194 + $0xf8] sm:$0xf]
        %v266 = vld [vmem:[%s194 + $0xfc] sm:$0xf]
        %v267 = vld [vmem:[%s194 + $0x100] sm:$0xf]
        %v268 = vld [vmem:[%s194 + $0x104] sm:$0xf]
        %v269 = vld [vmem:[%s194 + $0x108] sm:$0xf]
        %v270 = vld [vmem:[%s194 + $0x10c] sm:$0xf]
        %v271 = vld [vmem:[%s194 + $0x110] sm:$0xf]
        %v272 = vld [vmem:[%s194 + $0x114] sm:$0xf]
        %v273 = vld [vmem:[%s194 + $0x118] sm:$0xf]
        %v274 = vld [vmem:[%s194 + $0x11c] sm:$0xf]
        %v275 = vld [vmem:[#allocation2] sm:$0xf]
        %v276 = vld [vmem:[#allocation2 + $0x4] sm:$0xf]
        %v277 = vld [vmem:[#allocation2 + $0x8] sm:$0xf]
        %v278 = vld [vmem:[#allocation2 + $0xc] sm:$0x1]
        %v279 = vld [vmem:[#allocation4] sm:$0x1]
        %v281 = vlaneseq
        %v282 = vshrl.u32 %v281, 7
        %v283 = vsub.s32 0, %v282
        %v284 = vrot.slane %v279, %v283
        %v358 = vunpack.c.l.b16 %v203
        %v359 = vunpack.c.l.b16 %v204
        %v360 = vunpack.c.l.b16 %v205
        %v361 = vunpack.c.l.b16 %v206
        %v362 = vunpack.c.l.b16 %v207
        %v363 = vunpack.c.l.b16 %v208
        %v364 = vunpack.c.l.b16 %v209
        %v365 = vunpack.c.l.b16 %v210
        %v366 = vunpack.c.l.b16 %v211
        %v367 = vunpack.c.l.b16 %v212
        %v368 = vunpack.c.l.b16 %v213
        %v369 = vunpack.c.l.b16 %v214
        %v370 = vunpack.c.l.b16 %v215
        %v371 = vunpack.c.l.b16 %v216
        %v372 = vunpack.c.l.b16 %v217
        %v373 = vunpack.c.l.b16 %v218
        %v374 = vunpack.c.l.b16 %v219
        %v375 = vunpack.c.l.b16 %v220
        %v376 = vunpack.c.l.b16 %v221
        %v377 = vunpack.c.l.b16 %v222
        %v378 = vunpack.c.l.b16 %v223
        %v379 = vunpack.c.l.b16 %v224
        %v380 = vunpack.c.l.b16 %v225
        %v381 = vunpack.c.l.b16 %v226
        %v382 = vunpack.c.l.b16 %v227
        %v383 = vunpack.c.l.b16 %v228
        %v384 = vunpack.c.l.b16 %v229
        %v385 = vunpack.c.l.b16 %v230
        %v386 = vunpack.c.l.b16 %v231
        %v387 = vunpack.c.l.b16 %v232
        %v388 = vunpack.c.l.b16 %v233
        %v389 = vunpack.c.l.b16 %v234
        %v390 = vunpack.c.l.b16 %v235
        %v391 = vunpack.c.l.b16 %v236
        %v392 = vunpack.c.l.b16 %v237
        %v393 = vunpack.c.l.b16 %v238
        %v394 = vunpack.c.l.b16 %v239
        %v395 = vunpack.c.l.b16 %v240
        %v396 = vunpack.c.l.b16 %v241
        %v397 = vunpack.c.l.b16 %v242
        %v398 = vunpack.c.l.b16 %v243
        %v399 = vunpack.c.l.b16 %v244
        %v400 = vunpack.c.l.b16 %v245
        %v401 = vunpack.c.l.b16 %v246
        %v402 = vunpack.c.l.b16 %v247
        %v403 = vunpack.c.l.b16 %v248
        %v404 = vunpack.c.l.b16 %v249
        %v405 = vunpack.c.l.b16 %v250
        %v406 = vunpack.c.l.b16 %v251
        %v407 = vunpack.c.l.b16 %v252
        %v408 = vunpack.c.l.b16 %v253
        %v409 = vunpack.c.l.b16 %v254
        %v410 = vunpack.c.l.b16 %v255
        %v411 = vunpack.c.l.b16 %v256
        %v412 = vunpack.c.l.b16 %v257
        %v413 = vunpack.c.l.b16 %v258
        %v414 = vunpack.c.l.b16 %v259
        %v415 = vunpack.c.l.b16 %v260
        %v416 = vunpack.c.l.b16 %v261
        %v417 = vunpack.c.l.b16 %v262
        %v418 = vunpack.c.l.b16 %v263
        %v419 = vunpack.c.l.b16 %v264
        %v420 = vunpack.c.l.b16 %v265
        %v421 = vunpack.c.l.b16 %v266
        %v422 = vunpack.c.l.b16 %v267
        %v423 = vunpack.c.l.b16 %v268
        %v424 = vunpack.c.l.b16 %v269
        %v425 = vunpack.c.l.b16 %v270
        %v426 = vunpack.c.l.b16 %v271
        %v427 = vunpack.c.l.b16 %v272
        %v428 = vunpack.c.l.b16 %v273
        %v429 = vunpack.c.l.b16 %v274
        %v430 = vpack.c.b16 %v359, %v358
        %v431 = vpack.c.b16 %v361, %v360
        %v432 = vpack.c.b16 %v363, %v362
        %v433 = vpack.c.b16 %v365, %v364
        %v434 = vpack.c.b16 %v367, %v366
        %v435 = vpack.c.b16 %v369, %v368
        %v436 = vpack.c.b16 %v371, %v370
        %v437 = vpack.c.b16 %v373, %v372
        %v438 = vpack.c.b16 %v375, %v374
        %v439 = vpack.c.b16 %v377, %v376
        %v440 = vpack.c.b16 %v379, %v378
        %v441 = vpack.c.b16 %v381, %v380
        %v442 = vpack.c.b16 %v383, %v382
        %v443 = vpack.c.b16 %v385, %v384
        %v444 = vpack.c.b16 %v387, %v386
        %v445 = vpack.c.b16 %v389, %v388
        %v446 = vpack.c.b16 %v391, %v390
        %v447 = vpack.c.b16 %v393, %v392
        %v448 = vpack.c.b16 %v395, %v394
        %v449 = vpack.c.b16 %v397, %v396
        %v450 = vpack.c.b16 %v399, %v398
        %v451 = vpack.c.b16 %v401, %v400
        %v452 = vpack.c.b16 %v403, %v402
        %v453 = vpack.c.b16 %v405, %v404
        %v454 = vpack.c.b16 %v407, %v406
        %v455 = vpack.c.b16 %v409, %v408
        %v456 = vpack.c.b16 %v411, %v410
        %v457 = vpack.c.b16 %v413, %v412
        %v458 = vpack.c.b16 %v415, %v414
        %v459 = vpack.c.b16 %v417, %v416
        %v460 = vpack.c.b16 %v419, %v418
        %v461 = vpack.c.b16 %v421, %v420
        %v462 = vpack.c.b16 %v423, %v422
        %v463 = vpack.c.b16 %v425, %v424
        %v464 = vpack.c.b16 %v427, %v426
        %v465 = vpack.c.b16 %v429, %v428
        %v470 = vunpack.c.l.b16 %v275
        %v471 = vunpack.c.l.b16 %v276
        %v472 = vunpack.c.l.b16 %v277
        %v473 = vunpack.c.l.b16 %v278
        %v474 = vpack.c.b16 %v471, %v470
        %v475 = vpack.c.b16 %v473, %v472
        %vm477 = vcmask 203776
        %v479 = vsel %vm477, %v430, 0
        %v482 = vsel %vm477, %v431, 0
        %v485 = vsel %vm477, %v432, 0
        %v488 = vsel %vm477, %v433, 0
        %v491 = vsel %vm477, %v434, 0
        %v494 = vsel %vm477, %v435, 0
        %v497 = vsel %vm477, %v436, 0
        %v500 = vsel %vm477, %v437, 0
        %v503 = vsel %vm477, %v438, 0
        %v506 = vsel %vm477, %v439, 0
        %v509 = vsel %vm477, %v440, 0
        %v512 = vsel %vm477, %v441, 0
        %v515 = vsel %vm477, %v442, 0
        %v518 = vsel %vm477, %v443, 0
        %v521 = vsel %vm477, %v444, 0
        %v524 = vsel %vm477, %v445, 0
        %v527 = vsel %vm477, %v446, 0
        %v530 = vsel %vm477, %v447, 0
        %v533 = vsel %vm477, %v448, 0
        %v536 = vsel %vm477, %v449, 0
        %v539 = vsel %vm477, %v450, 0
        %v542 = vsel %vm477, %v451, 0
        %v545 = vsel %vm477, %v452, 0
        %v548 = vsel %vm477, %v453, 0
        %v551 = vsel %vm477, %v454, 0
        %v554 = vsel %vm477, %v455, 0
        %v557 = vsel %vm477, %v456, 0
        %v560 = vsel %vm477, %v457, 0
        %v563 = vsel %vm477, %v458, 0
        %v566 = vsel %vm477, %v459, 0
        %v569 = vsel %vm477, %v460, 0
        %v572 = vsel %vm477, %v461, 0
        %v575 = vsel %vm477, %v462, 0
        %v578 = vsel %vm477, %v463, 0
        %v581 = vsel %vm477, %v464, 0
        %v584 = vsel %vm477, %v465, 0
        %vm586 = vcmask 1043456
        %vm587 = vcmask 1044480
        %v588 = vsel %vm586, 4294967295, 65535
        %v589 = vsel %vm587, %v588, 0
        %v591 = vand.u32 %v475, %v589
        %593 = vmatprep.subr.bf16.mxu0 0
        %594 = vmatpush1.bf16.msra.mxu0 %v474
        %595 = vmatprep.subr.bf16.mxu0 0
        %596 = vmatpush1.bf16.msra.mxu0 %v591
        %597 = vmatprep.subr.bf16.mxu0 0
        %598 = vmatpush1.bf16.msra.mxu0 0
        %599 = vmatprep.subr.bf16.mxu0 0
        %600 = vmatpush1.bf16.msra.mxu0 0
        %601 = vmatprep.subr.bf16.mxu0 0
        %602 = vmatpush1.bf16.msra.mxu0 0
        %603 = vmatprep.subr.bf16.mxu0 0
        %604 = vmatpush1.bf16.msra.mxu0 0
        %605 = vmatprep.subr.bf16.mxu0 0
        %606 = vmatpush1.bf16.msra.mxu0 0
        %607 = vmatprep.subr.bf16.mxu0 0
        %608 = vmatpush1.bf16.msra.mxu0 0
        %609 = vmatprep.subr.bf16.mxu0 0
        %610 = vmatpush1.bf16.msra.mxu0 0
        %611 = vmatprep.subr.bf16.mxu0 0
        %612 = vmatpush1.bf16.msra.mxu0 0
        %613 = vmatprep.subr.bf16.mxu0 0
        %614 = vmatpush1.bf16.msra.mxu0 0
        %615 = vmatprep.subr.bf16.mxu0 0
        %616 = vmatpush1.bf16.msra.mxu0 0
        %617 = vmatprep.subr.bf16.mxu0 0
        %618 = vmatpush1.bf16.msra.mxu0 0
        %619 = vmatprep.subr.bf16.mxu0 0
        %620 = vmatpush1.bf16.msra.mxu0 0
        %621 = vmatprep.subr.bf16.mxu0 0
        %622 = vmatpush1.bf16.msra.mxu0 0
        %623 = vmatprep.subr.bf16.mxu0 0
        %624 = vmatpush1.bf16.msra.mxu0 0
        %625 = vmatprep.mubr.bf16.mxu0 0
        %626 = vmatmul.mubr.bf16.gmra.mrb[0].mxu0 %v479
        %v627 = vpop.f32.mrb[0].mxu0
        %v628 = vadd.f32 %v284, %v627
        %v629 = vpop.f32.mrb[0].mxu0
        %v630 = vpop.f32.mrb[0].mxu0
        %v631 = vadd.f32 %v284, %v630
        %v632 = vpop.f32.mrb[0].mxu0
        %633 = vmatprep.mubr.bf16.mxu0 0
        %634 = vmatmul.mubr.bf16.gmra.mrb[0].mxu0 %v482
        %v635 = vpop.f32.mrb[0].mxu0
        %v636 = vadd.f32 %v284, %v635
        %v637 = vpop.f32.mrb[0].mxu0
        %v638 = vpop.f32.mrb[0].mxu0
        %v639 = vadd.f32 %v284, %v638
        %v640 = vpop.f32.mrb[0].mxu0
        %641 = vmatprep.mubr.bf16.mxu0 0
        %642 = vmatmul.mubr.bf16.gmra.mrb[0].mxu0 %v485
        %v643 = vpop.f32.mrb[0].mxu0
        %v644 = vadd.f32 %v284, %v643
        %v645 = vpop.f32.mrb[0].mxu0
        %v646 = vpop.f32.mrb[0].mxu0
        %v647 = vadd.f32 %v284, %v646
        %v648 = vpop.f32.mrb[0].mxu0
        %649 = vmatprep.mubr.bf16.mxu0 0
        %650 = vmatmul.mubr.bf16.gmra.mrb[0].mxu0 %v488
        %v651 = vpop.f32.mrb[0].mxu0
        %v652 = vadd.f32 %v284, %v651
        %v653 = vpop.f32.mrb[0].mxu0
        %v654 = vpop.f32.mrb[0].mxu0
        %v655 = vadd.f32 %v284, %v654
        %v656 = vpop.f32.mrb[0].mxu0
        %657 = vmatprep.mubr.bf16.mxu0 0
        %658 = vmatmul.mubr.bf16.gmra.mrb[0].mxu0 %v491
        %v659 = vpop.f32.mrb[0].mxu0
        %v660 = vadd.f32 %v284, %v659
        %v661 = vpop.f32.mrb[0].mxu0
        %v662 = vpop.f32.mrb[0].mxu0
        %v663 = vadd.f32 %v284, %v662
        %v664 = vpop.f32.mrb[0].mxu0
        %665 = vmatprep.mubr.bf16.mxu0 0
        %666 = vmatmul.mubr.bf16.gmra.mrb[0].mxu0 %v494
        %v667 = vpop.f32.mrb[0].mxu0
        %v668 = vadd.f32 %v284, %v667
        %v669 = vpop.f32.mrb[0].mxu0
        %v670 = vpop.f32.mrb[0].mxu0
        %v671 = vadd.f32 %v284, %v670
        %v672 = vpop.f32.mrb[0].mxu0
        %673 = vmatprep.mubr.bf16.mxu0 0
        %674 = vmatmul.mubr.bf16.gmra.mrb[0].mxu0 %v497
        %v675 = vpop.f32.mrb[0].mxu0
        %v676 = vadd.f32 %v284, %v675
        %v677 = vpop.f32.mrb[0].mxu0
        %v678 = vpop.f32.mrb[0].mxu0
        %v679 = vadd.f32 %v284, %v678
        %v680 = vpop.f32.mrb[0].mxu0
        %681 = vmatprep.mubr.bf16.mxu0 0
        %682 = vmatmul.mubr.bf16.gmra.mrb[0].mxu0 %v500
        %v683 = vpop.f32.mrb[0].mxu0
        %v684 = vadd.f32 %v284, %v683
        %v685 = vpop.f32.mrb[0].mxu0
        %v686 = vpop.f32.mrb[0].mxu0
        %v687 = vadd.f32 %v284, %v686
        %v688 = vpop.f32.mrb[0].mxu0
        %689 = vmatprep.mubr.bf16.mxu0 0
        %690 = vmatmul.mubr.bf16.gmra.mrb[0].mxu0 %v503
        %v691 = vpop.f32.mrb[0].mxu0
        %v692 = vadd.f32 %v284, %v691
        %v693 = vpop.f32.mrb[0].mxu0
        %v694 = vpop.f32.mrb[0].mxu0
        %v695 = vadd.f32 %v284, %v694
        %v696 = vpop.f32.mrb[0].mxu0
        %697 = vmatprep.mubr.bf16.mxu0 0
        %698 = vmatmul.mubr.bf16.gmra.mrb[0].mxu0 %v506
        %v699 = vpop.f32.mrb[0].mxu0
        %v700 = vadd.f32 %v284, %v699
        %v701 = vpop.f32.mrb[0].mxu0
        %v702 = vpop.f32.mrb[0].mxu0
        %v703 = vadd.f32 %v284, %v702
        %v704 = vpop.f32.mrb[0].mxu0
        %705 = vmatprep.mubr.bf16.mxu0 0
        %706 = vmatmul.mubr.bf16.gmra.mrb[0].mxu0 %v509
        %v707 = vpop.f32.mrb[0].mxu0
        %v708 = vadd.f32 %v284, %v707
        %v709 = vpop.f32.mrb[0].mxu0
        %v710 = vpop.f32.mrb[0].mxu0
        %v711 = vadd.f32 %v284, %v710
        %v712 = vpop.f32.mrb[0].mxu0
        %713 = vmatprep.mubr.bf16.mxu0 0
        %714 = vmatmul.mubr.bf16.gmra.mrb[0].mxu0 %v512
        %v715 = vpop.f32.mrb[0].mxu0
        %v716 = vadd.f32 %v284, %v715
        %v717 = vpop.f32.mrb[0].mxu0
        %v718 = vpop.f32.mrb[0].mxu0
        %v719 = vadd.f32 %v284, %v718
        %v720 = vpop.f32.mrb[0].mxu0
        %721 = vmatprep.mubr.bf16.mxu0 0
        %722 = vmatmul.mubr.bf16.gmra.mrb[0].mxu0 %v515
        %v723 = vpop.f32.mrb[0].mxu0
        %v724 = vadd.f32 %v284, %v723
        %v725 = vpop.f32.mrb[0].mxu0
        %v726 = vpop.f32.mrb[0].mxu0
        %v727 = vadd.f32 %v284, %v726
        %v728 = vpop.f32.mrb[0].mxu0
        %729 = vmatprep.mubr.bf16.mxu0 0
        %730 = vmatmul.mubr.bf16.gmra.mrb[0].mxu0 %v518
        %v731 = vpop.f32.mrb[0].mxu0
        %v732 = vadd.f32 %v284, %v731
        %v733 = vpop.f32.mrb[0].mxu0
        %v734 = vpop.f32.mrb[0].mxu0
        %v735 = vadd.f32 %v284, %v734
        %v736 = vpop.f32.mrb[0].mxu0
        %737 = vmatprep.mubr.bf16.mxu0 0
        %738 = vmatmul.mubr.bf16.gmra.mrb[0].mxu0 %v521
        %v739 = vpop.f32.mrb[0].mxu0
        %v740 = vadd.f32 %v284, %v739
        %v741 = vpop.f32.mrb[0].mxu0
        %v742 = vpop.f32.mrb[0].mxu0
        %v743 = vadd.f32 %v284, %v742
        %v744 = vpop.f32.mrb[0].mxu0
        %745 = vmatprep.mubr.bf16.mxu0 0
        %746 = vmatmul.mubr.bf16.gmra.mrb[0].mxu0 %v524
        %v747 = vpop.f32.mrb[0].mxu0
        %v748 = vadd.f32 %v284, %v747
        %v749 = vpop.f32.mrb[0].mxu0
        %v750 = vpop.f32.mrb[0].mxu0
        %v751 = vadd.f32 %v284, %v750
        %v752 = vpop.f32.mrb[0].mxu0
        %753 = vmatprep.mubr.bf16.mxu0 0
        %754 = vmatmul.mubr.bf16.gmra.mrb[0].mxu0 %v527
        %v755 = vpop.f32.mrb[0].mxu0
        %v756 = vadd.f32 %v284, %v755
        %v757 = vpop.f32.mrb[0].mxu0
        %v758 = vpop.f32.mrb[0].mxu0
        %v759 = vadd.f32 %v284, %v758
        %v760 = vpop.f32.mrb[0].mxu0
        %761 = vmatprep.mubr.bf16.mxu0 0
        %762 = vmatmul.mubr.bf16.gmra.mrb[0].mxu0 %v530
        %v763 = vpop.f32.mrb[0].mxu0
        %v764 = vadd.f32 %v284, %v763
        %v765 = vpop.f32.mrb[0].mxu0
        %v766 = vpop.f32.mrb[0].mxu0
        %v767 = vadd.f32 %v284, %v766
        %v768 = vpop.f32.mrb[0].mxu0
        %769 = vmatprep.mubr.bf16.mxu0 0
        %770 = vmatmul.mubr.bf16.gmra.mrb[0].mxu0 %v533
        %v771 = vpop.f32.mrb[0].mxu0
        %v772 = vadd.f32 %v284, %v771
        %v773 = vpop.f32.mrb[0].mxu0
        %v774 = vpop.f32.mrb[0].mxu0
        %v775 = vadd.f32 %v284, %v774
        %v776 = vpop.f32.mrb[0].mxu0
        %777 = vmatprep.mubr.bf16.mxu0 0
        %778 = vmatmul.mubr.bf16.gmra.mrb[0].mxu0 %v536
        %v779 = vpop.f32.mrb[0].mxu0
        %v780 = vadd.f32 %v284, %v779
        %v781 = vpop.f32.mrb[0].mxu0
        %v782 = vpop.f32.mrb[0].mxu0
        %v783 = vadd.f32 %v284, %v782
        %v784 = vpop.f32.mrb[0].mxu0
        %785 = vmatprep.mubr.bf16.mxu0 0
        %786 = vmatmul.mubr.bf16.gmra.mrb[0].mxu0 %v539
        %v787 = vpop.f32.mrb[0].mxu0
        %v788 = vadd.f32 %v284, %v787
        %v789 = vpop.f32.mrb[0].mxu0
        %v790 = vpop.f32.mrb[0].mxu0
        %v791 = vadd.f32 %v284, %v790
        %v792 = vpop.f32.mrb[0].mxu0
        %793 = vmatprep.mubr.bf16.mxu0 0
        %794 = vmatmul.mubr.bf16.gmra.mrb[0].mxu0 %v542
        %v795 = vpop.f32.mrb[0].mxu0
        %v796 = vadd.f32 %v284, %v795
        %v797 = vpop.f32.mrb[0].mxu0
        %v798 = vpop.f32.mrb[0].mxu0
        %v799 = vadd.f32 %v284, %v798
        %v800 = vpop.f32.mrb[0].mxu0
        %801 = vmatprep.mubr.bf16.mxu0 0
        %802 = vmatmul.mubr.bf16.gmra.mrb[0].mxu0 %v545
        %v803 = vpop.f32.mrb[0].mxu0
        %v804 = vadd.f32 %v284, %v803
        %v805 = vpop.f32.mrb[0].mxu0
        %v806 = vpop.f32.mrb[0].mxu0
        %v807 = vadd.f32 %v284, %v806
        %v808 = vpop.f32.mrb[0].mxu0
        %809 = vmatprep.mubr.bf16.mxu0 0
        %810 = vmatmul.mubr.bf16.gmra.mrb[0].mxu0 %v548
        %v811 = vpop.f32.mrb[0].mxu0
        %v812 = vadd.f32 %v284, %v811
        %v813 = vpop.f32.mrb[0].mxu0
        %v814 = vpop.f32.mrb[0].mxu0
        %v815 = vadd.f32 %v284, %v814
        %v816 = vpop.f32.mrb[0].mxu0
        %817 = vmatprep.mubr.bf16.mxu0 0
        %818 = vmatmul.mubr.bf16.gmra.mrb[0].mxu0 %v551
        %v819 = vpop.f32.mrb[0].mxu0
        %v820 = vadd.f32 %v284, %v819
        %v821 = vpop.f32.mrb[0].mxu0
        %v822 = vpop.f32.mrb[0].mxu0
        %v823 = vadd.f32 %v284, %v822
        %v824 = vpop.f32.mrb[0].mxu0
        %825 = vmatprep.mubr.bf16.mxu0 0
        %826 = vmatmul.mubr.bf16.gmra.mrb[0].mxu0 %v554
        %v827 = vpop.f32.mrb[0].mxu0
        %v828 = vadd.f32 %v284, %v827
        %v829 = vpop.f32.mrb[0].mxu0
        %v830 = vpop.f32.mrb[0].mxu0
        %v831 = vadd.f32 %v284, %v830
        %v832 = vpop.f32.mrb[0].mxu0
        %833 = vmatprep.mubr.bf16.mxu0 0
        %834 = vmatmul.mubr.bf16.gmra.mrb[0].mxu0 %v557
        %v835 = vpop.f32.mrb[0].mxu0
        %v836 = vadd.f32 %v284, %v835
        %v837 = vpop.f32.mrb[0].mxu0
        %v838 = vpop.f32.mrb[0].mxu0
        %v839 = vadd.f32 %v284, %v838
        %v840 = vpop.f32.mrb[0].mxu0
        %841 = vmatprep.mubr.bf16.mxu0 0
        %842 = vmatmul.mubr.bf16.gmra.mrb[0].mxu0 %v560
        %v843 = vpop.f32.mrb[0].mxu0
        %v844 = vadd.f32 %v284, %v843
        %v845 = vpop.f32.mrb[0].mxu0
        %v846 = vpop.f32.mrb[0].mxu0
        %v847 = vadd.f32 %v284, %v846
        %v848 = vpop.f32.mrb[0].mxu0
        %849 = vmatprep.mubr.bf16.mxu0 0
        %850 = vmatmul.mubr.bf16.gmra.mrb[0].mxu0 %v563
        %v851 = vpop.f32.mrb[0].mxu0
        %v852 = vadd.f32 %v284, %v851
        %v853 = vpop.f32.mrb[0].mxu0
        %v854 = vpop.f32.mrb[0].mxu0
        %v855 = vadd.f32 %v284, %v854
        %v856 = vpop.f32.mrb[0].mxu0
        %857 = vmatprep.mubr.bf16.mxu0 0
        %858 = vmatmul.mubr.bf16.gmra.mrb[0].mxu0 %v566
        %v859 = vpop.f32.mrb[0].mxu0
        %v860 = vadd.f32 %v284, %v859
        %v861 = vpop.f32.mrb[0].mxu0
        %v862 = vpop.f32.mrb[0].mxu0
        %v863 = vadd.f32 %v284, %v862
        %v864 = vpop.f32.mrb[0].mxu0
        %865 = vmatprep.mubr.bf16.mxu0 0
        %866 = vmatmul.mubr.bf16.gmra.mrb[0].mxu0 %v569
        %v867 = vpop.f32.mrb[0].mxu0
        %v868 = vadd.f32 %v284, %v867
        %v869 = vpop.f32.mrb[0].mxu0
        %v870 = vpop.f32.mrb[0].mxu0
        %v871 = vadd.f32 %v284, %v870
        %v872 = vpop.f32.mrb[0].mxu0
        %873 = vmatprep.mubr.bf16.mxu0 0
        %874 = vmatmul.mubr.bf16.gmra.mrb[0].mxu0 %v572
        %v875 = vpop.f32.mrb[0].mxu0
        %v876 = vadd.f32 %v284, %v875
        %v877 = vpop.f32.mrb[0].mxu0
        %v878 = vpop.f32.mrb[0].mxu0
        %v879 = vadd.f32 %v284, %v878
        %v880 = vpop.f32.mrb[0].mxu0
        %881 = vmatprep.mubr.bf16.mxu0 0
        %882 = vmatmul.mubr.bf16.gmra.mrb[0].mxu0 %v575
        %v883 = vpop.f32.mrb[0].mxu0
        %v884 = vadd.f32 %v284, %v883
        %v885 = vpop.f32.mrb[0].mxu0
        %v886 = vpop.f32.mrb[0].mxu0
        %v887 = vadd.f32 %v284, %v886
        %v888 = vpop.f32.mrb[0].mxu0
        %889 = vmatprep.mubr.bf16.mxu0 0
        %890 = vmatmul.mubr.bf16.gmra.mrb[0].mxu0 %v578
        %v891 = vpop.f32.mrb[0].mxu0
        %v892 = vadd.f32 %v284, %v891
        %v893 = vpop.f32.mrb[0].mxu0
        %v894 = vpop.f32.mrb[0].mxu0
        %v895 = vadd.f32 %v284, %v894
        %v896 = vpop.f32.mrb[0].mxu0
        %897 = vmatprep.mubr.bf16.mxu0 0
        %898 = vmatmul.mubr.bf16.gmra.mrb[0].mxu0 %v581
        %v899 = vpop.f32.mrb[0].mxu0
        %v900 = vadd.f32 %v284, %v899
        %v901 = vpop.f32.mrb[0].mxu0
        %v902 = vpop.f32.mrb[0].mxu0
        %v903 = vadd.f32 %v284, %v902
        %v904 = vpop.f32.mrb[0].mxu0
        %905 = vmatprep.mubr.bf16.mxu0 0
        %906 = vmatmul.mubr.bf16.gmra.mrb[0].mxu0 %v584
        %v907 = vpop.f32.mrb[0].mxu0
        %v908 = vadd.f32 %v284, %v907
        %v909 = vpop.f32.mrb[0].mxu0
        %v910 = vpop.f32.mrb[0].mxu0
        %v911 = vadd.f32 %v284, %v910
        %v912 = vpop.f32.mrb[0].mxu0
        %913 = vdwg.mxu0
        %v914 = vmax.f32 %v628, 0.0
        %v915 = vmax.f32 %v631, 0.0
        %v916 = vmax.f32 %v636, 0.0
        %v917 = vmax.f32 %v639, 0.0
        %v918 = vmax.f32 %v644, 0.0
        %v919 = vmax.f32 %v647, 0.0
        %v920 = vmax.f32 %v652, 0.0
        %v921 = vmax.f32 %v655, 0.0
        %v922 = vmax.f32 %v660, 0.0
        %v923 = vmax.f32 %v663, 0.0
        %v924 = vmax.f32 %v668, 0.0
        %v925 = vmax.f32 %v671, 0.0
        %v926 = vmax.f32 %v676, 0.0
        %v927 = vmax.f32 %v679, 0.0
        %v928 = vmax.f32 %v684, 0.0
        %v929 = vmax.f32 %v687, 0.0
        %v930 = vmax.f32 %v692, 0.0
        %v931 = vmax.f32 %v695, 0.0
        %v932 = vmax.f32 %v700, 0.0
        %v933 = vmax.f32 %v703, 0.0
        %v934 = vmax.f32 %v708, 0.0
        %v935 = vmax.f32 %v711, 0.0
        %v936 = vmax.f32 %v716, 0.0
        %v937 = vmax.f32 %v719, 0.0
        %v938 = vmax.f32 %v724, 0.0
        %v939 = vmax.f32 %v727, 0.0
        %v940 = vmax.f32 %v732, 0.0
        %v941 = vmax.f32 %v735, 0.0
        %v942 = vmax.f32 %v740, 0.0
        %v943 = vmax.f32 %v743, 0.0
        %v944 = vmax.f32 %v748, 0.0
        %v945 = vmax.f32 %v751, 0.0
        %v946 = vmax.f32 %v756, 0.0
        %v947 = vmax.f32 %v759, 0.0
        %v948 = vmax.f32 %v764, 0.0
        %v949 = vmax.f32 %v767, 0.0
        %v950 = vmax.f32 %v772, 0.0
        %v951 = vmax.f32 %v775, 0.0
        %v952 = vmax.f32 %v780, 0.0
        %v953 = vmax.f32 %v783, 0.0
        %v954 = vmax.f32 %v788, 0.0
        %v955 = vmax.f32 %v791, 0.0
        %v956 = vmax.f32 %v796, 0.0
        %v957 = vmax.f32 %v799, 0.0
        %v958 = vmax.f32 %v804, 0.0
        %v959 = vmax.f32 %v807, 0.0
        %v960 = vmax.f32 %v812, 0.0
        %v961 = vmax.f32 %v815, 0.0
        %v962 = vmax.f32 %v820, 0.0
        %v963 = vmax.f32 %v823, 0.0
        %v964 = vmax.f32 %v828, 0.0
        %v965 = vmax.f32 %v831, 0.0
        %v966 = vmax.f32 %v836, 0.0
        %v967 = vmax.f32 %v839, 0.0
        %v968 = vmax.f32 %v844, 0.0
        %v969 = vmax.f32 %v847, 0.0
        %v970 = vmax.f32 %v852, 0.0
        %v971 = vmax.f32 %v855, 0.0
        %v972 = vmax.f32 %v860, 0.0
        %v973 = vmax.f32 %v863, 0.0
        %v974 = vmax.f32 %v868, 0.0
        %v975 = vmax.f32 %v871, 0.0
        %v976 = vmax.f32 %v876, 0.0
        %v977 = vmax.f32 %v879, 0.0
        %v978 = vmax.f32 %v884, 0.0
        %v979 = vmax.f32 %v887, 0.0
        %v980 = vmax.f32 %v892, 0.0
        %v981 = vmax.f32 %v895, 0.0
        %v982 = vmax.f32 %v900, 0.0
        %v983 = vmax.f32 %v903, 0.0
        %v984 = vmax.f32 %v908, 0.0
        %v985 = vmax.f32 %v911, 0.0
        %v986 = vpack.c.bf16 %v915, %v914
        %v987 = vpack.c.bf16 %v917, %v916
        %v988 = vpack.c.bf16 %v919, %v918
        %v989 = vpack.c.bf16 %v921, %v920
        %v990 = vpack.c.bf16 %v923, %v922
        %v991 = vpack.c.bf16 %v925, %v924
        %v992 = vpack.c.bf16 %v927, %v926
        %v993 = vpack.c.bf16 %v929, %v928
        %v994 = vpack.c.bf16 %v931, %v930
        %v995 = vpack.c.bf16 %v933, %v932
        %v996 = vpack.c.bf16 %v935, %v934
        %v997 = vpack.c.bf16 %v937, %v936
        %v998 = vpack.c.bf16 %v939, %v938
        %v999 = vpack.c.bf16 %v941, %v940
        %v1000 = vpack.c.bf16 %v943, %v942
        %v1001 = vpack.c.bf16 %v945, %v944
        %v1002 = vpack.c.bf16 %v947, %v946
        %v1003 = vpack.c.bf16 %v949, %v948
        %v1004 = vpack.c.bf16 %v951, %v950
        %v1005 = vpack.c.bf16 %v953, %v952
        %v1006 = vpack.c.bf16 %v955, %v954
        %v1007 = vpack.c.bf16 %v957, %v956
        %v1008 = vpack.c.bf16 %v959, %v958
        %v1009 = vpack.c.bf16 %v961, %v960
        %v1010 = vpack.c.bf16 %v963, %v962
        %v1011 = vpack.c.bf16 %v965, %v964
        %v1012 = vpack.c.bf16 %v967, %v966
        %v1013 = vpack.c.bf16 %v969, %v968
        %v1014 = vpack.c.bf16 %v971, %v970
        %v1015 = vpack.c.bf16 %v973, %v972
        %v1016 = vpack.c.bf16 %v975, %v974
        %v1017 = vpack.c.bf16 %v977, %v976
        %v1018 = vpack.c.bf16 %v979, %v978
        %v1019 = vpack.c.bf16 %v981, %v980
        %v1020 = vpack.c.bf16 %v983, %v982
        %v1021 = vpack.c.bf16 %v985, %v984
        %v1058 = vunpack.c.l.b16 %v986
        %v1059 = vunpack.c.h.b16 %v986
        %v1060 = vunpack.c.l.b16 %v987
        %v1061 = vunpack.c.h.b16 %v987
        %v1062 = vunpack.c.l.b16 %v988
        %v1063 = vunpack.c.h.b16 %v988
        %v1064 = vunpack.c.l.b16 %v989
        %v1065 = vunpack.c.h.b16 %v989
        %v1066 = vunpack.c.l.b16 %v990
        %v1067 = vunpack.c.h.b16 %v990
        %v1068 = vunpack.c.l.b16 %v991
        %v1069 = vunpack.c.h.b16 %v991
        %v1070 = vunpack.c.l.b16 %v992
        %v1071 = vunpack.c.h.b16 %v992
        %v1072 = vunpack.c.l.b16 %v993
        %v1073 = vunpack.c.h.b16 %v993
        %v1074 = vunpack.c.l.b16 %v994
        %v1075 = vunpack.c.h.b16 %v994
        %v1076 = vunpack.c.l.b16 %v995
        %v1077 = vunpack.c.h.b16 %v995
        %v1078 = vunpack.c.l.b16 %v996
        %v1079 = vunpack.c.h.b16 %v996
        %v1080 = vunpack.c.l.b16 %v997
        %v1081 = vunpack.c.h.b16 %v997
        %v1082 = vunpack.c.l.b16 %v998
        %v1083 = vunpack.c.h.b16 %v998
        %v1084 = vunpack.c.l.b16 %v999
        %v1085 = vunpack.c.h.b16 %v999
        %v1086 = vunpack.c.l.b16 %v1000
        %v1087 = vunpack.c.h.b16 %v1000
        %v1088 = vunpack.c.l.b16 %v1001
        %v1089 = vunpack.c.h.b16 %v1001
        %v1090 = vunpack.c.l.b16 %v1002
        %v1091 = vunpack.c.h.b16 %v1002
        %v1092 = vunpack.c.l.b16 %v1003
        %v1093 = vunpack.c.h.b16 %v1003
        %v1094 = vunpack.c.l.b16 %v1004
        %v1095 = vunpack.c.h.b16 %v1004
        %v1096 = vunpack.c.l.b16 %v1005
        %v1097 = vunpack.c.h.b16 %v1005
        %v1098 = vunpack.c.l.b16 %v1006
        %v1099 = vunpack.c.h.b16 %v1006
        %v1100 = vunpack.c.l.b16 %v1007
        %v1101 = vunpack.c.h.b16 %v1007
        %v1102 = vunpack.c.l.b16 %v1008
        %v1103 = vunpack.c.h.b16 %v1008
        %v1104 = vunpack.c.l.b16 %v1009
        %v1105 = vunpack.c.h.b16 %v1009
        %v1106 = vunpack.c.l.b16 %v1010
        %v1107 = vunpack.c.h.b16 %v1010
        %v1108 = vunpack.c.l.b16 %v1011
        %v1109 = vunpack.c.h.b16 %v1011
        %v1110 = vunpack.c.l.b16 %v1012
        %v1111 = vunpack.c.h.b16 %v1012
        %v1112 = vunpack.c.l.b16 %v1013
        %v1113 = vunpack.c.h.b16 %v1013
        %v1114 = vunpack.c.l.b16 %v1014
        %v1115 = vunpack.c.h.b16 %v1014
        %v1116 = vunpack.c.l.b16 %v1015
        %v1117 = vunpack.c.h.b16 %v1015
        %v1118 = vunpack.c.l.b16 %v1016
        %v1119 = vunpack.c.h.b16 %v1016
        %v1120 = vunpack.c.l.b16 %v1017
        %v1121 = vunpack.c.h.b16 %v1017
        %v1122 = vunpack.c.l.b16 %v1018
        %v1123 = vunpack.c.h.b16 %v1018
        %v1124 = vunpack.c.l.b16 %v1019
        %v1125 = vunpack.c.h.b16 %v1019
        %v1126 = vunpack.c.l.b16 %v1020
        %v1127 = vunpack.c.h.b16 %v1020
        %v1128 = vunpack.c.l.b16 %v1021
        %v1129 = vunpack.c.h.b16 %v1021
        %v1130 = vpack.c.b16 %v1058, %v1058
        %v1131 = vpack.c.b16 %v1059, %v1059
        %v1132 = vpack.c.b16 %v1060, %v1060
        %v1133 = vpack.c.b16 %v1061, %v1061
        %v1134 = vpack.c.b16 %v1062, %v1062
        %v1135 = vpack.c.b16 %v1063, %v1063
        %v1136 = vpack.c.b16 %v1064, %v1064
        %v1137 = vpack.c.b16 %v1065, %v1065
        %v1138 = vpack.c.b16 %v1066, %v1066
        %v1139 = vpack.c.b16 %v1067, %v1067
        %v1140 = vpack.c.b16 %v1068, %v1068
        %v1141 = vpack.c.b16 %v1069, %v1069
        %v1142 = vpack.c.b16 %v1070, %v1070
        %v1143 = vpack.c.b16 %v1071, %v1071
        %v1144 = vpack.c.b16 %v1072, %v1072
        %v1145 = vpack.c.b16 %v1073, %v1073
        %v1146 = vpack.c.b16 %v1074, %v1074
        %v1147 = vpack.c.b16 %v1075, %v1075
        %v1148 = vpack.c.b16 %v1076, %v1076
        %v1149 = vpack.c.b16 %v1077, %v1077
        %v1150 = vpack.c.b16 %v1078, %v1078
        %v1151 = vpack.c.b16 %v1079, %v1079
        %v1152 = vpack.c.b16 %v1080, %v1080
        %v1153 = vpack.c.b16 %v1081, %v1081
        %v1154 = vpack.c.b16 %v1082, %v1082
        %v1155 = vpack.c.b16 %v1083, %v1083
        %v1156 = vpack.c.b16 %v1084, %v1084
        %v1157 = vpack.c.b16 %v1085, %v1085
        %v1158 = vpack.c.b16 %v1086, %v1086
        %v1159 = vpack.c.b16 %v1087, %v1087
        %v1160 = vpack.c.b16 %v1088, %v1088
        %v1161 = vpack.c.b16 %v1089, %v1089
        %v1162 = vpack.c.b16 %v1090, %v1090
        %v1163 = vpack.c.b16 %v1091, %v1091
        %v1164 = vpack.c.b16 %v1092, %v1092
        %v1165 = vpack.c.b16 %v1093, %v1093
        %v1166 = vpack.c.b16 %v1094, %v1094
        %v1167 = vpack.c.b16 %v1095, %v1095
        %v1168 = vpack.c.b16 %v1096, %v1096
        %v1169 = vpack.c.b16 %v1097, %v1097
        %v1170 = vpack.c.b16 %v1098, %v1098
        %v1171 = vpack.c.b16 %v1099, %v1099
        %v1172 = vpack.c.b16 %v1100, %v1100
        %v1173 = vpack.c.b16 %v1101, %v1101
        %v1174 = vpack.c.b16 %v1102, %v1102
        %v1175 = vpack.c.b16 %v1103, %v1103
        %v1176 = vpack.c.b16 %v1104, %v1104
        %v1177 = vpack.c.b16 %v1105, %v1105
        %v1178 = vpack.c.b16 %v1106, %v1106
        %v1179 = vpack.c.b16 %v1107, %v1107
        %v1180 = vpack.c.b16 %v1108, %v1108
        %v1181 = vpack.c.b16 %v1109, %v1109
        %v1182 = vpack.c.b16 %v1110, %v1110
        %v1183 = vpack.c.b16 %v1111, %v1111
        %v1184 = vpack.c.b16 %v1112, %v1112
        %v1185 = vpack.c.b16 %v1113, %v1113
        %v1186 = vpack.c.b16 %v1114, %v1114
        %v1187 = vpack.c.b16 %v1115, %v1115
        %v1188 = vpack.c.b16 %v1116, %v1116
        %v1189 = vpack.c.b16 %v1117, %v1117
        %v1190 = vpack.c.b16 %v1118, %v1118
        %v1191 = vpack.c.b16 %v1119, %v1119
        %v1192 = vpack.c.b16 %v1120, %v1120
        %v1193 = vpack.c.b16 %v1121, %v1121
        %v1194 = vpack.c.b16 %v1122, %v1122
        %v1195 = vpack.c.b16 %v1123, %v1123
        %v1196 = vpack.c.b16 %v1124, %v1124
        %v1197 = vpack.c.b16 %v1125, %v1125
        %v1198 = vpack.c.b16 %v1126, %v1126
        %v1199 = vpack.c.b16 %v1127, %v1127
        %v1200 = vpack.c.b16 %v1128, %v1128
        %v1201 = vpack.c.b16 %v1129, %v1129
        %vm1274 = vcmask 257024
        %1275 = vst.msk [vmem:[%s200] sm:$0xf] %vm1274, %v1130
        %1276 = vst.msk [vmem:[%s200 + $0x4] sm:$0xf] %vm1274, %v1131
        %1277 = vst.msk [vmem:[%s200 + $0x8] sm:$0xf] %vm1274, %v1132
        %1278 = vst.msk [vmem:[%s200 + $0xc] sm:$0xf] %vm1274, %v1133
        %1279 = vst.msk [vmem:[%s200 + $0x10] sm:$0xf] %vm1274, %v1134
        %1280 = vst.msk [vmem:[%s200 + $0x14] sm:$0xf] %vm1274, %v1135
        %1281 = vst.msk [vmem:[%s200 + $0x18] sm:$0xf] %vm1274, %v1136
        %1282 = vst.msk [vmem:[%s200 + $0x1c] sm:$0xf] %vm1274, %v1137
        %1283 = vst.msk [vmem:[%s200 + $0x20] sm:$0xf] %vm1274, %v1138
        %1284 = vst.msk [vmem:[%s200 + $0x24] sm:$0xf] %vm1274, %v1139
        %1285 = vst.msk [vmem:[%s200 + $0x28] sm:$0xf] %vm1274, %v1140
        %1286 = vst.msk [vmem:[%s200 + $0x2c] sm:$0xf] %vm1274, %v1141
        %1287 = vst.msk [vmem:[%s200 + $0x30] sm:$0xf] %vm1274, %v1142
        %1288 = vst.msk [vmem:[%s200 + $0x34] sm:$0xf] %vm1274, %v1143
        %1289 = vst.msk [vmem:[%s200 + $0x38] sm:$0xf] %vm1274, %v1144
        %1290 = vst.msk [vmem:[%s200 + $0x3c] sm:$0xf] %vm1274, %v1145
        %1291 = vst.msk [vmem:[%s200 + $0x40] sm:$0xf] %vm1274, %v1146
        %1292 = vst.msk [vmem:[%s200 + $0x44] sm:$0xf] %vm1274, %v1147
        %1293 = vst.msk [vmem:[%s200 + $0x48] sm:$0xf] %vm1274, %v1148
        %1294 = vst.msk [vmem:[%s200 + $0x4c] sm:$0xf] %vm1274, %v1149
        %1295 = vst.msk [vmem:[%s200 + $0x50] sm:$0xf] %vm1274, %v1150
        %1296 = vst.msk [vmem:[%s200 + $0x54] sm:$0xf] %vm1274, %v1151
        %1297 = vst.msk [vmem:[%s200 + $0x58] sm:$0xf] %vm1274, %v1152
        %1298 = vst.msk [vmem:[%s200 + $0x5c] sm:$0xf] %vm1274, %v1153
        %1299 = vst.msk [vmem:[%s200 + $0x60] sm:$0xf] %vm1274, %v1154
        %1300 = vst.msk [vmem:[%s200 + $0x64] sm:$0xf] %vm1274, %v1155
        %1301 = vst.msk [vmem:[%s200 + $0x68] sm:$0xf] %vm1274, %v1156
        %1302 = vst.msk [vmem:[%s200 + $0x6c] sm:$0xf] %vm1274, %v1157
        %1303 = vst.msk [vmem:[%s200 + $0x70] sm:$0xf] %vm1274, %v1158
        %1304 = vst.msk [vmem:[%s200 + $0x74] sm:$0xf] %vm1274, %v1159
        %1305 = vst.msk [vmem:[%s200 + $0x78] sm:$0xf] %vm1274, %v1160
        %1306 = vst.msk [vmem:[%s200 + $0x7c] sm:$0xf] %vm1274, %v1161
        %1307 = vst.msk [vmem:[%s200 + $0x80] sm:$0xf] %vm1274, %v1162
        %1308 = vst.msk [vmem:[%s200 + $0x84] sm:$0xf] %vm1274, %v1163
        %1309 = vst.msk [vmem:[%s200 + $0x88] sm:$0xf] %vm1274, %v1164
        %1310 = vst.msk [vmem:[%s200 + $0x8c] sm:$0xf] %vm1274, %v1165
        %1311 = vst.msk [vmem:[%s200 + $0x90] sm:$0xf] %vm1274, %v1166
        %1312 = vst.msk [vmem:[%s200 + $0x94] sm:$0xf] %vm1274, %v1167
        %1313 = vst.msk [vmem:[%s200 + $0x98] sm:$0xf] %vm1274, %v1168
        %1314 = vst.msk [vmem:[%s200 + $0x9c] sm:$0xf] %vm1274, %v1169
        %1315 = vst.msk [vmem:[%s200 + $0xa0] sm:$0xf] %vm1274, %v1170
        %1316 = vst.msk [vmem:[%s200 + $0xa4] sm:$0xf] %vm1274, %v1171
        %1317 = vst.msk [vmem:[%s200 + $0xa8] sm:$0xf] %vm1274, %v1172
        %1318 = vst.msk [vmem:[%s200 + $0xac] sm:$0xf] %vm1274, %v1173
        %1319 = vst.msk [vmem:[%s200 + $0xb0] sm:$0xf] %vm1274, %v1174
        %1320 = vst.msk [vmem:[%s200 + $0xb4] sm:$0xf] %vm1274, %v1175
        %1321 = vst.msk [vmem:[%s200 + $0xb8] sm:$0xf] %vm1274, %v1176
        %1322 = vst.msk [vmem:[%s200 + $0xbc] sm:$0xf] %vm1274, %v1177
        %1323 = vst.msk [vmem:[%s200 + $0xc0] sm:$0xf] %vm1274, %v1178
        %1324 = vst.msk [vmem:[%s200 + $0xc4] sm:$0xf] %vm1274, %v1179
        %1325 = vst.msk [vmem:[%s200 + $0xc8] sm:$0xf] %vm1274, %v1180
        %1326 = vst.msk [vmem:[%s200 + $0xcc] sm:$0xf] %vm1274, %v1181
        %1327 = vst.msk [vmem:[%s200 + $0xd0] sm:$0xf] %vm1274, %v1182
        %1328 = vst.msk [vmem:[%s200 + $0xd4] sm:$0xf] %vm1274, %v1183
        %1329 = vst.msk [vmem:[%s200 + $0xd8] sm:$0xf] %vm1274, %v1184
        %1330 = vst.msk [vmem:[%s200 + $0xdc] sm:$0xf] %vm1274, %v1185
        %1331 = vst.msk [vmem:[%s200 + $0xe0] sm:$0xf] %vm1274, %v1186
        %1332 = vst.msk [vmem:[%s200 + $0xe4] sm:$0xf] %vm1274, %v1187
        %1333 = vst.msk [vmem:[%s200 + $0xe8] sm:$0xf] %vm1274, %v1188
        %1334 = vst.msk [vmem:[%s200 + $0xec] sm:$0xf] %vm1274, %v1189
        %1335 = vst.msk [vmem:[%s200 + $0xf0] sm:$0xf] %vm1274, %v1190
        %1336 = vst.msk [vmem:[%s200 + $0xf4] sm:$0xf] %vm1274, %v1191
        %1337 = vst.msk [vmem:[%s200 + $0xf8] sm:$0xf] %vm1274, %v1192
        %1338 = vst.msk [vmem:[%s200 + $0xfc] sm:$0xf] %vm1274, %v1193
        %1339 = vst.msk [vmem:[%s200 + $0x100] sm:$0xf] %vm1274, %v1194
        %1340 = vst.msk [vmem:[%s200 + $0x104] sm:$0xf] %vm1274, %v1195
        %1341 = vst.msk [vmem:[%s200 + $0x108] sm:$0xf] %vm1274, %v1196
        %1342 = vst.msk [vmem:[%s200 + $0x10c] sm:$0xf] %vm1274, %v1197
        %1343 = vst.msk [vmem:[%s200 + $0x110] sm:$0xf] %vm1274, %v1198
        %1344 = vst.msk [vmem:[%s200 + $0x114] sm:$0xf] %vm1274, %v1199
        %1345 = vst.msk [vmem:[%s200 + $0x118] sm:$0xf] %vm1274, %v1200
        %1346 = vst.msk [vmem:[%s200 + $0x11c] sm:$0xf] %vm1274, %v1201
        %s1347 = smul.u32 72, %s16
        %p1348 = scmp.lt.s32.totalorder %s1347, 143
        %s1349 = scalar_select %p1348, %s1347, 143
        %s1350 = smul.addr %s1349, 4
        %s1351 = scalar_lea.vmem %s3, %s1350
        // Predicated region
        $region41: #{cnn_forward.5} parent=31 // pred_check
          %p1352 = pneg %p102
        $region42: #{cnn_forward.5} parent=31 // pred_check_branch
          %1354 = sbr.rel (%p1352) target = $region44
        $region43: #{cnn_forward.5} parent=31 // pred_region
          %s1355 = smul.u32 72, %s16
        $region44: #{cnn_forward.5} parent=31 // pred_fallthru
          _
      $region32: #{cnn_forward.5} parent=5 // pred_fallthru
        _
      %p1356 = scmp.le.s32.totalorder 2, %s11
      // Predicated region
      $region45: #{cnn_forward.5} parent=5 // pred_check
        %p1357 = pneg %p1356
      $region46: #{cnn_forward.5} parent=5 // pred_check_branch
        %1359 = sbr.rel (%p1357) target = $region48
      $region47: #{cnn_forward.5} parent=5 // pred_region
        %s1360 = ssub.s32 %s11, 2
        // Predicated region
        $region49: #{cnn_forward.5} parent=47 // pred_check
          %p1361 = pneg %p108
        $region50: #{cnn_forward.5} parent=47 // pred_check_branch
          %1363 = sbr.rel (%p1361) target = $region52
        $region51: #{cnn_forward.5} parent=47 // pred_region
          %s1364 = smul.u32 72, %s17
          %p1365 = scmp.lt.s32.totalorder %s1364, 143
          %s1366 = scalar_select %p1365, %s1364, 143
          %s1367 = smul.addr %s1366, 4
          %s1368 = scalar_lea.vmem %s3, %s1367
        $region52: #{cnn_forward.5} parent=47 // pred_fallthru
          _
      $region48: #{cnn_forward.5} parent=5 // pred_fallthru
        _
    $region6: #{cnn_forward.5} parent=1 // loop_footer
      %s15 = sadd.s32 1, %s11
    $region7: #{cnn_forward.5} parent=1 // loop_footer_branch
      %10 = sbr.rel target = $region3
    $region8: #{cnn_forward.5} parent=1 // loop_exit
      _
    %1369 = vsyncpa [#allocation3], 1
    %s1370 = scalar_lea.sflag [#allocation3], 1
    %1371 = vsyncpa %s1370, 1
    %1372 = vsyncpa [#allocation5], 1

// kernel: cnn_forward.6
$region0: #{cnn_forward.6}
  #allocation0 [shape = 'u32[]', space=smem, size = 0x4, offset = 0x4, fixed_abs, tag = 'smem constant byte address 0x4 - core index']
  #allocation1 [shape = 'u32[144,128]{1,0:T(1,128)}', space=vmem, size = 0x12000, scoped, tag = 'internal scratch']
  %s0 = inlined_call_operand.vmem [shape: bf16[800,800], index: 0, kind: input, shape index: {}]
  %s1 = inlined_call_operand.vmem [shape: bf16[800,32], index: 1, kind: input, shape index: {}]
  %s2 = inlined_call_operand.vmem [shape: f32[1,32], index: 2, kind: input, shape index: {}]
  %s3 = inlined_call_operand.vmem [shape: bf16[800,32], index: 3, kind: output, shape index: {}]
  %s4 = sld [smem:[#allocation0]]
  $region45: #{cnn_forward.6} parent=0
    _
  %s6 = ssub.s32 1, %s4
  %s7 = scalar_select 0, %s6, %s4
  loop: start=0, step=1, limit=4
  $region2: #{cnn_forward.6} parent=0 // loop_pre_header
    _
  $region3: #{cnn_forward.6} parent=0 // loop_header
    %s9 = sphi 0, %s13
    %p10 = scmp.ge.s32.totalorder %s9, 4
    %s19 = sphi 0, %s21
    %s22 = sphi 0, %s19
    %s23 = sphi 0, %s22
    %s39 = sphi 0, %s23
    %s43 = sphi 0, %s43
    %s45 = sphi 0, %s43
    %s46 = sphi 0, %s45
    %s60 = sphi 0, %s46
    %s64 = sphi 0, %s64
    %s66 = sphi 0, %s64
    %s67 = sphi 0, %s66
    %s81 = sphi 0, %s67
    %s87 = sphi 0, %s89
    %s90 = sphi 0, %s87
    %s91 = sphi 0, %s90
    %s107 = sphi 0, %s91
  $region4: #{cnn_forward.6} parent=0 // loop_header_branch
    %12 = sbr.rel (%p10) target = $region8
  $region5: #{cnn_forward.6} parent=0 // loop_body
    %s14 = ssub.s32 %s9, 1
    %s15 = ssub.s32 %s9, 2
    %s16 = sadd.s32 %s9, 1
    %s17 = ssub.s32 %s9, %s16
    %p18 = scmp.eq.s32.totalorder %s17, 0
    %s20 = sadd.s32 %s19, 1
    %s21 = scalar_select %p18, %s19, %s20
    %p24 = pneg %p18
    %p25 = scmp.eq.s32.totalorder %s9, 1
    %p26 = por %p24, %p25
    %p27 = scmp.ne.s32.totalorder %s19, %s22
    %p28 = scmp.eq.s32.totalorder %s9, 0
    %p29 = por %p27, %p28
    %p30 = scmp.ne.s32.totalorder %s19, %s22
    %p31 = scmp.eq.s32.totalorder %s14, 1
    %p32 = por %p30, %p31
    %p33 = scmp.ne.s32.totalorder %s22, %s23
    %p34 = scmp.eq.s32.totalorder %s14, 0
    %p35 = por %p33, %p34
    %p36 = scmp.ne.s32.totalorder %s22, %s23
    %p37 = scmp.eq.s32.totalorder %s15, 1
    %p38 = por %p36, %p37
    %p40 = scmp.ne.s32.totalorder %s23, %s39
    %p41 = scmp.eq.s32.totalorder %s15, 0
    %p42 = por %p40, %p41
    %s44 = sadd.s32 %s43, 1
    %p47 = scmp.eq.s32.totalorder %s9, 1
    %p48 = scmp.ne.s32.totalorder %s43, %s45
    %p49 = scmp.eq.s32.totalorder %s9, 0
    %p50 = por %p48, %p49
    %p51 = scmp.ne.s32.totalorder %s43, %s45
    %p52 = scmp.eq.s32.totalorder %s14, 1
    %p53 = por %p51, %p52
    %p54 = scmp.ne.s32.totalorder %s45, %s46
    %p55 = scmp.eq.s32.totalorder %s14, 0
    %p56 = por %p54, %p55
    %p57 = scmp.ne.s32.totalorder %s45, %s46
    %p58 = scmp.eq.s32.totalorder %s15, 1
    %p59 = por %p57, %p58
    %p61 = scmp.ne.s32.totalorder %s46, %s60
    %p62 = scmp.eq.s32.totalorder %s15, 0
    %p63 = por %p61, %p62
    %s65 = sadd.s32 %s64, 1
    %p68 = scmp.eq.s32.totalorder %s9, 1
    %p69 = scmp.ne.s32.totalorder %s64, %s66
    %p70 = scmp.eq.s32.totalorder %s9, 0
    %p71 = por %p69, %p70
    %p72 = scmp.ne.s32.totalorder %s64, %s66
    %p73 = scmp.eq.s32.totalorder %s14, 1
    %p74 = por %p72, %p73
    %p75 = scmp.ne.s32.totalorder %s66, %s67
    %p76 = scmp.eq.s32.totalorder %s14, 0
    %p77 = por %p75, %p76
    %p78 = scmp.ne.s32.totalorder %s66, %s67
    %p79 = scmp.eq.s32.totalorder %s15, 1
    %p80 = por %p78, %p79
    %p82 = scmp.ne.s32.totalorder %s67, %s81
    %p83 = scmp.eq.s32.totalorder %s15, 0
    %p84 = por %p82, %p83
    %s85 = ssub.s32 %s9, %s16
    %p86 = scmp.eq.s32.totalorder %s85, 0
    %s88 = sadd.s32 %s87, 1
    %s89 = scalar_select %p86, %s87, %s88
    %p92 = pneg %p86
    %p93 = scmp.eq.s32.totalorder %s9, 1
    %p94 = por %p92, %p93
    %p95 = scmp.ne.s32.totalorder %s87, %s90
    %p96 = scmp.eq.s32.totalorder %s9, 0
    %p97 = por %p95, %p96
    %p98 = scmp.ne.s32.totalorder %s87, %s90
    %p99 = scmp.eq.s32.totalorder %s14, 1
    %p100 = por %p98, %p99
    %p101 = scmp.ne.s32.totalorder %s90, %s91
    %p102 = scmp.eq.s32.totalorder %s14, 0
    %p103 = por %p101, %p102
    %p104 = scmp.ne.s32.totalorder %s90, %s91
    %p105 = scmp.eq.s32.totalorder %s15, 1
    %p106 = por %p104, %p105
    %p108 = scmp.ne.s32.totalorder %s91, %s107
    %p109 = scmp.eq.s32.totalorder %s15, 0
    %p110 = por %p108, %p109
    %p111 = scmp.le.s32.totalorder 1, %s9
    %p112 = scmp.lt.s32.totalorder %s9, 3
    %p113 = pnand %p111, %p112
    %p114 = pneg %p113
    // Predicated region
    $region9: #{cnn_forward.6} parent=5 // pred_check
      _
    $region10: #{cnn_forward.6} parent=5 // pred_check_branch
      %116 = sbr.rel (%p113) target = $region12
    $region11: #{cnn_forward.6} parent=5 // pred_region
      %s117 = ssub.s32 %s9, 1
      // Predicated region
      $region13: #{cnn_forward.6} parent=11 // pred_check
        %p118 = pneg %p56
      $region14: #{cnn_forward.6} parent=11 // pred_check_branch
        %120 = sbr.rel (%p118) target = $region16
      $region15: #{cnn_forward.6} parent=11 // pred_region
        _
      $region16: #{cnn_forward.6} parent=11 // pred_fallthru
        _
      // Predicated region
      $region17: #{cnn_forward.6} parent=11 // pred_check
        %p121 = pneg %p77
      $region18: #{cnn_forward.6} parent=11 // pred_check_branch
        %123 = sbr.rel (%p121) target = $region20
      $region19: #{cnn_forward.6} parent=11 // pred_region
        _
      $region20: #{cnn_forward.6} parent=11 // pred_fallthru
        _
    $region12: #{cnn_forward.6} parent=5 // pred_fallthru
      _
    %p124 = scmp.lt.s32.totalorder %s9, 2
    // Predicated region
    $region21: #{cnn_forward.6} parent=5 // pred_check
      %p125 = pneg %p124
    $region22: #{cnn_forward.6} parent=5 // pred_check_branch
      %127 = sbr.rel (%p125) target = $region24
    $region23: #{cnn_forward.6} parent=5 // pred_region
      // Predicated region
      $region25: #{cnn_forward.6} parent=23 // pred_check
        %p128 = pneg %p29
      $region26: #{cnn_forward.6} parent=23 // pred_check_branch
        %130 = sbr.rel (%p128) target = $region28
      $region27: #{cnn_forward.6} parent=23 // pred_region
        %s131 = smul.u32 50, %s9
        %p132 = scmp.lt.s32.totalorder %s131, 99
        %s133 = scalar_select %p132, %s131, 99
        %s134 = smul.addr %s133, 7
        %s135 = smul.addr %s134, 4
        %s136 = scalar_lea.vmem %s0, %s135
        %s137 = smul.u32 50, %s9
      $region28: #{cnn_forward.6} parent=23 // pred_fallthru
        _
    $region24: #{cnn_forward.6} parent=5 // pred_fallthru
      _
    %p138 = scmp.le.s32.totalorder 1, %s9
    %p139 = scmp.lt.s32.totalorder %s9, 3
    %p140 = pnand %p138, %p139
    %p141 = pneg %p140
    // Predicated region
    $region29: #{cnn_forward.6} parent=5 // pred_check
      _
    $region30: #{cnn_forward.6} parent=5 // pred_check_branch
      %143 = sbr.rel (%p140) target = $region32
    $region31: #{cnn_forward.6} parent=5 // pred_region
      %s144 = ssub.s32 %s9, 1
      %s145 = smul.u32 50, %s14
      %p146 = scmp.lt.s32.totalorder %s145, 99
      %s147 = scalar_select %p146, %s145, 99
      %s148 = smul.addr %s147, 7
      %s149 = smul.addr %s148, 4
      %s150 = scalar_lea.vmem %s0, %s149
      %p151 = pneg %p35
      %p152 = pneg %p32
      %p153 = pneg %p56
      %p154 = pneg %p53
      %p155 = pneg %p77
      %p156 = pneg %p74
      %p157 = pneg %p103
      %p158 = pneg %p100
      %s159 = smul.u32 50, %s14
      %p160 = scmp.lt.s32.totalorder %s159, 99
      %s161 = scalar_select %p160, %s159, 99
      %s162 = smul.addr %s161, 4
      %s163 = scalar_lea.vmem %s3, %s162
      %s164 = smul.u32 50, %s14
      %p165 = scmp.lt.s32.totalorder %s164, 99
      %s166 = scalar_select %p165, %s164, 99
      %s167 = smul.addr %s166, 7
      %s168 = smul.addr %s167, 4
      %s169 = scalar_lea.vmem %s0, %s168
      %s170 = smul.u32 50, %s14
      %s171 = smul.u32 50, %s14
      %p172 = scmp.lt.s32.totalorder %s171, 99
      %s173 = scalar_select %p172, %s171, 99
      %s174 = smul.addr %s173, 4
      %s175 = scalar_lea.vmem %s3, %s174
      %s176 = smul.u32 50, %s14
      %v178 = vld [vmem:[%s169] sm:$0xff]
      %v179 = vld [vmem:[%s169 + $0x8] sm:$0xff]
      %v180 = vld [vmem:[%s169 + $0x10] sm:$0xff]
      %v181 = vld [vmem:[%s169 + $0x18] sm:$0xf]
      %v182 = vld [vmem:[%s169 + $0x1c] sm:$0xff]
      %v183 = vld [vmem:[%s169 + $0x24] sm:$0xff]
      %v184 = vld [vmem:[%s169 + $0x2c] sm:$0xff]
      %v185 = vld [vmem:[%s169 + $0x34] sm:$0xf]
      %v186 = vld [vmem:[%s169 + $0x38] sm:$0xff]
      %v187 = vld [vmem:[%s169 + $0x40] sm:$0xff]
      %v188 = vld [vmem:[%s169 + $0x48] sm:$0xff]
      %v189 = vld [vmem:[%s169 + $0x50] sm:$0xf]
      %v190 = vld [vmem:[%s169 + $0x54] sm:$0xff]
      %v191 = vld [vmem:[%s169 + $0x5c] sm:$0xff]
      %v192 = vld [vmem:[%s169 + $0x64] sm:$0xff]
      %v193 = vld [vmem:[%s169 + $0x6c] sm:$0xf]
      %v194 = vld [vmem:[%s169 + $0x70] sm:$0xff]
      %v195 = vld [vmem:[%s169 + $0x78] sm:$0xff]
      %v196 = vld [vmem:[%s169 + $0x80] sm:$0xff]
      %v197 = vld [vmem:[%s169 + $0x88] sm:$0xf]
      %v198 = vld [vmem:[%s169 + $0x8c] sm:$0xff]
      %v199 = vld [vmem:[%s169 + $0x94] sm:$0xff]
      %v200 = vld [vmem:[%s169 + $0x9c] sm:$0xff]
      %v201 = vld [vmem:[%s169 + $0xa4] sm:$0xf]
      %v202 = vld [vmem:[%s169 + $0xa8] sm:$0xff]
      %v203 = vld [vmem:[%s169 + $0xb0] sm:$0xff]
      %v204 = vld [vmem:[%s169 + $0xb8] sm:$0xff]
      %v205 = vld [vmem:[%s169 + $0xc0] sm:$0xf]
      %v206 = vld [vmem:[%s169 + $0xc4] sm:$0xff]
      %v207 = vld [vmem:[%s169 + $0xcc] sm:$0xff]
      %v208 = vld [vmem:[%s169 + $0xd4] sm:$0xff]
      %v209 = vld [vmem:[%s169 + $0xdc] sm:$0xf]
      %v210 = vld [vmem:[%s169 + $0xe0] sm:$0xff]
      %v211 = vld [vmem:[%s169 + $0xe8] sm:$0xff]
      %v212 = vld [vmem:[%s169 + $0xf0] sm:$0xff]
      %v213 = vld [vmem:[%s169 + $0xf8] sm:$0xf]
      %v214 = vld [vmem:[%s169 + $0xfc] sm:$0xff]
      %v215 = vld [vmem:[%s169 + $0x104] sm:$0xff]
      %v216 = vld [vmem:[%s169 + $0x10c] sm:$0xff]
      %v217 = vld [vmem:[%s169 + $0x114] sm:$0xf]
      %v218 = vld [vmem:[%s169 + $0x118] sm:$0xff]
      %v219 = vld [vmem:[%s169 + $0x120] sm:$0xff]
      %v220 = vld [vmem:[%s169 + $0x128] sm:$0xff]
      %v221 = vld [vmem:[%s169 + $0x130] sm:$0xf]
      %v222 = vld [vmem:[%s169 + $0x134] sm:$0xff]
      %v223 = vld [vmem:[%s169 + $0x13c] sm:$0xff]
      %v224 = vld [vmem:[%s169 + $0x144] sm:$0xff]
      %v225 = vld [vmem:[%s169 + $0x14c] sm:$0xf]
      %v226 = vld [vmem:[%s169 + $0x150] sm:$0xff]
      %v227 = vld [vmem:[%s169 + $0x158] sm:$0xff]
      %v228 = vld [vmem:[%s169 + $0x160] sm:$0xff]
      %v229 = vld [vmem:[%s169 + $0x168] sm:$0xf]
      %v230 = vld [vmem:[%s169 + $0x16c] sm:$0xff]
      %v231 = vld [vmem:[%s169 + $0x174] sm:$0xff]
      %v232 = vld [vmem:[%s169 + $0x17c] sm:$0xff]
      %v233 = vld [vmem:[%s169 + $0x184] sm:$0xf]
      %v234 = vld [vmem:[%s169 + $0x188] sm:$0xff]
      %v235 = vld [vmem:[%s169 + $0x190] sm:$0xff]
      %v236 = vld [vmem:[%s169 + $0x198] sm:$0xff]
      %v237 = vld [vmem:[%s169 + $0x1a0] sm:$0xf]
      %v238 = vld [vmem:[%s169 + $0x1a4] sm:$0xff]
      %v239 = vld [vmem:[%s169 + $0x1ac] sm:$0xff]
      %v240 = vld [vmem:[%s169 + $0x1b4] sm:$0xff]
      %v241 = vld [vmem:[%s169 + $0x1bc] sm:$0xf]
      %v242 = vld [vmem:[%s169 + $0x1c0] sm:$0xff]
      %v243 = vld [vmem:[%s169 + $0x1c8] sm:$0xff]
      %v244 = vld [vmem:[%s169 + $0x1d0] sm:$0xff]
      %v245 = vld [vmem:[%s169 + $0x1d8] sm:$0xf]
      %v246 = vld [vmem:[%s169 + $0x1dc] sm:$0xff]
      %v247 = vld [vmem:[%s169 + $0x1e4] sm:$0xff]
      %v248 = vld [vmem:[%s169 + $0x1ec] sm:$0xff]
      %v249 = vld [vmem:[%s169 + $0x1f4] sm:$0xf]
      %v250 = vld [vmem:[%s169 + $0x1f8] sm:$0xff]
      %v251 = vld [vmem:[%s169 + $0x200] sm:$0xff]
      %v252 = vld [vmem:[%s169 + $0x208] sm:$0xff]
      %v253 = vld [vmem:[%s169 + $0x210] sm:$0xf]
      %v254 = vld [vmem:[%s169 + $0x214] sm:$0xff]
      %v255 = vld [vmem:[%s169 + $0x21c] sm:$0xff]
      %v256 = vld [vmem:[%s169 + $0x224] sm:$0xff]
      %v257 = vld [vmem:[%s169 + $0x22c] sm:$0xf]
      %v258 = vld [vmem:[%s169 + $0x230] sm:$0xff]
      %v259 = vld [vmem:[%s169 + $0x238] sm:$0xff]
      %v260 = vld [vmem:[%s169 + $0x240] sm:$0xff]
      %v261 = vld [vmem:[%s169 + $0x248] sm:$0xf]
      %v262 = vld [vmem:[%s169 + $0x24c] sm:$0xff]
      %v263 = vld [vmem:[%s169 + $0x254] sm:$0xff]
      %v264 = vld [vmem:[%s169 + $0x25c] sm:$0xff]
      %v265 = vld [vmem:[%s169 + $0x264] sm:$0xf]
      %v266 = vld [vmem:[%s169 + $0x268] sm:$0xff]
      %v267 = vld [vmem:[%s169 + $0x270] sm:$0xff]
      %v268 = vld [vmem:[%s169 + $0x278] sm:$0xff]
      %v269 = vld [vmem:[%s169 + $0x280] sm:$0xf]
      %v270 = vld [vmem:[%s169 + $0x284] sm:$0xff]
      %v271 = vld [vmem:[%s169 + $0x28c] sm:$0xff]
      %v272 = vld [vmem:[%s169 + $0x294] sm:$0xff]
      %v273 = vld [vmem:[%s169 + $0x29c] sm:$0xf]
      %v274 = vld [vmem:[%s169 + $0x2a0] sm:$0xff]
      %v275 = vld [vmem:[%s169 + $0x2a8] sm:$0xff]
      %v276 = vld [vmem:[%s169 + $0x2b0] sm:$0xff]
      %v277 = vld [vmem:[%s169 + $0x2b8] sm:$0xf]
      %v278 = vld [vmem:[%s169 + $0x2bc] sm:$0xff]
      %v279 = vld [vmem:[%s169 + $0x2c4] sm:$0xff]
      %v280 = vld [vmem:[%s169 + $0x2cc] sm:$0xff]
      %v281 = vld [vmem:[%s169 + $0x2d4] sm:$0xf]
      %v282 = vld [vmem:[%s169 + $0x2d8] sm:$0xff]
      %v283 = vld [vmem:[%s169 + $0x2e0] sm:$0xff]
      %v284 = vld [vmem:[%s169 + $0x2e8] sm:$0xff]
      %v285 = vld [vmem:[%s169 + $0x2f0] sm:$0xf]
      %v286 = vld [vmem:[%s169 + $0x2f4] sm:$0xff]
      %v287 = vld [vmem:[%s169 + $0x2fc] sm:$0xff]
      %v288 = vld [vmem:[%s169 + $0x304] sm:$0xff]
      %v289 = vld [vmem:[%s169 + $0x30c] sm:$0xf]
      %v290 = vld [vmem:[%s169 + $0x310] sm:$0xff]
      %v291 = vld [vmem:[%s169 + $0x318] sm:$0xff]
      %v292 = vld [vmem:[%s169 + $0x320] sm:$0xff]
      %v293 = vld [vmem:[%s169 + $0x328] sm:$0xf]
      %v294 = vld [vmem:[%s169 + $0x32c] sm:$0xff]
      %v295 = vld [vmem:[%s169 + $0x334] sm:$0xff]
      %v296 = vld [vmem:[%s169 + $0x33c] sm:$0xff]
      %v297 = vld [vmem:[%s169 + $0x344] sm:$0xf]
      %v298 = vld [vmem:[%s169 + $0x348] sm:$0xff]
      %v299 = vld [vmem:[%s169 + $0x350] sm:$0xff]
      %v300 = vld [vmem:[%s169 + $0x358] sm:$0xff]
      %v301 = vld [vmem:[%s169 + $0x360] sm:$0xf]
      %v302 = vld [vmem:[%s169 + $0x364] sm:$0xff]
      %v303 = vld [vmem:[%s169 + $0x36c] sm:$0xff]
      %v304 = vld [vmem:[%s169 + $0x374] sm:$0xff]
      %v305 = vld [vmem:[%s169 + $0x37c] sm:$0xf]
      %v306 = vld [vmem:[%s169 + $0x380] sm:$0xff]
      %v307 = vld [vmem:[%s169 + $0x388] sm:$0xff]
      %v308 = vld [vmem:[%s169 + $0x390] sm:$0xff]
      %v309 = vld [vmem:[%s169 + $0x398] sm:$0xf]
      %v310 = vld [vmem:[%s169 + $0x39c] sm:$0xff]
      %v311 = vld [vmem:[%s169 + $0x3a4] sm:$0xff]
      %v312 = vld [vmem:[%s169 + $0x3ac] sm:$0xff]
      %v313 = vld [vmem:[%s169 + $0x3b4] sm:$0xf]
      %v314 = vld [vmem:[%s169 + $0x3b8] sm:$0xff]
      %v315 = vld [vmem:[%s169 + $0x3c0] sm:$0xff]
      %v316 = vld [vmem:[%s169 + $0x3c8] sm:$0xff]
      %v317 = vld [vmem:[%s169 + $0x3d0] sm:$0xf]
      %v318 = vld [vmem:[%s169 + $0x3d4] sm:$0xff]
      %v319 = vld [vmem:[%s169 + $0x3dc] sm:$0xff]
      %v320 = vld [vmem:[%s169 + $0x3e4] sm:$0xff]
      %v321 = vld [vmem:[%s169 + $0x3ec] sm:$0xf]
      %v322 = vld [vmem:[%s169 + $0x3f0] sm:$0xff]
      %v323 = vld [vmem:[%s169 + $0x3f8] sm:$0xff]
      %v324 = vld [vmem:[%s169 + $0x400] sm:$0xff]
      %v325 = vld [vmem:[%s169 + $0x408] sm:$0xf]
      %v326 = vld [vmem:[%s169 + $0x40c] sm:$0xff]
      %v327 = vld [vmem:[%s169 + $0x414] sm:$0xff]
      %v328 = vld [vmem:[%s169 + $0x41c] sm:$0xff]
      %v329 = vld [vmem:[%s169 + $0x424] sm:$0xf]
      %v330 = vld [vmem:[%s169 + $0x428] sm:$0xff]
      %v331 = vld [vmem:[%s169 + $0x430] sm:$0xff]
      %v332 = vld [vmem:[%s169 + $0x438] sm:$0xff]
      %v333 = vld [vmem:[%s169 + $0x440] sm:$0xf]
      %v334 = vld [vmem:[%s169 + $0x444] sm:$0xff]
      %v335 = vld [vmem:[%s169 + $0x44c] sm:$0xff]
      %v336 = vld [vmem:[%s169 + $0x454] sm:$0xff]
      %v337 = vld [vmem:[%s169 + $0x45c] sm:$0xf]
      %v338 = vld [vmem:[%s169 + $0x460] sm:$0xff]
      %v339 = vld [vmem:[%s169 + $0x468] sm:$0xff]
      %v340 = vld [vmem:[%s169 + $0x470] sm:$0xff]
      %v341 = vld [vmem:[%s169 + $0x478] sm:$0xf]
      %v342 = vld [vmem:[%s169 + $0x47c] sm:$0xff]
      %v343 = vld [vmem:[%s169 + $0x484] sm:$0xff]
      %v344 = vld [vmem:[%s169 + $0x48c] sm:$0xff]
      %v345 = vld [vmem:[%s169 + $0x494] sm:$0xf]
      %v346 = vld [vmem:[%s169 + $0x498] sm:$0xff]
      %v347 = vld [vmem:[%s169 + $0x4a0] sm:$0xff]
      %v348 = vld [vmem:[%s169 + $0x4a8] sm:$0xff]
      %v349 = vld [vmem:[%s169 + $0x4b0] sm:$0xf]
      %v350 = vld [vmem:[%s169 + $0x4b4] sm:$0xff]
      %v351 = vld [vmem:[%s169 + $0x4bc] sm:$0xff]
      %v352 = vld [vmem:[%s169 + $0x4c4] sm:$0xff]
      %v353 = vld [vmem:[%s169 + $0x4cc] sm:$0xf]
      %v354 = vld [vmem:[%s169 + $0x4d0] sm:$0xff]
      %v355 = vld [vmem:[%s169 + $0x4d8] sm:$0xff]
      %v356 = vld [vmem:[%s169 + $0x4e0] sm:$0xff]
      %v357 = vld [vmem:[%s169 + $0x4e8] sm:$0xf]
      %v358 = vld [vmem:[%s169 + $0x4ec] sm:$0xff]
      %v359 = vld [vmem:[%s169 + $0x4f4] sm:$0xff]
      %v360 = vld [vmem:[%s169 + $0x4fc] sm:$0xff]
      %v361 = vld [vmem:[%s169 + $0x504] sm:$0xf]
      %v362 = vld [vmem:[%s169 + $0x508] sm:$0xff]
      %v363 = vld [vmem:[%s169 + $0x510] sm:$0xff]
      %v364 = vld [vmem:[%s169 + $0x518] sm:$0xff]
      %v365 = vld [vmem:[%s169 + $0x520] sm:$0xf]
      %v366 = vld [vmem:[%s169 + $0x524] sm:$0xff]
      %v367 = vld [vmem:[%s169 + $0x52c] sm:$0xff]
      %v368 = vld [vmem:[%s169 + $0x534] sm:$0xff]
      %v369 = vld [vmem:[%s169 + $0x53c] sm:$0xf]
      %v370 = vld [vmem:[%s169 + $0x540] sm:$0xff]
      %v371 = vld [vmem:[%s169 + $0x548] sm:$0xff]
      %v372 = vld [vmem:[%s169 + $0x550] sm:$0xff]
      %v373 = vld [vmem:[%s169 + $0x558] sm:$0xf]
      %v374 = vld [vmem:[%s169 + $0x55c] sm:$0xff]
      %v375 = vld [vmem:[%s169 + $0x564] sm:$0xff]
      %v376 = vld [vmem:[%s169 + $0x56c] sm:$0xff]
      %v377 = vld [vmem:[%s169 + $0x574] sm:$0xf]
      %v378 = vld [vmem:[%s1] sm:$0xf]
      %v379 = vld [vmem:[%s1 + $0x4] sm:$0xf]
      %v380 = vld [vmem:[%s1 + $0x8] sm:$0xf]
      %v381 = vld [vmem:[%s1 + $0xc] sm:$0xf]
      %v382 = vld [vmem:[%s1 + $0x10] sm:$0xf]
      %v383 = vld [vmem:[%s1 + $0x14] sm:$0xf]
      %v384 = vld [vmem:[%s1 + $0x18] sm:$0xf]
      %v385 = vld [vmem:[%s1 + $0x1c] sm:$0xf]
      %v386 = vld [vmem:[%s1 + $0x20] sm:$0xf]
      %v387 = vld [vmem:[%s1 + $0x24] sm:$0xf]
      %v388 = vld [vmem:[%s1 + $0x28] sm:$0xf]
      %v389 = vld [vmem:[%s1 + $0x2c] sm:$0xf]
      %v390 = vld [vmem:[%s1 + $0x30] sm:$0xf]
      %v391 = vld [vmem:[%s1 + $0x34] sm:$0xf]
      %v392 = vld [vmem:[%s1 + $0x38] sm:$0xf]
      %v393 = vld [vmem:[%s1 + $0x3c] sm:$0xf]
      %v394 = vld [vmem:[%s1 + $0x40] sm:$0xf]
      %v395 = vld [vmem:[%s1 + $0x44] sm:$0xf]
      %v396 = vld [vmem:[%s1 + $0x48] sm:$0xf]
      %v397 = vld [vmem:[%s1 + $0x4c] sm:$0xf]
      %v398 = vld [vmem:[%s1 + $0x50] sm:$0xf]
      %v399 = vld [vmem:[%s1 + $0x54] sm:$0xf]
      %v400 = vld [vmem:[%s1 + $0x58] sm:$0xf]
      %v401 = vld [vmem:[%s1 + $0x5c] sm:$0xf]
      %v402 = vld [vmem:[%s1 + $0x60] sm:$0xf]
      %v403 = vld [vmem:[%s1 + $0x64] sm:$0xf]
      %v404 = vld [vmem:[%s1 + $0x68] sm:$0xf]
      %v405 = vld [vmem:[%s1 + $0x6c] sm:$0xf]
      %v406 = vld [vmem:[%s1 + $0x70] sm:$0xf]
      %v407 = vld [vmem:[%s1 + $0x74] sm:$0xf]
      %v408 = vld [vmem:[%s1 + $0x78] sm:$0xf]
      %v409 = vld [vmem:[%s1 + $0x7c] sm:$0xf]
      %v410 = vld [vmem:[%s1 + $0x80] sm:$0xf]
      %v411 = vld [vmem:[%s1 + $0x84] sm:$0xf]
      %v412 = vld [vmem:[%s1 + $0x88] sm:$0xf]
      %v413 = vld [vmem:[%s1 + $0x8c] sm:$0xf]
      %v414 = vld [vmem:[%s1 + $0x90] sm:$0xf]
      %v415 = vld [vmem:[%s1 + $0x94] sm:$0xf]
      %v416 = vld [vmem:[%s1 + $0x98] sm:$0xf]
      %v417 = vld [vmem:[%s1 + $0x9c] sm:$0xf]
      %v418 = vld [vmem:[%s1 + $0xa0] sm:$0xf]
      %v419 = vld [vmem:[%s1 + $0xa4] sm:$0xf]
      %v420 = vld [vmem:[%s1 + $0xa8] sm:$0xf]
      %v421 = vld [vmem:[%s1 + $0xac] sm:$0xf]
      %v422 = vld [vmem:[%s1 + $0xb0] sm:$0xf]
      %v423 = vld [vmem:[%s1 + $0xb4] sm:$0xf]
      %v424 = vld [vmem:[%s1 + $0xb8] sm:$0xf]
      %v425 = vld [vmem:[%s1 + $0xbc] sm:$0xf]
      %v426 = vld [vmem:[%s1 + $0xc0] sm:$0xf]
      %v427 = vld [vmem:[%s1 + $0xc4] sm:$0xf]
      %v428 = vld [vmem:[%s1 + $0xc8] sm:$0xf]
      %v429 = vld [vmem:[%s1 + $0xcc] sm:$0xf]
      %v430 = vld [vmem:[%s1 + $0xd0] sm:$0xf]
      %v431 = vld [vmem:[%s1 + $0xd4] sm:$0xf]
      %v432 = vld [vmem:[%s1 + $0xd8] sm:$0xf]
      %v433 = vld [vmem:[%s1 + $0xdc] sm:$0xf]
      %v434 = vld [vmem:[%s1 + $0xe0] sm:$0xf]
      %v435 = vld [vmem:[%s1 + $0xe4] sm:$0xf]
      %v436 = vld [vmem:[%s1 + $0xe8] sm:$0xf]
      %v437 = vld [vmem:[%s1 + $0xec] sm:$0xf]
      %v438 = vld [vmem:[%s1 + $0xf0] sm:$0xf]
      %v439 = vld [vmem:[%s1 + $0xf4] sm:$0xf]
      %v440 = vld [vmem:[%s1 + $0xf8] sm:$0xf]
      %v441 = vld [vmem:[%s1 + $0xfc] sm:$0xf]
      %v442 = vld [vmem:[%s1 + $0x100] sm:$0xf]
      %v443 = vld [vmem:[%s1 + $0x104] sm:$0xf]
      %v444 = vld [vmem:[%s1 + $0x108] sm:$0xf]
      %v445 = vld [vmem:[%s1 + $0x10c] sm:$0xf]
      %v446 = vld [vmem:[%s1 + $0x110] sm:$0xf]
      %v447 = vld [vmem:[%s1 + $0x114] sm:$0xf]
      %v448 = vld [vmem:[%s1 + $0x118] sm:$0xf]
      %v449 = vld [vmem:[%s1 + $0x11c] sm:$0xf]
      %v450 = vld [vmem:[%s1 + $0x120] sm:$0xf]
      %v451 = vld [vmem:[%s1 + $0x124] sm:$0xf]
      %v452 = vld [vmem:[%s1 + $0x128] sm:$0xf]
      %v453 = vld [vmem:[%s1 + $0x12c] sm:$0xf]
      %v454 = vld [vmem:[%s1 + $0x130] sm:$0xf]
      %v455 = vld [vmem:[%s1 + $0x134] sm:$0xf]
      %v456 = vld [vmem:[%s1 + $0x138] sm:$0xf]
      %v457 = vld [vmem:[%s1 + $0x13c] sm:$0xf]
      %v458 = vld [vmem:[%s1 + $0x140] sm:$0xf]
      %v459 = vld [vmem:[%s1 + $0x144] sm:$0xf]
      %v460 = vld [vmem:[%s1 + $0x148] sm:$0xf]
      %v461 = vld [vmem:[%s1 + $0x14c] sm:$0xf]
      %v462 = vld [vmem:[%s1 + $0x150] sm:$0xf]
      %v463 = vld [vmem:[%s1 + $0x154] sm:$0xf]
      %v464 = vld [vmem:[%s1 + $0x158] sm:$0xf]
      %v465 = vld [vmem:[%s1 + $0x15c] sm:$0xf]
      %v466 = vld [vmem:[%s1 + $0x160] sm:$0xf]
      %v467 = vld [vmem:[%s1 + $0x164] sm:$0xf]
      %v468 = vld [vmem:[%s1 + $0x168] sm:$0xf]
      %v469 = vld [vmem:[%s1 + $0x16c] sm:$0xf]
      %v470 = vld [vmem:[%s1 + $0x170] sm:$0xf]
      %v471 = vld [vmem:[%s1 + $0x174] sm:$0xf]
      %v472 = vld [vmem:[%s1 + $0x178] sm:$0xf]
      %v473 = vld [vmem:[%s1 + $0x17c] sm:$0xf]
      %v474 = vld [vmem:[%s1 + $0x180] sm:$0xf]
      %v475 = vld [vmem:[%s1 + $0x184] sm:$0xf]
      %v476 = vld [vmem:[%s1 + $0x188] sm:$0xf]
      %v477 = vld [vmem:[%s1 + $0x18c] sm:$0xf]
      %v478 = vld [vmem:[%s2] sm:$0x1]
      %v480 = vlaneseq
      %v481 = vshrl.u32 %v480, 7
      %v482 = vsub.s32 0, %v481
      %v483 = vrot.slane %v478, %v482
      %v685 = vunpack.c.l.b16 %v178
      %v686 = vunpack.c.h.b16 %v178
      %v687 = vunpack.c.l.b16 %v179
      %v688 = vunpack.c.h.b16 %v179
      %v689 = vunpack.c.l.b16 %v180
      %v690 = vunpack.c.h.b16 %v180
      %v691 = vunpack.c.l.b16 %v181
      %v692 = vunpack.c.l.b16 %v182
      %v693 = vunpack.c.h.b16 %v182
      %v694 = vunpack.c.l.b16 %v183
      %v695 = vunpack.c.h.b16 %v183
      %v696 = vunpack.c.l.b16 %v184
      %v697 = vunpack.c.h.b16 %v184
      %v698 = vunpack.c.l.b16 %v185
      %v699 = vunpack.c.l.b16 %v186
      %v700 = vunpack.c.h.b16 %v186
      %v701 = vunpack.c.l.b16 %v187
      %v702 = vunpack.c.h.b16 %v187
      %v703 = vunpack.c.l.b16 %v188
      %v704 = vunpack.c.h.b16 %v188
      %v705 = vunpack.c.l.b16 %v189
      %v706 = vunpack.c.l.b16 %v190
      %v707 = vunpack.c.h.b16 %v190
      %v708 = vunpack.c.l.b16 %v191
      %v709 = vunpack.c.h.b16 %v191
      %v710 = vunpack.c.l.b16 %v192
      %v711 = vunpack.c.h.b16 %v192
      %v712 = vunpack.c.l.b16 %v193
      %v713 = vunpack.c.l.b16 %v194
      %v714 = vunpack.c.h.b16 %v194
      %v715 = vunpack.c.l.b16 %v195
      %v716 = vunpack.c.h.b16 %v195
      %v717 = vunpack.c.l.b16 %v196
      %v718 = vunpack.c.h.b16 %v196
      %v719 = vunpack.c.l.b16 %v197
      %v720 = vunpack.c.l.b16 %v198
      %v721 = vunpack.c.h.b16 %v198
      %v722 = vunpack.c.l.b16 %v199
      %v723 = vunpack.c.h.b16 %v199
      %v724 = vunpack.c.l.b16 %v200
      %v725 = vunpack.c.h.b16 %v200
      %v726 = vunpack.c.l.b16 %v201
      %v727 = vunpack.c.l.b16 %v202
      %v728 = vunpack.c.h.b16 %v202
      %v729 = vunpack.c.l.b16 %v203
      %v730 = vunpack.c.h.b16 %v203
      %v731 = vunpack.c.l.b16 %v204
      %v732 = vunpack.c.h.b16 %v204
      %v733 = vunpack.c.l.b16 %v205
      %v734 = vunpack.c.l.b16 %v206
      %v735 = vunpack.c.h.b16 %v206
      %v736 = vunpack.c.l.b16 %v207
      %v737 = vunpack.c.h.b16 %v207
      %v738 = vunpack.c.l.b16 %v208
      %v739 = vunpack.c.h.b16 %v208
      %v740 = vunpack.c.l.b16 %v209
      %v741 = vunpack.c.l.b16 %v210
      %v742 = vunpack.c.h.b16 %v210
      %v743 = vunpack.c.l.b16 %v211
      %v744 = vunpack.c.h.b16 %v211
      %v745 = vunpack.c.l.b16 %v212
      %v746 = vunpack.c.h.b16 %v212
      %v747 = vunpack.c.l.b16 %v213
      %v748 = vunpack.c.l.b16 %v214
      %v749 = vunpack.c.h.b16 %v214
      %v750 = vunpack.c.l.b16 %v215
      %v751 = vunpack.c.h.b16 %v215
      %v752 = vunpack.c.l.b16 %v216
      %v753 = vunpack.c.h.b16 %v216
      %v754 = vunpack.c.l.b16 %v217
      %v755 = vunpack.c.l.b16 %v218
      %v756 = vunpack.c.h.b16 %v218
      %v757 = vunpack.c.l.b16 %v219
      %v758 = vunpack.c.h.b16 %v219
      %v759 = vunpack.c.l.b16 %v220
      %v760 = vunpack.c.h.b16 %v220
      %v761 = vunpack.c.l.b16 %v221
      %v762 = vunpack.c.l.b16 %v222
      %v763 = vunpack.c.h.b16 %v222
      %v764 = vunpack.c.l.b16 %v223
      %v765 = vunpack.c.h.b16 %v223
      %v766 = vunpack.c.l.b16 %v224
      %v767 = vunpack.c.h.b16 %v224
      %v768 = vunpack.c.l.b16 %v225
      %v769 = vunpack.c.l.b16 %v226
      %v770 = vunpack.c.h.b16 %v226
      %v771 = vunpack.c.l.b16 %v227
      %v772 = vunpack.c.h.b16 %v227
      %v773 = vunpack.c.l.b16 %v228
      %v774 = vunpack.c.h.b16 %v228
      %v775 = vunpack.c.l.b16 %v229
      %v776 = vunpack.c.l.b16 %v230
      %v777 = vunpack.c.h.b16 %v230
      %v778 = vunpack.c.l.b16 %v231
      %v779 = vunpack.c.h.b16 %v231
      %v780 = vunpack.c.l.b16 %v232
      %v781 = vunpack.c.h.b16 %v232
      %v782 = vunpack.c.l.b16 %v233
      %v783 = vunpack.c.l.b16 %v234
      %v784 = vunpack.c.h.b16 %v234
      %v785 = vunpack.c.l.b16 %v235
      %v786 = vunpack.c.h.b16 %v235
      %v787 = vunpack.c.l.b16 %v236
      %v788 = vunpack.c.h.b16 %v236
      %v789 = vunpack.c.l.b16 %v237
      %v790 = vunpack.c.l.b16 %v238
      %v791 = vunpack.c.h.b16 %v238
      %v792 = vunpack.c.l.b16 %v239
      %v793 = vunpack.c.h.b16 %v239
      %v794 = vunpack.c.l.b16 %v240
      %v795 = vunpack.c.h.b16 %v240
      %v796 = vunpack.c.l.b16 %v241
      %v797 = vunpack.c.l.b16 %v242
      %v798 = vunpack.c.h.b16 %v242
      %v799 = vunpack.c.l.b16 %v243
      %v800 = vunpack.c.h.b16 %v243
      %v801 = vunpack.c.l.b16 %v244
      %v802 = vunpack.c.h.b16 %v244
      %v803 = vunpack.c.l.b16 %v245
      %v804 = vunpack.c.l.b16 %v246
      %v805 = vunpack.c.h.b16 %v246
      %v806 = vunpack.c.l.b16 %v247
      %v807 = vunpack.c.h.b16 %v247
      %v808 = vunpack.c.l.b16 %v248
      %v809 = vunpack.c.h.b16 %v248
      %v810 = vunpack.c.l.b16 %v249
      %v811 = vunpack.c.l.b16 %v250
      %v812 = vunpack.c.h.b16 %v250
      %v813 = vunpack.c.l.b16 %v251
      %v814 = vunpack.c.h.b16 %v251
      %v815 = vunpack.c.l.b16 %v252
      %v816 = vunpack.c.h.b16 %v252
      %v817 = vunpack.c.l.b16 %v253
      %v818 = vunpack.c.l.b16 %v254
      %v819 = vunpack.c.h.b16 %v254
      %v820 = vunpack.c.l.b16 %v255
      %v821 = vunpack.c.h.b16 %v255
      %v822 = vunpack.c.l.b16 %v256
      %v823 = vunpack.c.h.b16 %v256
      %v824 = vunpack.c.l.b16 %v257
      %v825 = vunpack.c.l.b16 %v258
      %v826 = vunpack.c.h.b16 %v258
      %v827 = vunpack.c.l.b16 %v259
      %v828 = vunpack.c.h.b16 %v259
      %v829 = vunpack.c.l.b16 %v260
      %v830 = vunpack.c.h.b16 %v260
      %v831 = vunpack.c.l.b16 %v261
      %v832 = vunpack.c.l.b16 %v262
      %v833 = vunpack.c.h.b16 %v262
      %v834 = vunpack.c.l.b16 %v263
      %v835 = vunpack.c.h.b16 %v263
      %v836 = vunpack.c.l.b16 %v264
      %v837 = vunpack.c.h.b16 %v264
      %v838 = vunpack.c.l.b16 %v265
      %v839 = vunpack.c.l.b16 %v266
      %v840 = vunpack.c.h.b16 %v266
      %v841 = vunpack.c.l.b16 %v267
      %v842 = vunpack.c.h.b16 %v267
      %v843 = vunpack.c.l.b16 %v268
      %v844 = vunpack.c.h.b16 %v268
      %v845 = vunpack.c.l.b16 %v269
      %v846 = vunpack.c.l.b16 %v270
      %v847 = vunpack.c.h.b16 %v270
      %v848 = vunpack.c.l.b16 %v271
      %v849 = vunpack.c.h.b16 %v271
      %v850 = vunpack.c.l.b16 %v272
      %v851 = vunpack.c.h.b16 %v272
      %v852 = vunpack.c.l.b16 %v273
      %v853 = vunpack.c.l.b16 %v274
      %v854 = vunpack.c.h.b16 %v274
      %v855 = vunpack.c.l.b16 %v275
      %v856 = vunpack.c.h.b16 %v275
      %v857 = vunpack.c.l.b16 %v276
      %v858 = vunpack.c.h.b16 %v276
      %v859 = vunpack.c.l.b16 %v277
      %v860 = vunpack.c.l.b16 %v278
      %v861 = vunpack.c.h.b16 %v278
      %v862 = vunpack.c.l.b16 %v279
      %v863 = vunpack.c.h.b16 %v279
      %v864 = vunpack.c.l.b16 %v280
      %v865 = vunpack.c.h.b16 %v280
      %v866 = vunpack.c.l.b16 %v281
      %v867 = vunpack.c.l.b16 %v282
      %v868 = vunpack.c.h.b16 %v282
      %v869 = vunpack.c.l.b16 %v283
      %v870 = vunpack.c.h.b16 %v283
      %v871 = vunpack.c.l.b16 %v284
      %v872 = vunpack.c.h.b16 %v284
      %v873 = vunpack.c.l.b16 %v285
      %v874 = vunpack.c.l.b16 %v286
      %v875 = vunpack.c.h.b16 %v286
      %v876 = vunpack.c.l.b16 %v287
      %v877 = vunpack.c.h.b16 %v287
      %v878 = vunpack.c.l.b16 %v288
      %v879 = vunpack.c.h.b16 %v288
      %v880 = vunpack.c.l.b16 %v289
      %v881 = vunpack.c.l.b16 %v290
      %v882 = vunpack.c.h.b16 %v290
      %v883 = vunpack.c.l.b16 %v291
      %v884 = vunpack.c.h.b16 %v291
      %v885 = vunpack.c.l.b16 %v292
      %v886 = vunpack.c.h.b16 %v292
      %v887 = vunpack.c.l.b16 %v293
      %v888 = vunpack.c.l.b16 %v294
      %v889 = vunpack.c.h.b16 %v294
      %v890 = vunpack.c.l.b16 %v295
      %v891 = vunpack.c.h.b16 %v295
      %v892 = vunpack.c.l.b16 %v296
      %v893 = vunpack.c.h.b16 %v296
      %v894 = vunpack.c.l.b16 %v297
      %v895 = vunpack.c.l.b16 %v298
      %v896 = vunpack.c.h.b16 %v298
      %v897 = vunpack.c.l.b16 %v299
      %v898 = vunpack.c.h.b16 %v299
      %v899 = vunpack.c.l.b16 %v300
      %v900 = vunpack.c.h.b16 %v300
      %v901 = vunpack.c.l.b16 %v301
      %v902 = vunpack.c.l.b16 %v302
      %v903 = vunpack.c.h.b16 %v302
      %v904 = vunpack.c.l.b16 %v303
      %v905 = vunpack.c.h.b16 %v303
      %v906 = vunpack.c.l.b16 %v304
      %v907 = vunpack.c.h.b16 %v304
      %v908 = vunpack.c.l.b16 %v305
      %v909 = vunpack.c.l.b16 %v306
      %v910 = vunpack.c.h.b16 %v306
      %v911 = vunpack.c.l.b16 %v307
      %v912 = vunpack.c.h.b16 %v307
      %v913 = vunpack.c.l.b16 %v308
      %v914 = vunpack.c.h.b16 %v308
      %v915 = vunpack.c.l.b16 %v309
      %v916 = vunpack.c.l.b16 %v310
      %v917 = vunpack.c.h.b16 %v310
      %v918 = vunpack.c.l.b16 %v311
      %v919 = vunpack.c.h.b16 %v311
      %v920 = vunpack.c.l.b16 %v312
      %v921 = vunpack.c.h.b16 %v312
      %v922 = vunpack.c.l.b16 %v313
      %v923 = vunpack.c.l.b16 %v314
      %v924 = vunpack.c.h.b16 %v314
      %v925 = vunpack.c.l.b16 %v315
      %v926 = vunpack.c.h.b16 %v315
      %v927 = vunpack.c.l.b16 %v316
      %v928 = vunpack.c.h.b16 %v316
      %v929 = vunpack.c.l.b16 %v317
      %v930 = vunpack.c.l.b16 %v318
      %v931 = vunpack.c.h.b16 %v318
      %v932 = vunpack.c.l.b16 %v319
      %v933 = vunpack.c.h.b16 %v319
      %v934 = vunpack.c.l.b16 %v320
      %v935 = vunpack.c.h.b16 %v320
      %v936 = vunpack.c.l.b16 %v321
      %v937 = vunpack.c.l.b16 %v322
      %v938 = vunpack.c.h.b16 %v322
      %v939 = vunpack.c.l.b16 %v323
      %v940 = vunpack.c.h.b16 %v323
      %v941 = vunpack.c.l.b16 %v324
      %v942 = vunpack.c.h.b16 %v324
      %v943 = vunpack.c.l.b16 %v325
      %v944 = vunpack.c.l.b16 %v326
      %v945 = vunpack.c.h.b16 %v326
      %v946 = vunpack.c.l.b16 %v327
      %v947 = vunpack.c.h.b16 %v327
      %v948 = vunpack.c.l.b16 %v328
      %v949 = vunpack.c.h.b16 %v328
      %v950 = vunpack.c.l.b16 %v329
      %v951 = vunpack.c.l.b16 %v330
      %v952 = vunpack.c.h.b16 %v330
      %v953 = vunpack.c.l.b16 %v331
      %v954 = vunpack.c.h.b16 %v331
      %v955 = vunpack.c.l.b16 %v332
      %v956 = vunpack.c.h.b16 %v332
      %v957 = vunpack.c.l.b16 %v333
      %v958 = vunpack.c.l.b16 %v334
      %v959 = vunpack.c.h.b16 %v334
      %v960 = vunpack.c.l.b16 %v335
      %v961 = vunpack.c.h.b16 %v335
      %v962 = vunpack.c.l.b16 %v336
      %v963 = vunpack.c.h.b16 %v336
      %v964 = vunpack.c.l.b16 %v337
      %v965 = vunpack.c.l.b16 %v338
      %v966 = vunpack.c.h.b16 %v338
      %v967 = vunpack.c.l.b16 %v339
      %v968 = vunpack.c.h.b16 %v339
      %v969 = vunpack.c.l.b16 %v340
      %v970 = vunpack.c.h.b16 %v340
      %v971 = vunpack.c.l.b16 %v341
      %v972 = vunpack.c.l.b16 %v342
      %v973 = vunpack.c.h.b16 %v342
      %v974 = vunpack.c.l.b16 %v343
      %v975 = vunpack.c.h.b16 %v343
      %v976 = vunpack.c.l.b16 %v344
      %v977 = vunpack.c.h.b16 %v344
      %v978 = vunpack.c.l.b16 %v345
      %v979 = vunpack.c.l.b16 %v346
      %v980 = vunpack.c.h.b16 %v346
      %v981 = vunpack.c.l.b16 %v347
      %v982 = vunpack.c.h.b16 %v347
      %v983 = vunpack.c.l.b16 %v348
      %v984 = vunpack.c.h.b16 %v348
      %v985 = vunpack.c.l.b16 %v349
      %v986 = vunpack.c.l.b16 %v350
      %v987 = vunpack.c.h.b16 %v350
      %v988 = vunpack.c.l.b16 %v351
      %v989 = vunpack.c.h.b16 %v351
      %v990 = vunpack.c.l.b16 %v352
      %v991 = vunpack.c.h.b16 %v352
      %v992 = vunpack.c.l.b16 %v353
      %v993 = vunpack.c.l.b16 %v354
      %v994 = vunpack.c.h.b16 %v354
      %v995 = vunpack.c.l.b16 %v355
      %v996 = vunpack.c.h.b16 %v355
      %v997 = vunpack.c.l.b16 %v356
      %v998 = vunpack.c.h.b16 %v356
      %v999 = vunpack.c.l.b16 %v357
      %v1000 = vunpack.c.l.b16 %v358
      %v1001 = vunpack.c.h.b16 %v358
      %v1002 = vunpack.c.l.b16 %v359
      %v1003 = vunpack.c.h.b16 %v359
      %v1004 = vunpack.c.l.b16 %v360
      %v1005 = vunpack.c.h.b16 %v360
      %v1006 = vunpack.c.l.b16 %v361
      %v1007 = vunpack.c.l.b16 %v362
      %v1008 = vunpack.c.h.b16 %v362
      %v1009 = vunpack.c.l.b16 %v363
      %v1010 = vunpack.c.h.b16 %v363
      %v1011 = vunpack.c.l.b16 %v364
      %v1012 = vunpack.c.h.b16 %v364
      %v1013 = vunpack.c.l.b16 %v365
      %v1014 = vunpack.c.l.b16 %v366
      %v1015 = vunpack.c.h.b16 %v366
      %v1016 = vunpack.c.l.b16 %v367
      %v1017 = vunpack.c.h.b16 %v367
      %v1018 = vunpack.c.l.b16 %v368
      %v1019 = vunpack.c.h.b16 %v368
      %v1020 = vunpack.c.l.b16 %v369
      %v1021 = vunpack.c.l.b16 %v370
      %v1022 = vunpack.c.h.b16 %v370
      %v1023 = vunpack.c.l.b16 %v371
      %v1024 = vunpack.c.h.b16 %v371
      %v1025 = vunpack.c.l.b16 %v372
      %v1026 = vunpack.c.h.b16 %v372
      %v1027 = vunpack.c.l.b16 %v373
      %v1028 = vunpack.c.l.b16 %v374
      %v1029 = vunpack.c.h.b16 %v374
      %v1030 = vunpack.c.l.b16 %v375
      %v1031 = vunpack.c.h.b16 %v375
      %v1032 = vunpack.c.l.b16 %v376
      %v1033 = vunpack.c.h.b16 %v376
      %v1034 = vunpack.c.l.b16 %v377
      %v1035 = vpack.c.b16 %v692, %v685
      %v1036 = vpack.c.b16 %v693, %v686
      %v1037 = vpack.c.b16 %v694, %v687
      %v1038 = vpack.c.b16 %v695, %v688
      %v1039 = vpack.c.b16 %v696, %v689
      %v1040 = vpack.c.b16 %v697, %v690
      %v1041 = vpack.c.b16 %v698, %v691
      %v1042 = vpack.c.b16 %v706, %v699
      %v1043 = vpack.c.b16 %v707, %v700
      %v1044 = vpack.c.b16 %v708, %v701
      %v1045 = vpack.c.b16 %v709, %v702
      %v1046 = vpack.c.b16 %v710, %v703
      %v1047 = vpack.c.b16 %v711, %v704
      %v1048 = vpack.c.b16 %v712, %v705
      %v1049 = vpack.c.b16 %v720, %v713
      %v1050 = vpack.c.b16 %v721, %v714
      %v1051 = vpack.c.b16 %v722, %v715
      %v1052 = vpack.c.b16 %v723, %v716
      %v1053 = vpack.c.b16 %v724, %v717
      %v1054 = vpack.c.b16 %v725, %v718
      %v1055 = vpack.c.b16 %v726, %v719
      %v1056 = vpack.c.b16 %v734, %v727
      %v1057 = vpack.c.b16 %v735, %v728
      %v1058 = vpack.c.b16 %v736, %v729
      %v1059 = vpack.c.b16 %v737, %v730
      %v1060 = vpack.c.b16 %v738, %v731
      %v1061 = vpack.c.b16 %v739, %v732
      %v1062 = vpack.c.b16 %v740, %v733
      %v1063 = vpack.c.b16 %v748, %v741
      %v1064 = vpack.c.b16 %v749, %v742
      %v1065 = vpack.c.b16 %v750, %v743
      %v1066 = vpack.c.b16 %v751, %v744
      %v1067 = vpack.c.b16 %v752, %v745
      %v1068 = vpack.c.b16 %v753, %v746
      %v1069 = vpack.c.b16 %v754, %v747
      %v1070 = vpack.c.b16 %v762, %v755
      %v1071 = vpack.c.b16 %v763, %v756
      %v1072 = vpack.c.b16 %v764, %v757
      %v1073 = vpack.c.b16 %v765, %v758
      %v1074 = vpack.c.b16 %v766, %v759
      %v1075 = vpack.c.b16 %v767, %v760
      %v1076 = vpack.c.b16 %v768, %v761
      %v1077 = vpack.c.b16 %v776, %v769
      %v1078 = vpack.c.b16 %v777, %v770
      %v1079 = vpack.c.b16 %v778, %v771
      %v1080 = vpack.c.b16 %v779, %v772
      %v1081 = vpack.c.b16 %v780, %v773
      %v1082 = vpack.c.b16 %v781, %v774
      %v1083 = vpack.c.b16 %v782, %v775
      %v1084 = vpack.c.b16 %v790, %v783
      %v1085 = vpack.c.b16 %v791, %v784
      %v1086 = vpack.c.b16 %v792, %v785
      %v1087 = vpack.c.b16 %v793, %v786
      %v1088 = vpack.c.b16 %v794, %v787
      %v1089 = vpack.c.b16 %v795, %v788
      %v1090 = vpack.c.b16 %v796, %v789
      %v1091 = vpack.c.b16 %v804, %v797
      %v1092 = vpack.c.b16 %v805, %v798
      %v1093 = vpack.c.b16 %v806, %v799
      %v1094 = vpack.c.b16 %v807, %v800
      %v1095 = vpack.c.b16 %v808, %v801
      %v1096 = vpack.c.b16 %v809, %v802
      %v1097 = vpack.c.b16 %v810, %v803
      %v1098 = vpack.c.b16 %v818, %v811
      %v1099 = vpack.c.b16 %v819, %v812
      %v1100 = vpack.c.b16 %v820, %v813
      %v1101 = vpack.c.b16 %v821, %v814
      %v1102 = vpack.c.b16 %v822, %v815
      %v1103 = vpack.c.b16 %v823, %v816
      %v1104 = vpack.c.b16 %v824, %v817
      %v1105 = vpack.c.b16 %v832, %v825
      %v1106 = vpack.c.b16 %v833, %v826
      %v1107 = vpack.c.b16 %v834, %v827
      %v1108 = vpack.c.b16 %v835, %v828
      %v1109 = vpack.c.b16 %v836, %v829
      %v1110 = vpack.c.b16 %v837, %v830
      %v1111 = vpack.c.b16 %v838, %v831
      %v1112 = vpack.c.b16 %v846, %v839
      %v1113 = vpack.c.b16 %v847, %v840
      %v1114 = vpack.c.b16 %v848, %v841
      %v1115 = vpack.c.b16 %v849, %v842
      %v1116 = vpack.c.b16 %v850, %v843
      %v1117 = vpack.c.b16 %v851, %v844
      %v1118 = vpack.c.b16 %v852, %v845
      %v1119 = vpack.c.b16 %v860, %v853
      %v1120 = vpack.c.b16 %v861, %v854
      %v1121 = vpack.c.b16 %v862, %v855
      %v1122 = vpack.c.b16 %v863, %v856
      %v1123 = vpack.c.b16 %v864, %v857
      %v1124 = vpack.c.b16 %v865, %v858
      %v1125 = vpack.c.b16 %v866, %v859
      %v1126 = vpack.c.b16 %v874, %v867
      %v1127 = vpack.c.b16 %v875, %v868
      %v1128 = vpack.c.b16 %v876, %v869
      %v1129 = vpack.c.b16 %v877, %v870
      %v1130 = vpack.c.b16 %v878, %v871
      %v1131 = vpack.c.b16 %v879, %v872
      %v1132 = vpack.c.b16 %v880, %v873
      %v1133 = vpack.c.b16 %v888, %v881
      %v1134 = vpack.c.b16 %v889, %v882
      %v1135 = vpack.c.b16 %v890, %v883
      %v1136 = vpack.c.b16 %v891, %v884
      %v1137 = vpack.c.b16 %v892, %v885
      %v1138 = vpack.c.b16 %v893, %v886
      %v1139 = vpack.c.b16 %v894, %v887
      %v1140 = vpack.c.b16 %v902, %v895
      %v1141 = vpack.c.b16 %v903, %v896
      %v1142 = vpack.c.b16 %v904, %v897
      %v1143 = vpack.c.b16 %v905, %v898
      %v1144 = vpack.c.b16 %v906, %v899
      %v1145 = vpack.c.b16 %v907, %v900
      %v1146 = vpack.c.b16 %v908, %v901
      %v1147 = vpack.c.b16 %v916, %v909
      %v1148 = vpack.c.b16 %v917, %v910
      %v1149 = vpack.c.b16 %v918, %v911
      %v1150 = vpack.c.b16 %v919, %v912
      %v1151 = vpack.c.b16 %v920, %v913
      %v1152 = vpack.c.b16 %v921, %v914
      %v1153 = vpack.c.b16 %v922, %v915
      %v1154 = vpack.c.b16 %v930, %v923
      %v1155 = vpack.c.b16 %v931, %v924
      %v1156 = vpack.c.b16 %v932, %v925
      %v1157 = vpack.c.b16 %v933, %v926
      %v1158 = vpack.c.b16 %v934, %v927
      %v1159 = vpack.c.b16 %v935, %v928
      %v1160 = vpack.c.b16 %v936, %v929
      %v1161 = vpack.c.b16 %v944, %v937
      %v1162 = vpack.c.b16 %v945, %v938
      %v1163 = vpack.c.b16 %v946, %v939
      %v1164 = vpack.c.b16 %v947, %v940
      %v1165 = vpack.c.b16 %v948, %v941
      %v1166 = vpack.c.b16 %v949, %v942
      %v1167 = vpack.c.b16 %v950, %v943
      %v1168 = vpack.c.b16 %v958, %v951
      %v1169 = vpack.c.b16 %v959, %v952
      %v1170 = vpack.c.b16 %v960, %v953
      %v1171 = vpack.c.b16 %v961, %v954
      %v1172 = vpack.c.b16 %v962, %v955
      %v1173 = vpack.c.b16 %v963, %v956
      %v1174 = vpack.c.b16 %v964, %v957
      %v1175 = vpack.c.b16 %v972, %v965
      %v1176 = vpack.c.b16 %v973, %v966
      %v1177 = vpack.c.b16 %v974, %v967
      %v1178 = vpack.c.b16 %v975, %v968
      %v1179 = vpack.c.b16 %v976, %v969
      %v1180 = vpack.c.b16 %v977, %v970
      %v1181 = vpack.c.b16 %v978, %v971
      %v1182 = vpack.c.b16 %v986, %v979
      %v1183 = vpack.c.b16 %v987, %v980
      %v1184 = vpack.c.b16 %v988, %v981
      %v1185 = vpack.c.b16 %v989, %v982
      %v1186 = vpack.c.b16 %v990, %v983
      %v1187 = vpack.c.b16 %v991, %v984
      %v1188 = vpack.c.b16 %v992, %v985
      %v1189 = vpack.c.b16 %v1000, %v993
      %v1190 = vpack.c.b16 %v1001, %v994
      %v1191 = vpack.c.b16 %v1002, %v995
      %v1192 = vpack.c.b16 %v1003, %v996
      %v1193 = vpack.c.b16 %v1004, %v997
      %v1194 = vpack.c.b16 %v1005, %v998
      %v1195 = vpack.c.b16 %v1006, %v999
      %v1196 = vpack.c.b16 %v1014, %v1007
      %v1197 = vpack.c.b16 %v1015, %v1008
      %v1198 = vpack.c.b16 %v1016, %v1009
      %v1199 = vpack.c.b16 %v1017, %v1010
      %v1200 = vpack.c.b16 %v1018, %v1011
      %v1201 = vpack.c.b16 %v1019, %v1012
      %v1202 = vpack.c.b16 %v1020, %v1013
      %v1203 = vpack.c.b16 %v1028, %v1021
      %v1204 = vpack.c.b16 %v1029, %v1022
      %v1205 = vpack.c.b16 %v1030, %v1023
      %v1206 = vpack.c.b16 %v1031, %v1024
      %v1207 = vpack.c.b16 %v1032, %v1025
      %v1208 = vpack.c.b16 %v1033, %v1026
      %v1209 = vpack.c.b16 %v1034, %v1027
      %v1460 = vunpack.c.l.b16 %v378
      %v1461 = vunpack.c.l.b16 %v379
      %v1462 = vunpack.c.l.b16 %v380
      %v1463 = vunpack.c.l.b16 %v381
      %v1464 = vunpack.c.l.b16 %v382
      %v1465 = vunpack.c.l.b16 %v383
      %v1466 = vunpack.c.l.b16 %v384
      %v1467 = vunpack.c.l.b16 %v385
      %v1468 = vunpack.c.l.b16 %v386
      %v1469 = vunpack.c.l.b16 %v387
      %v1470 = vunpack.c.l.b16 %v388
      %v1471 = vunpack.c.l.b16 %v389
      %v1472 = vunpack.c.l.b16 %v390
      %v1473 = vunpack.c.l.b16 %v391
      %v1474 = vunpack.c.l.b16 %v392
      %v1475 = vunpack.c.l.b16 %v393
      %v1476 = vunpack.c.l.b16 %v394
      %v1477 = vunpack.c.l.b16 %v395
      %v1478 = vunpack.c.l.b16 %v396
      %v1479 = vunpack.c.l.b16 %v397
      %v1480 = vunpack.c.l.b16 %v398
      %v1481 = vunpack.c.l.b16 %v399
      %v1482 = vunpack.c.l.b16 %v400
      %v1483 = vunpack.c.l.b16 %v401
      %v1484 = vunpack.c.l.b16 %v402
      %v1485 = vunpack.c.l.b16 %v403
      %v1486 = vunpack.c.l.b16 %v404
      %v1487 = vunpack.c.l.b16 %v405
      %v1488 = vunpack.c.l.b16 %v406
      %v1489 = vunpack.c.l.b16 %v407
      %v1490 = vunpack.c.l.b16 %v408
      %v1491 = vunpack.c.l.b16 %v409
      %v1492 = vunpack.c.l.b16 %v410
      %v1493 = vunpack.c.l.b16 %v411
      %v1494 = vunpack.c.l.b16 %v412
      %v1495 = vunpack.c.l.b16 %v413
      %v1496 = vunpack.c.l.b16 %v414
      %v1497 = vunpack.c.l.b16 %v415
      %v1498 = vunpack.c.l.b16 %v416
      %v1499 = vunpack.c.l.b16 %v417
      %v1500 = vunpack.c.l.b16 %v418
      %v1501 = vunpack.c.l.b16 %v419
      %v1502 = vunpack.c.l.b16 %v420
      %v1503 = vunpack.c.l.b16 %v421
      %v1504 = vunpack.c.l.b16 %v422
      %v1505 = vunpack.c.l.b16 %v423
      %v1506 = vunpack.c.l.b16 %v424
      %v1507 = vunpack.c.l.b16 %v425
      %v1508 = vunpack.c.l.b16 %v426
      %v1509 = vunpack.c.l.b16 %v427
      %v1510 = vunpack.c.l.b16 %v428
      %v1511 = vunpack.c.l.b16 %v429
      %v1512 = vunpack.c.l.b16 %v430
      %v1513 = vunpack.c.l.b16 %v431
      %v1514 = vunpack.c.l.b16 %v432
      %v1515 = vunpack.c.l.b16 %v433
      %v1516 = vunpack.c.l.b16 %v434
      %v1517 = vunpack.c.l.b16 %v435
      %v1518 = vunpack.c.l.b16 %v436
      %v1519 = vunpack.c.l.b16 %v437
      %v1520 = vunpack.c.l.b16 %v438
      %v1521 = vunpack.c.l.b16 %v439
      %v1522 = vunpack.c.l.b16 %v440
      %v1523 = vunpack.c.l.b16 %v441
      %v1524 = vunpack.c.l.b16 %v442
      %v1525 = vunpack.c.l.b16 %v443
      %v1526 = vunpack.c.l.b16 %v444
      %v1527 = vunpack.c.l.b16 %v445
      %v1528 = vunpack.c.l.b16 %v446
      %v1529 = vunpack.c.l.b16 %v447
      %v1530 = vunpack.c.l.b16 %v448
      %v1531 = vunpack.c.l.b16 %v449
      %v1532 = vunpack.c.l.b16 %v450
      %v1533 = vunpack.c.l.b16 %v451
      %v1534 = vunpack.c.l.b16 %v452
      %v1535 = vunpack.c.l.b16 %v453
      %v1536 = vunpack.c.l.b16 %v454
      %v1537 = vunpack.c.l.b16 %v455
      %v1538 = vunpack.c.l.b16 %v456
      %v1539 = vunpack.c.l.b16 %v457
      %v1540 = vunpack.c.l.b16 %v458
      %v1541 = vunpack.c.l.b16 %v459
      %v1542 = vunpack.c.l.b16 %v460
      %v1543 = vunpack.c.l.b16 %v461
      %v1544 = vunpack.c.l.b16 %v462
      %v1545 = vunpack.c.l.b16 %v463
      %v1546 = vunpack.c.l.b16 %v464
      %v1547 = vunpack.c.l.b16 %v465
      %v1548 = vunpack.c.l.b16 %v466
      %v1549 = vunpack.c.l.b16 %v467
      %v1550 = vunpack.c.l.b16 %v468
      %v1551 = vunpack.c.l.b16 %v469
      %v1552 = vunpack.c.l.b16 %v470
      %v1553 = vunpack.c.l.b16 %v471
      %v1554 = vunpack.c.l.b16 %v472
      %v1555 = vunpack.c.l.b16 %v473
      %v1556 = vunpack.c.l.b16 %v474
      %v1557 = vunpack.c.l.b16 %v475
      %v1558 = vunpack.c.l.b16 %v476
      %v1559 = vunpack.c.l.b16 %v477
      %v1560 = vpack.c.b16 %v1461, %v1460
      %v1561 = vpack.c.b16 %v1463, %v1462
      %v1562 = vpack.c.b16 %v1465, %v1464
      %v1563 = vpack.c.b16 %v1467, %v1466
      %v1564 = vpack.c.b16 %v1469, %v1468
      %v1565 = vpack.c.b16 %v1471, %v1470
      %v1566 = vpack.c.b16 %v1473, %v1472
      %v1567 = vpack.c.b16 %v1475, %v1474
      %v1568 = vpack.c.b16 %v1477, %v1476
      %v1569 = vpack.c.b16 %v1479, %v1478
      %v1570 = vpack.c.b16 %v1481, %v1480
      %v1571 = vpack.c.b16 %v1483, %v1482
      %v1572 = vpack.c.b16 %v1485, %v1484
      %v1573 = vpack.c.b16 %v1487, %v1486
      %v1574 = vpack.c.b16 %v1489, %v1488
      %v1575 = vpack.c.b16 %v1491, %v1490
      %v1576 = vpack.c.b16 %v1493, %v1492
      %v1577 = vpack.c.b16 %v1495, %v1494
      %v1578 = vpack.c.b16 %v1497, %v1496
      %v1579 = vpack.c.b16 %v1499, %v1498
      %v1580 = vpack.c.b16 %v1501, %v1500
      %v1581 = vpack.c.b16 %v1503, %v1502
      %v1582 = vpack.c.b16 %v1505, %v1504
      %v1583 = vpack.c.b16 %v1507, %v1506
      %v1584 = vpack.c.b16 %v1509, %v1508
      %v1585 = vpack.c.b16 %v1511, %v1510
      %v1586 = vpack.c.b16 %v1513, %v1512
      %v1587 = vpack.c.b16 %v1515, %v1514
      %v1588 = vpack.c.b16 %v1517, %v1516
      %v1589 = vpack.c.b16 %v1519, %v1518
      %v1590 = vpack.c.b16 %v1521, %v1520
      %v1591 = vpack.c.b16 %v1523, %v1522
      %v1592 = vpack.c.b16 %v1525, %v1524
      %v1593 = vpack.c.b16 %v1527, %v1526
      %v1594 = vpack.c.b16 %v1529, %v1528
      %v1595 = vpack.c.b16 %v1531, %v1530
      %v1596 = vpack.c.b16 %v1533, %v1532
      %v1597 = vpack.c.b16 %v1535, %v1534
      %v1598 = vpack.c.b16 %v1537, %v1536
      %v1599 = vpack.c.b16 %v1539, %v1538
      %v1600 = vpack.c.b16 %v1541, %v1540
      %v1601 = vpack.c.b16 %v1543, %v1542
      %v1602 = vpack.c.b16 %v1545, %v1544
      %v1603 = vpack.c.b16 %v1547, %v1546
      %v1604 = vpack.c.b16 %v1549, %v1548
      %v1605 = vpack.c.b16 %v1551, %v1550
      %v1606 = vpack.c.b16 %v1553, %v1552
      %v1607 = vpack.c.b16 %v1555, %v1554
      %v1608 = vpack.c.b16 %v1557, %v1556
      %v1609 = vpack.c.b16 %v1559, %v1558
      %vm1660 = vcmask 261120
      %v1662 = vsel %vm1660, %v1041, 0
      %v1665 = vsel %vm1660, %v1048, 0
      %v1668 = vsel %vm1660, %v1055, 0
      %v1671 = vsel %vm1660, %v1062, 0
      %v1674 = vsel %vm1660, %v1069, 0
      %v1677 = vsel %vm1660, %v1076, 0
      %v1680 = vsel %vm1660, %v1083, 0
      %v1683 = vsel %vm1660, %v1090, 0
      %v1686 = vsel %vm1660, %v1097, 0
      %v1689 = vsel %vm1660, %v1104, 0
      %v1692 = vsel %vm1660, %v1111, 0
      %v1695 = vsel %vm1660, %v1118, 0
      %v1698 = vsel %vm1660, %v1125, 0
      %v1701 = vsel %vm1660, %v1132, 0
      %v1704 = vsel %vm1660, %v1139, 0
      %v1707 = vsel %vm1660, %v1146, 0
      %v1710 = vsel %vm1660, %v1153, 0
      %v1713 = vsel %vm1660, %v1160, 0
      %v1716 = vsel %vm1660, %v1167, 0
      %v1719 = vsel %vm1660, %v1174, 0
      %v1722 = vsel %vm1660, %v1181, 0
      %v1725 = vsel %vm1660, %v1188, 0
      %v1728 = vsel %vm1660, %v1195, 0
      %v1731 = vsel %vm1660, %v1202, 0
      %v1734 = vsel %vm1660, %v1209, 0
      %1736 = vmatprep.subr.bf16.mxu0 0
      %1737 = vmatpush1.bf16.msra.mxu0 %v1560
      %1738 = vmatprep.subr.bf16.mxu0 0
      %1739 = vmatpush1.bf16.msra.mxu0 %v1561
      %1740 = vmatprep.subr.bf16.mxu0 0
      %1741 = vmatpush1.bf16.msra.mxu0 %v1562
      %1742 = vmatprep.subr.bf16.mxu0 0
      %1743 = vmatpush1.bf16.msra.mxu0 %v1563
      %1744 = vmatprep.subr.bf16.mxu0 0
      %1745 = vmatpush1.bf16.msra.mxu0 %v1564
      %1746 = vmatprep.subr.bf16.mxu0 0
      %1747 = vmatpush1.bf16.msra.mxu0 %v1565
      %1748 = vmatprep.subr.bf16.mxu0 0
      %1749 = vmatpush1.bf16.msra.mxu0 %v1566
      %1750 = vmatprep.subr.bf16.mxu0 0
      %1751 = vmatpush1.bf16.msra.mxu0 %v1567
      %1752 = vmatprep.subr.bf16.mxu0 0
      %1753 = vmatpush1.bf16.msra.mxu0 %v1568
      %1754 = vmatprep.subr.bf16.mxu0 0
      %1755 = vmatpush1.bf16.msra.mxu0 %v1569
      %1756 = vmatprep.subr.bf16.mxu0 0
      %1757 = vmatpush1.bf16.msra.mxu0 %v1570
      %1758 = vmatprep.subr.bf16.mxu0 0
      %1759 = vmatpush1.bf16.msra.mxu0 %v1571
      %1760 = vmatprep.subr.bf16.mxu0 0
      %1761 = vmatpush1.bf16.msra.mxu0 %v1572
      %1762 = vmatprep.subr.bf16.mxu0 0
      %1763 = vmatpush1.bf16.msra.mxu0 %v1573
      %1764 = vmatprep.subr.bf16.mxu0 0
      %1765 = vmatpush1.bf16.msra.mxu0 %v1574
      %1766 = vmatprep.subr.bf16.mxu0 0
      %1767 = vmatpush1.bf16.msra.mxu0 %v1575
      %1768 = vmatprep.mubr.bf16.mxu0 %v1036
      %1769 = vmatmul.mubr.bf16.gmra.mrb[0].mxu0 %v1035
      %v1770 = vpop.f32.mrb[0].mxu0
      %v1771 = vadd.f32 %v483, %v1770
      %v1772 = vpop.f32.mrb[0].mxu0
      %v1773 = vpop.f32.mrb[0].mxu0
      %v1774 = vadd.f32 %v483, %v1773
      %v1775 = vpop.f32.mrb[0].mxu0
      %1776 = vmatprep.mubr.bf16.mxu0 %v1043
      %1777 = vmatmul.mubr.bf16.gmra.mrb[0].mxu0 %v1042
      %v1778 = vpop.f32.mrb[0].mxu0
      %v1779 = vadd.f32 %v483, %v1778
      %v1780 = vpop.f32.mrb[0].mxu0
      %v1781 = vpop.f32.mrb[0].mxu0
      %v1782 = vadd.f32 %v483, %v1781
      %v1783 = vpop.f32.mrb[0].mxu0
      %1784 = vmatprep.mubr.bf16.mxu0 %v1050
      %1785 = vmatmul.mubr.bf16.gmra.mrb[0].mxu0 %v1049
      %v1786 = vpop.f32.mrb[0].mxu0
      %v1787 = vadd.f32 %v483, %v1786
      %v1788 = vpop.f32.mrb[0].mxu0
      %v1789 = vpop.f32.mrb[0].mxu0
      %v1790 = vadd.f32 %v483, %v1789
      %v1791 = vpop.f32.mrb[0].mxu0
      %1792 = vmatprep.mubr.bf16.mxu0 %v1057
      %1793 = vmatmul.mubr.bf16.gmra.mrb[0].mxu0 %v1056
      %v1794 = vpop.f32.mrb[0].mxu0
      %v1795 = vadd.f32 %v483, %v1794
      %v1796 = vpop.f32.mrb[0].mxu0
      %v1797 = vpop.f32.mrb[0].mxu0
      %v1798 = vadd.f32 %v483, %v1797
      %v1799 = vpop.f32.mrb[0].mxu0
      %1800 = vmatprep.mubr.bf16.mxu0 %v1064
      %1801 = vmatmul.mubr.bf16.gmra.mrb[0].mxu0 %v1063
      %v1802 = vpop.f32.mrb[0].mxu0
      %v1803 = vadd.f32 %v483, %v1802
      %v1804 = vpop.f32.mrb[0].mxu0
      %v1805 = vpop.f32.mrb[0].mxu0
      %v1806 = vadd.f32 %v483, %v1805
      %v1807 = vpop.f32.mrb[0].mxu0
      %1808 = vmatprep.mubr.bf16.mxu0 %v1071
      %1809 = vmatmul.mubr.bf16.gmra.mrb[0].mxu0 %v1070
      %v1810 = vpop.f32.mrb[0].mxu0
      %v1811 = vadd.f32 %v483, %v1810
      %v1812 = vpop.f32.mrb[0].mxu0
      %v1813 = vpop.f32.mrb[0].mxu0
      %v1814 = vadd.f32 %v483, %v1813
      %v1815 = vpop.f32.mrb[0].mxu0
      %1816 = vmatprep.mubr.bf16.mxu0 %v1078
      %1817 = vmatmul.mubr.bf16.gmra.mrb[0].mxu0 %v1077
      %v1818 = vpop.f32.mrb[0].mxu0
      %v1819 = vadd.f32 %v483, %v1818
      %v1820 = vpop.f32.mrb[0].mxu0
      %v1821 = vpop.f32.mrb[0].mxu0
      %v1822 = vadd.f32 %v483, %v1821
      %v1823 = vpop.f32.mrb[0].mxu0
      %1824 = vmatprep.mubr.bf16.mxu0 %v1085
      %1825 = vmatmul.mubr.bf16.gmra.mrb[0].mxu0 %v1084
      %v1826 = vpop.f32.mrb[0].mxu0
      %v1827 = vadd.f32 %v483, %v1826
      %v1828 = vpop.f32.mrb[0].mxu0
      %v1829 = vpop.f32.mrb[0].mxu0
      %v1830 = vadd.f32 %v483, %v1829
      %v1831 = vpop.f32.mrb[0].mxu0
      %1832 = vmatprep.mubr.bf16.mxu0 %v1092
      %1833 = vmatmul.mubr.bf16.gmra.mrb[0].mxu0 %v1091
      %v1834 = vpop.f32.mrb[0].mxu0
      %v1835 = vadd.f32 %v483, %v1834
      %v1836 = vpop.f32.mrb[0].mxu0
      %v1837 = vpop.f32.mrb[0].mxu0
      %v1838 = vadd.f32 %v483, %v1837
      %v1839 = vpop.f32.mrb[0].mxu0
      %1840 = vmatprep.mubr.bf16.mxu0 %v1099
      %1841 = vmatmul.mubr.bf16.gmra.mrb[0].mxu0 %v1098
      %v1842 = vpop.f32.mrb[0].mxu0
      %v1843 = vadd.f32 %v483, %v1842
      %v1844 = vpop.f32.mrb[0].mxu0
      %v1845 = vpop.f32.mrb[0].mxu0
      %v1846 = vadd.f32 %v483, %v1845
      %v1847 = vpop.f32.mrb[0].mxu0
      %1848 = vmatprep.mubr.bf16.mxu0 %v1106
      %1849 = vmatmul.mubr.bf16.gmra.mrb[0].mxu0 %v1105
      %v1850 = vpop.f32.mrb[0].mxu0
      %v1851 = vadd.f32 %v483, %v1850
      %v1852 = vpop.f32.mrb[0].mxu0
      %v1853 = vpop.f32.mrb[0].mxu0
      %v1854 = vadd.f32 %v483, %v1853
      %v1855 = vpop.f32.mrb[0].mxu0
      %1856 = vmatprep.mubr.bf16.mxu0 %v1113
      %1857 = vmatmul.mubr.bf16.gmra.mrb[0].mxu0 %v1112
      %v1858 = vpop.f32.mrb[0].mxu0
      %v1859 = vadd.f32 %v483, %v1858
      %v1860 = vpop.f32.mrb[0].mxu0
      %v1861 = vpop.f32.mrb[0].mxu0
      %v1862 = vadd.f32 %v483, %v1861
      %v1863 = vpop.f32.mrb[0].mxu0
      %1864 = vmatprep.mubr.bf16.mxu0 %v1120
      %1865 = vmatmul.mubr.bf16.gmra.mrb[0].mxu0 %v1119
      %v1866 = vpop.f32.mrb[0].mxu0
      %v1867 = vadd.f32 %v483, %v1866
      %v1868 = vpop.f32.mrb[0].mxu0
      %v1869 = vpop.f32.mrb[0].mxu0
      %v1870 = vadd.f32 %v483, %v1869
      %v1871 = vpop.f32.mrb[0].mxu0
      %1872 = vmatprep.mubr.bf16.mxu0 %v1127
      %1873 = vmatmul.mubr.bf16.gmra.mrb[0].mxu0 %v1126
      %v1874 = vpop.f32.mrb[0].mxu0
      %v1875 = vadd.f32 %v483, %v1874
      %v1876 = vpop.f32.mrb[0].mxu0
      %v1877 = vpop.f32.mrb[0].mxu0
      %v1878 = vadd.f32 %v483, %v1877
      %v1879 = vpop.f32.mrb[0].mxu0
      %1880 = vmatprep.mubr.bf16.mxu0 %v1134
      %1881 = vmatmul.mubr.bf16.gmra.mrb[0].mxu0 %v1133
      %v1882 = vpop.f32.mrb[0].mxu0
      %v1883 = vadd.f32 %v483, %v1882
      %v1884 = vpop.f32.mrb[0].mxu0
      %v1885 = vpop.f32.mrb[0].mxu0
      %v1886 = vadd.f32 %v483, %v1885
      %v1887 = vpop.f32.mrb[0].mxu0
      %1888 = vmatprep.mubr.bf16.mxu0 %v1141
      %1889 = vmatmul.mubr.bf16.gmra.mrb[0].mxu0 %v1140
      %v1890 = vpop.f32.mrb[0].mxu0
      %v1891 = vadd.f32 %v483, %v1890
      %v1892 = vpop.f32.mrb[0].mxu0
      %v1893 = vpop.f32.mrb[0].mxu0
      %v1894 = vadd.f32 %v483, %v1893
      %v1895 = vpop.f32.mrb[0].mxu0
      %1896 = vmatprep.mubr.bf16.mxu0 %v1148
      %1897 = vmatmul.mubr.bf16.gmra.mrb[0].mxu0 %v1147
      %v1898 = vpop.f32.mrb[0].mxu0
      %v1899 = vadd.f32 %v483, %v1898
      %v1900 = vpop.f32.mrb[0].mxu0
      %v1901 = vpop.f32.mrb[0].mxu0
      %v1902 = vadd.f32 %v483, %v1901
      %v1903 = vpop.f32.mrb[0].mxu0
      %1904 = vmatprep.mubr.bf16.mxu0 %v1155
      %1905 = vmatmul.mubr.bf16.gmra.mrb[0].mxu0 %v1154
      %v1906 = vpop.f32.mrb[0].mxu0
      %v1907 = vadd.f32 %v483, %v1906
      %v1908 = vpop.f32.mrb[0].mxu0
      %v1909 = vpop.f32.mrb[0].mxu0
      %v1910 = vadd.f32 %v483, %v1909
      %v1911 = vpop.f32.mrb[0].mxu0
      %1912 = vmatprep.mubr.bf16.mxu0 %v1162
      %1913 = vmatmul.mubr.bf16.gmra.mrb[0].mxu0 %v1161
      %v1914 = vpop.f32.mrb[0].mxu0
      %v1915 = vadd.f32 %v483, %v1914
      %v1916 = vpop.f32.mrb[0].mxu0
      %v1917 = vpop.f32.mrb[0].mxu0
      %v1918 = vadd.f32 %v483, %v1917
      %v1919 = vpop.f32.mrb[0].mxu0
      %1920 = vmatprep.mubr.bf16.mxu0 %v1169
      %1921 = vmatmul.mubr.bf16.gmra.mrb[0].mxu0 %v1168
      %v1922 = vpop.f32.mrb[0].mxu0
      %v1923 = vadd.f32 %v483, %v1922
      %v1924 = vpop.f32.mrb[0].mxu0
      %v1925 = vpop.f32.mrb[0].mxu0
      %v1926 = vadd.f32 %v483, %v1925
      %v1927 = vpop.f32.mrb[0].mxu0
      %1928 = vmatprep.mubr.bf16.mxu0 %v1176
      %1929 = vmatmul.mubr.bf16.gmra.mrb[0].mxu0 %v1175
      %v1930 = vpop.f32.mrb[0].mxu0
      %v1931 = vadd.f32 %v483, %v1930
      %v1932 = vpop.f32.mrb[0].mxu0
      %v1933 = vpop.f32.mrb[0].mxu0
      %v1934 = vadd.f32 %v483, %v1933
      %v1935 = vpop.f32.mrb[0].mxu0
      %1936 = vmatprep.mubr.bf16.mxu0 %v1183
      %1937 = vmatmul.mubr.bf16.gmra.mrb[0].mxu0 %v1182
      %v1938 = vpop.f32.mrb[0].mxu0
      %v1939 = vadd.f32 %v483, %v1938
      %v1940 = vpop.f32.mrb[0].mxu0
      %v1941 = vpop.f32.mrb[0].mxu0
      %v1942 = vadd.f32 %v483, %v1941
      %v1943 = vpop.f32.mrb[0].mxu0
      %1944 = vmatprep.mubr.bf16.mxu0 %v1190
      %1945 = vmatmul.mubr.bf16.gmra.mrb[0].mxu0 %v1189
      %v1946 = vpop.f32.mrb[0].mxu0
      %v1947 = vadd.f32 %v483, %v1946
      %v1948 = vpop.f32.mrb[0].mxu0
      %v1949 = vpop.f32.mrb[0].mxu0
      %v1950 = vadd.f32 %v483, %v1949
      %v1951 = vpop.f32.mrb[0].mxu0
      %1952 = vmatprep.mubr.bf16.mxu0 %v1197
      %1953 = vmatmul.mubr.bf16.gmra.mrb[0].mxu0 %v1196
      %v1954 = vpop.f32.mrb[0].mxu0
      %v1955 = vadd.f32 %v483, %v1954
      %v1956 = vpop.f32.mrb[0].mxu0
      %v1957 = vpop.f32.mrb[0].mxu0
      %v1958 = vadd.f32 %v483, %v1957
      %v1959 = vpop.f32.mrb[0].mxu0
      %1960 = vmatprep.mubr.bf16.mxu0 %v1204
      %1961 = vmatmul.mubr.bf16.gmra.mrb[0].mxu0 %v1203
      %v1962 = vpop.f32.mrb[0].mxu0
      %v1963 = vadd.f32 %v483, %v1962
      %v1964 = vpop.f32.mrb[0].mxu0
      %v1965 = vpop.f32.mrb[0].mxu0
      %v1966 = vadd.f32 %v483, %v1965
      %v1967 = vpop.f32.mrb[0].mxu0
      %1968 = vdwg.mxu0
      %1969 = vmatprep.subr.bf16.mxu0 0
      %1970 = vmatpush1.bf16.msra.mxu0 %v1576
      %1971 = vmatprep.subr.bf16.mxu0 0
      %1972 = vmatpush1.bf16.msra.mxu0 %v1577
      %1973 = vmatprep.subr.bf16.mxu0 0
      %1974 = vmatpush1.bf16.msra.mxu0 %v1578
      %1975 = vmatprep.subr.bf16.mxu0 0
      %1976 = vmatpush1.bf16.msra.mxu0 %v1579
      %1977 = vmatprep.subr.bf16.mxu0 0
      %1978 = vmatpush1.bf16.msra.mxu0 %v1580
      %1979 = vmatprep.subr.bf16.mxu0 0
      %1980 = vmatpush1.bf16.msra.mxu0 %v1581
      %1981 = vmatprep.subr.bf16.mxu0 0
      %1982 = vmatpush1.bf16.msra.mxu0 %v1582
      %1983 = vmatprep.subr.bf16.mxu0 0
      %1984 = vmatpush1.bf16.msra.mxu0 %v1583
      %1985 = vmatprep.subr.bf16.mxu0 0
      %1986 = vmatpush1.bf16.msra.mxu0 %v1584
      %1987 = vmatprep.subr.bf16.mxu0 0
      %1988 = vmatpush1.bf16.msra.mxu0 %v1585
      %1989 = vmatprep.subr.bf16.mxu0 0
      %1990 = vmatpush1.bf16.msra.mxu0 %v1586
      %1991 = vmatprep.subr.bf16.mxu0 0
      %1992 = vmatpush1.bf16.msra.mxu0 %v1587
      %1993 = vmatprep.subr.bf16.mxu0 0
      %1994 = vmatpush1.bf16.msra.mxu0 %v1588
      %1995 = vmatprep.subr.bf16.mxu0 0
      %1996 = vmatpush1.bf16.msra.mxu0 %v1589
      %1997 = vmatprep.subr.bf16.mxu0 0
      %1998 = vmatpush1.bf16.msra.mxu0 %v1590
      %1999 = vmatprep.subr.bf16.mxu0 0
      %2000 = vmatpush1.bf16.msra.mxu0 %v1591
      %2001 = vmatprep.mubr.bf16.mxu0 %v1038
      %2002 = vmatmul.mubr.bf16.gmra.mrb[0].mxu0 %v1037
      %v2003 = vpop.f32.mrb[0].mxu0
      %v2004 = vadd.f32 %v1771, %v2003
      %v2005 = vpop.f32.mrb[0].mxu0
      %v2006 = vpop.f32.mrb[0].mxu0
      %v2007 = vadd.f32 %v1774, %v2006
      %v2008 = vpop.f32.mrb[0].mxu0
      %2009 = vmatprep.mubr.bf16.mxu0 %v1045
      %2010 = vmatmul.mubr.bf16.gmra.mrb[0].mxu0 %v1044
      %v2011 = vpop.f32.mrb[0].mxu0
      %v2012 = vadd.f32 %v1779, %v2011
      %v2013 = vpop.f32.mrb[0].mxu0
      %v2014 = vpop.f32.mrb[0].mxu0
      %v2015 = vadd.f32 %v1782, %v2014
      %v2016 = vpop.f32.mrb[0].mxu0
      %2017 = vmatprep.mubr.bf16.mxu0 %v1052
      %2018 = vmatmul.mubr.bf16.gmra.mrb[0].mxu0 %v1051
      %v2019 = vpop.f32.mrb[0].mxu0
      %v2020 = vadd.f32 %v1787, %v2019
      %v2021 = vpop.f32.mrb[0].mxu0
      %v2022 = vpop.f32.mrb[0].mxu0
      %v2023 = vadd.f32 %v1790, %v2022
      %v2024 = vpop.f32.mrb[0].mxu0
      %2025 = vmatprep.mubr.bf16.mxu0 %v1059
      %2026 = vmatmul.mubr.bf16.gmra.mrb[0].mxu0 %v1058
      %v2027 = vpop.f32.mrb[0].mxu0
      %v2028 = vadd.f32 %v1795, %v2027
      %v2029 = vpop.f32.mrb[0].mxu0
      %v2030 = vpop.f32.mrb[0].mxu0
      %v2031 = vadd.f32 %v1798, %v2030
      %v2032 = vpop.f32.mrb[0].mxu0
      %2033 = vmatprep.mubr.bf16.mxu0 %v1066
      %2034 = vmatmul.mubr.bf16.gmra.mrb[0].mxu0 %v1065
      %v2035 = vpop.f32.mrb[0].mxu0
      %v2036 = vadd.f32 %v1803, %v2035
      %v2037 = vpop.f32.mrb[0].mxu0
      %v2038 = vpop.f32.mrb[0].mxu0
      %v2039 = vadd.f32 %v1806, %v2038
      %v2040 = vpop.f32.mrb[0].mxu0
      %2041 = vmatprep.mubr.bf16.mxu0 %v1073
      %2042 = vmatmul.mubr.bf16.gmra.mrb[0].mxu0 %v1072
      %v2043 = vpop.f32.mrb[0].mxu0
      %v2044 = vadd.f32 %v1811, %v2043
      %v2045 = vpop.f32.mrb[0].mxu0
      %v2046 = vpop.f32.mrb[0].mxu0
      %v2047 = vadd.f32 %v1814, %v2046
      %v2048 = vpop.f32.mrb[0].mxu0
      %2049 = vmatprep.mubr.bf16.mxu0 %v1080
      %2050 = vmatmul.mubr.bf16.gmra.mrb[0].mxu0 %v1079
      %v2051 = vpop.f32.mrb[0].mxu0
      %v2052 = vadd.f32 %v1819, %v2051
      %v2053 = vpop.f32.mrb[0].mxu0
      %v2054 = vpop.f32.mrb[0].mxu0
      %v2055 = vadd.f32 %v1822, %v2054
      %v2056 = vpop.f32.mrb[0].mxu0
      %2057 = vmatprep.mubr.bf16.mxu0 %v1087
      %2058 = vmatmul.mubr.bf16.gmra.mrb[0].mxu0 %v1086
      %v2059 = vpop.f32.mrb[0].mxu0
      %v2060 = vadd.f32 %v1827, %v2059
      %v2061 = vpop.f32.mrb[0].mxu0
      %v2062 = vpop.f32.mrb[0].mxu0
      %v2063 = vadd.f32 %v1830, %v2062
      %v2064 = vpop.f32.mrb[0].mxu0
      %2065 = vmatprep.mubr.bf16.mxu0 %v1094
      %2066 = vmatmul.mubr.bf16.gmra.mrb[0].mxu0 %v1093
      %v2067 = vpop.f32.mrb[0].mxu0
      %v2068 = vadd.f32 %v1835, %v2067
      %v2069 = vpop.f32.mrb[0].mxu0
      %v2070 = vpop.f32.mrb[0].mxu0
      %v2071 = vadd.f32 %v1838, %v2070
      %v2072 = vpop.f32.mrb[0].mxu0
      %2073 = vmatprep.mubr.bf16.mxu0 %v1101
      %2074 = vmatmul.mubr.bf16.gmra.mrb[0].mxu0 %v1100
      %v2075 = vpop.f32.mrb[0].mxu0
      %v2076 = vadd.f32 %v1843, %v2075
      %v2077 = vpop.f32.mrb[0].mxu0
      %v2078 = vpop.f32.mrb[0].mxu0
      %v2079 = vadd.f32 %v1846, %v2078
      %v2080 = vpop.f32.mrb[0].mxu0
      %2081 = vmatprep.mubr.bf16.mxu0 %v1108
      %2082 = vmatmul.mubr.bf16.gmra.mrb[0].mxu0 %v1107
      %v2083 = vpop.f32.mrb[0].mxu0
      %v2084 = vadd.f32 %v1851, %v2083
      %v2085 = vpop.f32.mrb[0].mxu0
      %v2086 = vpop.f32.mrb[0].mxu0
      %v2087 = vadd.f32 %v1854, %v2086
      %v2088 = vpop.f32.mrb[0].mxu0
      %2089 = vmatprep.mubr.bf16.mxu0 %v1115
      %2090 = vmatmul.mubr.bf16.gmra.mrb[0].mxu0 %v1114
      %v2091 = vpop.f32.mrb[0].mxu0
      %v2092 = vadd.f32 %v1859, %v2091
      %v2093 = vpop.f32.mrb[0].mxu0
      %v2094 = vpop.f32.mrb[0].mxu0
      %v2095 = vadd.f32 %v1862, %v2094
      %v2096 = vpop.f32.mrb[0].mxu0
      %2097 = vmatprep.mubr.bf16.mxu0 %v1122
      %2098 = vmatmul.mubr.bf16.gmra.mrb[0].mxu0 %v1121
      %v2099 = vpop.f32.mrb[0].mxu0
      %v2100 = vadd.f32 %v1867, %v2099
      %v2101 = vpop.f32.mrb[0].mxu0
      %v2102 = vpop.f32.mrb[0].mxu0
      %v2103 = vadd.f32 %v1870, %v2102
      %v2104 = vpop.f32.mrb[0].mxu0
      %2105 = vmatprep.mubr.bf16.mxu0 %v1129
      %2106 = vmatmul.mubr.bf16.gmra.mrb[0].mxu0 %v1128
      %v2107 = vpop.f32.mrb[0].mxu0
      %v2108 = vadd.f32 %v1875, %v2107
      %v2109 = vpop.f32.mrb[0].mxu0
      %v2110 = vpop.f32.mrb[0].mxu0
      %v2111 = vadd.f32 %v1878, %v2110
      %v2112 = vpop.f32.mrb[0].mxu0
      %2113 = vmatprep.mubr.bf16.mxu0 %v1136
      %2114 = vmatmul.mubr.bf16.gmra.mrb[0].mxu0 %v1135
      %v2115 = vpop.f32.mrb[0].mxu0
      %v2116 = vadd.f32 %v1883, %v2115
      %v2117 = vpop.f32.mrb[0].mxu0
      %v2118 = vpop.f32.mrb[0].mxu0
      %v2119 = vadd.f32 %v1886, %v2118
      %v2120 = vpop.f32.mrb[0].mxu0
      %2121 = vmatprep.mubr.bf16.mxu0 %v1143
      %2122 = vmatmul.mubr.bf16.gmra.mrb[0].mxu0 %v1142
      %v2123 = vpop.f32.mrb[0].mxu0
      %v2124 = vadd.f32 %v1891, %v2123
      %v2125 = vpop.f32.mrb[0].mxu0
      %v2126 = vpop.f32.mrb[0].mxu0
      %v2127 = vadd.f32 %v1894, %v2126
      %v2128 = vpop.f32.mrb[0].mxu0
      %2129 = vmatprep.mubr.bf16.mxu0 %v1150
      %2130 = vmatmul.mubr.bf16.gmra.mrb[0].mxu0 %v1149
      %v2131 = vpop.f32.mrb[0].mxu0
      %v2132 = vadd.f32 %v1899, %v2131
      %v2133 = vpop.f32.mrb[0].mxu0
      %v2134 = vpop.f32.mrb[0].mxu0
      %v2135 = vadd.f32 %v1902, %v2134
      %v2136 = vpop.f32.mrb[0].mxu0
      %2137 = vmatprep.mubr.bf16.mxu0 %v1157
      %2138 = vmatmul.mubr.bf16.gmra.mrb[0].mxu0 %v1156
      %v2139 = vpop.f32.mrb[0].mxu0
      %v2140 = vadd.f32 %v1907, %v2139
      %v2141 = vpop.f32.mrb[0].mxu0
      %v2142 = vpop.f32.mrb[0].mxu0
      %v2143 = vadd.f32 %v1910, %v2142
      %v2144 = vpop.f32.mrb[0].mxu0
      %2145 = vmatprep.mubr.bf16.mxu0 %v1164
      %2146 = vmatmul.mubr.bf16.gmra.mrb[0].mxu0 %v1163
      %v2147 = vpop.f32.mrb[0].mxu0
      %v2148 = vadd.f32 %v1915, %v2147
      %v2149 = vpop.f32.mrb[0].mxu0
      %v2150 = vpop.f32.mrb[0].mxu0
      %v2151 = vadd.f32 %v1918, %v2150
      %v2152 = vpop.f32.mrb[0].mxu0
      %2153 = vmatprep.mubr.bf16.mxu0 %v1171
      %2154 = vmatmul.mubr.bf16.gmra.mrb[0].mxu0 %v1170
      %v2155 = vpop.f32.mrb[0].mxu0
      %v2156 = vadd.f32 %v1923, %v2155
      %v2157 = vpop.f32.mrb[0].mxu0
      %v2158 = vpop.f32.mrb[0].mxu0
      %v2159 = vadd.f32 %v1926, %v2158
      %v2160 = vpop.f32.mrb[0].mxu0
      %2161 = vmatprep.mubr.bf16.mxu0 %v1178
      %2162 = vmatmul.mubr.bf16.gmra.mrb[0].mxu0 %v1177
      %v2163 = vpop.f32.mrb[0].mxu0
      %v2164 = vadd.f32 %v1931, %v2163
      %v2165 = vpop.f32.mrb[0].mxu0
      %v2166 = vpop.f32.mrb[0].mxu0
      %v2167 = vadd.f32 %v1934, %v2166
      %v2168 = vpop.f32.mrb[0].mxu0
      %2169 = vmatprep.mubr.bf16.mxu0 %v1185
      %2170 = vmatmul.mubr.bf16.gmra.mrb[0].mxu0 %v1184
      %v2171 = vpop.f32.mrb[0].mxu0
      %v2172 = vadd.f32 %v1939, %v2171
      %v2173 = vpop.f32.mrb[0].mxu0
      %v2174 = vpop.f32.mrb[0].mxu0
      %v2175 = vadd.f32 %v1942, %v2174
      %v2176 = vpop.f32.mrb[0].mxu0
      %2177 = vmatprep.mubr.bf16.mxu0 %v1192
      %2178 = vmatmul.mubr.bf16.gmra.mrb[0].mxu0 %v1191
      %v2179 = vpop.f32.mrb[0].mxu0
      %v2180 = vadd.f32 %v1947, %v2179
      %v2181 = vpop.f32.mrb[0].mxu0
      %v2182 = vpop.f32.mrb[0].mxu0
      %v2183 = vadd.f32 %v1950, %v2182
      %v2184 = vpop.f32.mrb[0].mxu0
      %2185 = vmatprep.mubr.bf16.mxu0 %v1199
      %2186 = vmatmul.mubr.bf16.gmra.mrb[0].mxu0 %v1198
      %v2187 = vpop.f32.mrb[0].mxu0
      %v2188 = vadd.f32 %v1955, %v2187
      %v2189 = vpop.f32.mrb[0].mxu0
      %v2190 = vpop.f32.mrb[0].mxu0
      %v2191 = vadd.f32 %v1958, %v2190
      %v2192 = vpop.f32.mrb[0].mxu0
      %2193 = vmatprep.mubr.bf16.mxu0 %v1206
      %2194 = vmatmul.mubr.bf16.gmra.mrb[0].mxu0 %v1205
      %v2195 = vpop.f32.mrb[0].mxu0
      %v2196 = vadd.f32 %v1963, %v2195
      %v2197 = vpop.f32.mrb[0].mxu0
      %v2198 = vpop.f32.mrb[0].mxu0
      %v2199 = vadd.f32 %v1966, %v2198
      %v2200 = vpop.f32.mrb[0].mxu0
      %2201 = vdwg.mxu0
      %2202 = vmatprep.subr.bf16.mxu0 0
      %2203 = vmatpush1.bf16.msra.mxu0 %v1592
      %2204 = vmatprep.subr.bf16.mxu0 0
      %2205 = vmatpush1.bf16.msra.mxu0 %v1593
      %2206 = vmatprep.subr.bf16.mxu0 0
      %2207 = vmatpush1.bf16.msra.mxu0 %v1594
      %2208 = vmatprep.subr.bf16.mxu0 0
      %2209 = vmatpush1.bf16.msra.mxu0 %v1595
      %2210 = vmatprep.subr.bf16.mxu0 0
      %2211 = vmatpush1.bf16.msra.mxu0 %v1596
      %2212 = vmatprep.subr.bf16.mxu0 0
      %2213 = vmatpush1.bf16.msra.mxu0 %v1597
      %2214 = vmatprep.subr.bf16.mxu0 0
      %2215 = vmatpush1.bf16.msra.mxu0 %v1598
      %2216 = vmatprep.subr.bf16.mxu0 0
      %2217 = vmatpush1.bf16.msra.mxu0 %v1599
      %2218 = vmatprep.subr.bf16.mxu0 0
      %2219 = vmatpush1.bf16.msra.mxu0 %v1600
      %2220 = vmatprep.subr.bf16.mxu0 0
      %2221 = vmatpush1.bf16.msra.mxu0 %v1601
      %2222 = vmatprep.subr.bf16.mxu0 0
      %2223 = vmatpush1.bf16.msra.mxu0 %v1602
      %2224 = vmatprep.subr.bf16.mxu0 0
      %2225 = vmatpush1.bf16.msra.mxu0 %v1603
      %2226 = vmatprep.subr.bf16.mxu0 0
      %2227 = vmatpush1.bf16.msra.mxu0 %v1604
      %2228 = vmatprep.subr.bf16.mxu0 0
      %2229 = vmatpush1.bf16.msra.mxu0 %v1605
      %2230 = vmatprep.subr.bf16.mxu0 0
      %2231 = vmatpush1.bf16.msra.mxu0 %v1606
      %2232 = vmatprep.subr.bf16.mxu0 0
      %2233 = vmatpush1.bf16.msra.mxu0 %v1607
      %2234 = vmatprep.mubr.bf16.mxu0 %v1040
      %2235 = vmatmul.mubr.bf16.gmra.mrb[0].mxu0 %v1039
      %v2236 = vpop.f32.mrb[0].mxu0
      %v2237 = vadd.f32 %v2004, %v2236
      %v2238 = vpop.f32.mrb[0].mxu0
      %v2239 = vpop.f32.mrb[0].mxu0
      %v2240 = vadd.f32 %v2007, %v2239
      %v2241 = vpop.f32.mrb[0].mxu0
      %2242 = vmatprep.mubr.bf16.mxu0 %v1047
      %2243 = vmatmul.mubr.bf16.gmra.mrb[0].mxu0 %v1046
      %v2244 = vpop.f32.mrb[0].mxu0
      %v2245 = vadd.f32 %v2012, %v2244
      %v2246 = vpop.f32.mrb[0].mxu0
      %v2247 = vpop.f32.mrb[0].mxu0
      %v2248 = vadd.f32 %v2015, %v2247
      %v2249 = vpop.f32.mrb[0].mxu0
      %2250 = vmatprep.mubr.bf16.mxu0 %v1054
      %2251 = vmatmul.mubr.bf16.gmra.mrb[0].mxu0 %v1053
      %v2252 = vpop.f32.mrb[0].mxu0
      %v2253 = vadd.f32 %v2020, %v2252
      %v2254 = vpop.f32.mrb[0].mxu0
      %v2255 = vpop.f32.mrb[0].mxu0
      %v2256 = vadd.f32 %v2023, %v2255
      %v2257 = vpop.f32.mrb[0].mxu0
      %2258 = vmatprep.mubr.bf16.mxu0 %v1061
      %2259 = vmatmul.mubr.bf16.gmra.mrb[0].mxu0 %v1060
      %v2260 = vpop.f32.mrb[0].mxu0
      %v2261 = vadd.f32 %v2028, %v2260
      %v2262 = vpop.f32.mrb[0].mxu0
      %v2263 = vpop.f32.mrb[0].mxu0
      %v2264 = vadd.f32 %v2031, %v2263
      %v2265 = vpop.f32.mrb[0].mxu0
      %2266 = vmatprep.mubr.bf16.mxu0 %v1068
      %2267 = vmatmul.mubr.bf16.gmra.mrb[0].mxu0 %v1067
      %v2268 = vpop.f32.mrb[0].mxu0
      %v2269 = vadd.f32 %v2036, %v2268
      %v2270 = vpop.f32.mrb[0].mxu0
      %v2271 = vpop.f32.mrb[0].mxu0
      %v2272 = vadd.f32 %v2039, %v2271
      %v2273 = vpop.f32.mrb[0].mxu0
      %2274 = vmatprep.mubr.bf16.mxu0 %v1075
      %2275 = vmatmul.mubr.bf16.gmra.mrb[0].mxu0 %v1074
      %v2276 = vpop.f32.mrb[0].mxu0
      %v2277 = vadd.f32 %v2044, %v2276
      %v2278 = vpop.f32.mrb[0].mxu0
      %v2279 = vpop.f32.mrb[0].mxu0
      %v2280 = vadd.f32 %v2047, %v2279
      %v2281 = vpop.f32.mrb[0].mxu0
      %2282 = vmatprep.mubr.bf16.mxu0 %v1082
      %2283 = vmatmul.mubr.bf16.gmra.mrb[0].mxu0 %v1081
      %v2284 = vpop.f32.mrb[0].mxu0
      %v2285 = vadd.f32 %v2052, %v2284
      %v2286 = vpop.f32.mrb[0].mxu0
      %v2287 = vpop.f32.mrb[0].mxu0
      %v2288 = vadd.f32 %v2055, %v2287
      %v2289 = vpop.f32.mrb[0].mxu0
      %2290 = vmatprep.mubr.bf16.mxu0 %v1089
      %2291 = vmatmul.mubr.bf16.gmra.mrb[0].mxu0 %v1088
      %v2292 = vpop.f32.mrb[0].mxu0
      %v2293 = vadd.f32 %v2060, %v2292
      %v2294 = vpop.f32.mrb[0].mxu0
      %v2295 = vpop.f32.mrb[0].mxu0
      %v2296 = vadd.f32 %v2063, %v2295
      %v2297 = vpop.f32.mrb[0].mxu0
      %2298 = vmatprep.mubr.bf16.mxu0 %v1096
      %2299 = vmatmul.mubr.bf16.gmra.mrb[0].mxu0 %v1095
      %v2300 = vpop.f32.mrb[0].mxu0
      %v2301 = vadd.f32 %v2068, %v2300
      %v2302 = vpop.f32.mrb[0].mxu0
      %v2303 = vpop.f32.mrb[0].mxu0
      %v2304 = vadd.f32 %v2071, %v2303
      %v2305 = vpop.f32.mrb[0].mxu0
      %2306 = vmatprep.mubr.bf16.mxu0 %v1103
      %2307 = vmatmul.mubr.bf16.gmra.mrb[0].mxu0 %v1102
      %v2308 = vpop.f32.mrb[0].mxu0
      %v2309 = vadd.f32 %v2076, %v2308
      %v2310 = vpop.f32.mrb[0].mxu0
      %v2311 = vpop.f32.mrb[0].mxu0
      %v2312 = vadd.f32 %v2079, %v2311
      %v2313 = vpop.f32.mrb[0].mxu0
      %2314 = vmatprep.mubr.bf16.mxu0 %v1110
      %2315 = vmatmul.mubr.bf16.gmra.mrb[0].mxu0 %v1109
      %v2316 = vpop.f32.mrb[0].mxu0
      %v2317 = vadd.f32 %v2084, %v2316
      %v2318 = vpop.f32.mrb[0].mxu0
      %v2319 = vpop.f32.mrb[0].mxu0
      %v2320 = vadd.f32 %v2087, %v2319
      %v2321 = vpop.f32.mrb[0].mxu0
      %2322 = vmatprep.mubr.bf16.mxu0 %v1117
      %2323 = vmatmul.mubr.bf16.gmra.mrb[0].mxu0 %v1116
      %v2324 = vpop.f32.mrb[0].mxu0
      %v2325 = vadd.f32 %v2092, %v2324
      %v2326 = vpop.f32.mrb[0].mxu0
      %v2327 = vpop.f32.mrb[0].mxu0
      %v2328 = vadd.f32 %v2095, %v2327
      %v2329 = vpop.f32.mrb[0].mxu0
      %2330 = vmatprep.mubr.bf16.mxu0 %v1124
      %2331 = vmatmul.mubr.bf16.gmra.mrb[0].mxu0 %v1123
      %v2332 = vpop.f32.mrb[0].mxu0
      %v2333 = vadd.f32 %v2100, %v2332
      %v2334 = vpop.f32.mrb[0].mxu0
      %v2335 = vpop.f32.mrb[0].mxu0
      %v2336 = vadd.f32 %v2103, %v2335
      %v2337 = vpop.f32.mrb[0].mxu0
      %2338 = vmatprep.mubr.bf16.mxu0 %v1131
      %2339 = vmatmul.mubr.bf16.gmra.mrb[0].mxu0 %v1130
      %v2340 = vpop.f32.mrb[0].mxu0
      %v2341 = vadd.f32 %v2108, %v2340
      %v2342 = vpop.f32.mrb[0].mxu0
      %v2343 = vpop.f32.mrb[0].mxu0
      %v2344 = vadd.f32 %v2111, %v2343
      %v2345 = vpop.f32.mrb[0].mxu0
      %2346 = vmatprep.mubr.bf16.mxu0 %v1138
      %2347 = vmatmul.mubr.bf16.gmra.mrb[0].mxu0 %v1137
      %v2348 = vpop.f32.mrb[0].mxu0
      %v2349 = vadd.f32 %v2116, %v2348
      %v2350 = vpop.f32.mrb[0].mxu0
      %v2351 = vpop.f32.mrb[0].mxu0
      %v2352 = vadd.f32 %v2119, %v2351
      %v2353 = vpop.f32.mrb[0].mxu0
      %2354 = vmatprep.mubr.bf16.mxu0 %v1145
      %2355 = vmatmul.mubr.bf16.gmra.mrb[0].mxu0 %v1144
      %v2356 = vpop.f32.mrb[0].mxu0
      %v2357 = vadd.f32 %v2124, %v2356
      %v2358 = vpop.f32.mrb[0].mxu0
      %v2359 = vpop.f32.mrb[0].mxu0
      %v2360 = vadd.f32 %v2127, %v2359
      %v2361 = vpop.f32.mrb[0].mxu0
      %2362 = vmatprep.mubr.bf16.mxu0 %v1152
      %2363 = vmatmul.mubr.bf16.gmra.mrb[0].mxu0 %v1151
      %v2364 = vpop.f32.mrb[0].mxu0
      %v2365 = vadd.f32 %v2132, %v2364
      %v2366 = vpop.f32.mrb[0].mxu0
      %v2367 = vpop.f32.mrb[0].mxu0
      %v2368 = vadd.f32 %v2135, %v2367
      %v2369 = vpop.f32.mrb[0].mxu0
      %2370 = vmatprep.mubr.bf16.mxu0 %v1159
      %2371 = vmatmul.mubr.bf16.gmra.mrb[0].mxu0 %v1158
      %v2372 = vpop.f32.mrb[0].mxu0
      %v2373 = vadd.f32 %v2140, %v2372
      %v2374 = vpop.f32.mrb[0].mxu0
      %v2375 = vpop.f32.mrb[0].mxu0
      %v2376 = vadd.f32 %v2143, %v2375
      %v2377 = vpop.f32.mrb[0].mxu0
      %2378 = vmatprep.mubr.bf16.mxu0 %v1166
      %2379 = vmatmul.mubr.bf16.gmra.mrb[0].mxu0 %v1165
      %v2380 = vpop.f32.mrb[0].mxu0
      %v2381 = vadd.f32 %v2148, %v2380
      %v2382 = vpop.f32.mrb[0].mxu0
      %v2383 = vpop.f32.mrb[0].mxu0
      %v2384 = vadd.f32 %v2151, %v2383
      %v2385 = vpop.f32.mrb[0].mxu0
      %2386 = vmatprep.mubr.bf16.mxu0 %v1173
      %2387 = vmatmul.mubr.bf16.gmra.mrb[0].mxu0 %v1172
      %v2388 = vpop.f32.mrb[0].mxu0
      %v2389 = vadd.f32 %v2156, %v2388
      %v2390 = vpop.f32.mrb[0].mxu0
      %v2391 = vpop.f32.mrb[0].mxu0
      %v2392 = vadd.f32 %v2159, %v2391
      %v2393 = vpop.f32.mrb[0].mxu0
      %2394 = vmatprep.mubr.bf16.mxu0 %v1180
      %2395 = vmatmul.mubr.bf16.gmra.mrb[0].mxu0 %v1179
      %v2396 = vpop.f32.mrb[0].mxu0
      %v2397 = vadd.f32 %v2164, %v2396
      %v2398 = vpop.f32.mrb[0].mxu0
      %v2399 = vpop.f32.mrb[0].mxu0
      %v2400 = vadd.f32 %v2167, %v2399
      %v2401 = vpop.f32.mrb[0].mxu0
      %2402 = vmatprep.mubr.bf16.mxu0 %v1187
      %2403 = vmatmul.mubr.bf16.gmra.mrb[0].mxu0 %v1186
      %v2404 = vpop.f32.mrb[0].mxu0
      %v2405 = vadd.f32 %v2172, %v2404
      %v2406 = vpop.f32.mrb[0].mxu0
      %v2407 = vpop.f32.mrb[0].mxu0
      %v2408 = vadd.f32 %v2175, %v2407
      %v2409 = vpop.f32.mrb[0].mxu0
      %2410 = vmatprep.mubr.bf16.mxu0 %v1194
      %2411 = vmatmul.mubr.bf16.gmra.mrb[0].mxu0 %v1193
      %v2412 = vpop.f32.mrb[0].mxu0
      %v2413 = vadd.f32 %v2180, %v2412
      %v2414 = vpop.f32.mrb[0].mxu0
      %v2415 = vpop.f32.mrb[0].mxu0
      %v2416 = vadd.f32 %v2183, %v2415
      %v2417 = vpop.f32.mrb[0].mxu0
      %2418 = vmatprep.mubr.bf16.mxu0 %v1201
      %2419 = vmatmul.mubr.bf16.gmra.mrb[0].mxu0 %v1200
      %v2420 = vpop.f32.mrb[0].mxu0
      %v2421 = vadd.f32 %v2188, %v2420
      %v2422 = vpop.f32.mrb[0].mxu0
      %v2423 = vpop.f32.mrb[0].mxu0
      %v2424 = vadd.f32 %v2191, %v2423
      %v2425 = vpop.f32.mrb[0].mxu0
      %2426 = vmatprep.mubr.bf16.mxu0 %v1208
      %2427 = vmatmul.mubr.bf16.gmra.mrb[0].mxu0 %v1207
      %v2428 = vpop.f32.mrb[0].mxu0
      %v2429 = vadd.f32 %v2196, %v2428
      %v2430 = vpop.f32.mrb[0].mxu0
      %v2431 = vpop.f32.mrb[0].mxu0
      %v2432 = vadd.f32 %v2199, %v2431
      %v2433 = vpop.f32.mrb[0].mxu0
      %2434 = vdwg.mxu0
      %2435 = vmatprep.subr.bf16.mxu0 0
      %2436 = vmatpush1.bf16.msra.mxu0 %v1608
      %2437 = vmatprep.subr.bf16.mxu0 0
      %2438 = vmatpush1.bf16.msra.mxu0 %v1609
      %2439 = vmatprep.subr.bf16.mxu0 0
      %2440 = vmatpush1.bf16.msra.mxu0 0
      %2441 = vmatprep.subr.bf16.mxu0 0
      %2442 = vmatpush1.bf16.msra.mxu0 0
      %2443 = vmatprep.subr.bf16.mxu0 0
      %2444 = vmatpush1.bf16.msra.mxu0 0
      %2445 = vmatprep.subr.bf16.mxu0 0
      %2446 = vmatpush1.bf16.msra.mxu0 0
      %2447 = vmatprep.subr.bf16.mxu0 0
      %2448 = vmatpush1.bf16.msra.mxu0 0
      %2449 = vmatprep.subr.bf16.mxu0 0
      %2450 = vmatpush1.bf16.msra.mxu0 0
      %2451 = vmatprep.subr.bf16.mxu0 0
      %2452 = vmatpush1.bf16.msra.mxu0 0
      %2453 = vmatprep.subr.bf16.mxu0 0
      %2454 = vmatpush1.bf16.msra.mxu0 0
      %2455 = vmatprep.subr.bf16.mxu0 0
      %2456 = vmatpush1.bf16.msra.mxu0 0
      %2457 = vmatprep.subr.bf16.mxu0 0
      %2458 = vmatpush1.bf16.msra.mxu0 0
      %2459 = vmatprep.subr.bf16.mxu0 0
      %2460 = vmatpush1.bf16.msra.mxu0 0
      %2461 = vmatprep.subr.bf16.mxu0 0
      %2462 = vmatpush1.bf16.msra.mxu0 0
      %2463 = vmatprep.subr.bf16.mxu0 0
      %2464 = vmatpush1.bf16.msra.mxu0 0
      %2465 = vmatprep.subr.bf16.mxu0 0
      %2466 = vmatpush1.bf16.msra.mxu0 0
      %2467 = vmatprep.mubr.bf16.mxu0 0
      %2468 = vmatmul.mubr.bf16.gmra.mrb[0].mxu0 %v1662
      %v2469 = vpop.f32.mrb[0].mxu0
      %v2470 = vadd.f32 %v2237, %v2469
      %v2471 = vpop.f32.mrb[0].mxu0
      %v2472 = vpop.f32.mrb[0].mxu0
      %v2473 = vadd.f32 %v2240, %v2472
      %v2474 = vpop.f32.mrb[0].mxu0
      %2475 = vmatprep.mubr.bf16.mxu0 0
      %2476 = vmatmul.mubr.bf16.gmra.mrb[0].mxu0 %v1665
      %v2477 = vpop.f32.mrb[0].mxu0
      %v2478 = vadd.f32 %v2245, %v2477
      %v2479 = vpop.f32.mrb[0].mxu0
      %v2480 = vpop.f32.mrb[0].mxu0
      %v2481 = vadd.f32 %v2248, %v2480
      %v2482 = vpop.f32.mrb[0].mxu0
      %2483 = vmatprep.mubr.bf16.mxu0 0
      %2484 = vmatmul.mubr.bf16.gmra.mrb[0].mxu0 %v1668
      %v2485 = vpop.f32.mrb[0].mxu0
      %v2486 = vadd.f32 %v2253, %v2485
      %v2487 = vpop.f32.mrb[0].mxu0
      %v2488 = vpop.f32.mrb[0].mxu0
      %v2489 = vadd.f32 %v2256, %v2488
      %v2490 = vpop.f32.mrb[0].mxu0
      %2491 = vmatprep.mubr.bf16.mxu0 0
      %2492 = vmatmul.mubr.bf16.gmra.mrb[0].mxu0 %v1671
      %v2493 = vpop.f32.mrb[0].mxu0
      %v2494 = vadd.f32 %v2261, %v2493
      %v2495 = vpop.f32.mrb[0].mxu0
      %v2496 = vpop.f32.mrb[0].mxu0
      %v2497 = vadd.f32 %v2264, %v2496
      %v2498 = vpop.f32.mrb[0].mxu0
      %2499 = vmatprep.mubr.bf16.mxu0 0
      %2500 = vmatmul.mubr.bf16.gmra.mrb[0].mxu0 %v1674
      %v2501 = vpop.f32.mrb[0].mxu0
      %v2502 = vadd.f32 %v2269, %v2501
      %v2503 = vpop.f32.mrb[0].mxu0
      %v2504 = vpop.f32.mrb[0].mxu0
      %v2505 = vadd.f32 %v2272, %v2504
      %v2506 = vpop.f32.mrb[0].mxu0
      %2507 = vmatprep.mubr.bf16.mxu0 0
      %2508 = vmatmul.mubr.bf16.gmra.mrb[0].mxu0 %v1677
      %v2509 = vpop.f32.mrb[0].mxu0
      %v2510 = vadd.f32 %v2277, %v2509
      %v2511 = vpop.f32.mrb[0].mxu0
      %v2512 = vpop.f32.mrb[0].mxu0
      %v2513 = vadd.f32 %v2280, %v2512
      %v2514 = vpop.f32.mrb[0].mxu0
      %2515 = vmatprep.mubr.bf16.mxu0 0
      %2516 = vmatmul.mubr.bf16.gmra.mrb[0].mxu0 %v1680
      %v2517 = vpop.f32.mrb[0].mxu0
      %v2518 = vadd.f32 %v2285, %v2517
      %v2519 = vpop.f32.mrb[0].mxu0
      %v2520 = vpop.f32.mrb[0].mxu0
      %v2521 = vadd.f32 %v2288, %v2520
      %v2522 = vpop.f32.mrb[0].mxu0
      %2523 = vmatprep.mubr.bf16.mxu0 0
      %2524 = vmatmul.mubr.bf16.gmra.mrb[0].mxu0 %v1683
      %v2525 = vpop.f32.mrb[0].mxu0
      %v2526 = vadd.f32 %v2293, %v2525
      %v2527 = vpop.f32.mrb[0].mxu0
      %v2528 = vpop.f32.mrb[0].mxu0
      %v2529 = vadd.f32 %v2296, %v2528
      %v2530 = vpop.f32.mrb[0].mxu0
      %2531 = vmatprep.mubr.bf16.mxu0 0
      %2532 = vmatmul.mubr.bf16.gmra.mrb[0].mxu0 %v1686
      %v2533 = vpop.f32.mrb[0].mxu0
      %v2534 = vadd.f32 %v2301, %v2533
      %v2535 = vpop.f32.mrb[0].mxu0
      %v2536 = vpop.f32.mrb[0].mxu0
      %v2537 = vadd.f32 %v2304, %v2536
      %v2538 = vpop.f32.mrb[0].mxu0
      %2539 = vmatprep.mubr.bf16.mxu0 0
      %2540 = vmatmul.mubr.bf16.gmra.mrb[0].mxu0 %v1689
      %v2541 = vpop.f32.mrb[0].mxu0
      %v2542 = vadd.f32 %v2309, %v2541
      %v2543 = vpop.f32.mrb[0].mxu0
      %v2544 = vpop.f32.mrb[0].mxu0
      %v2545 = vadd.f32 %v2312, %v2544
      %v2546 = vpop.f32.mrb[0].mxu0
      %2547 = vmatprep.mubr.bf16.mxu0 0
      %2548 = vmatmul.mubr.bf16.gmra.mrb[0].mxu0 %v1692
      %v2549 = vpop.f32.mrb[0].mxu0
      %v2550 = vadd.f32 %v2317, %v2549
      %v2551 = vpop.f32.mrb[0].mxu0
      %v2552 = vpop.f32.mrb[0].mxu0
      %v2553 = vadd.f32 %v2320, %v2552
      %v2554 = vpop.f32.mrb[0].mxu0
      %2555 = vmatprep.mubr.bf16.mxu0 0
      %2556 = vmatmul.mubr.bf16.gmra.mrb[0].mxu0 %v1695
      %v2557 = vpop.f32.mrb[0].mxu0
      %v2558 = vadd.f32 %v2325, %v2557
      %v2559 = vpop.f32.mrb[0].mxu0
      %v2560 = vpop.f32.mrb[0].mxu0
      %v2561 = vadd.f32 %v2328, %v2560
      %v2562 = vpop.f32.mrb[0].mxu0
      %2563 = vmatprep.mubr.bf16.mxu0 0
      %2564 = vmatmul.mubr.bf16.gmra.mrb[0].mxu0 %v1698
      %v2565 = vpop.f32.mrb[0].mxu0
      %v2566 = vadd.f32 %v2333, %v2565
      %v2567 = vpop.f32.mrb[0].mxu0
      %v2568 = vpop.f32.mrb[0].mxu0
      %v2569 = vadd.f32 %v2336, %v2568
      %v2570 = vpop.f32.mrb[0].mxu0
      %2571 = vmatprep.mubr.bf16.mxu0 0
      %2572 = vmatmul.mubr.bf16.gmra.mrb[0].mxu0 %v1701
      %v2573 = vpop.f32.mrb[0].mxu0
      %v2574 = vadd.f32 %v2341, %v2573
      %v2575 = vpop.f32.mrb[0].mxu0
      %v2576 = vpop.f32.mrb[0].mxu0
      %v2577 = vadd.f32 %v2344, %v2576
      %v2578 = vpop.f32.mrb[0].mxu0
      %2579 = vmatprep.mubr.bf16.mxu0 0
      %2580 = vmatmul.mubr.bf16.gmra.mrb[0].mxu0 %v1704
      %v2581 = vpop.f32.mrb[0].mxu0
      %v2582 = vadd.f32 %v2349, %v2581
      %v2583 = vpop.f32.mrb[0].mxu0
      %v2584 = vpop.f32.mrb[0].mxu0
      %v2585 = vadd.f32 %v2352, %v2584
      %v2586 = vpop.f32.mrb[0].mxu0
      %2587 = vmatprep.mubr.bf16.mxu0 0
      %2588 = vmatmul.mubr.bf16.gmra.mrb[0].mxu0 %v1707
      %v2589 = vpop.f32.mrb[0].mxu0
      %v2590 = vadd.f32 %v2357, %v2589
      %v2591 = vpop.f32.mrb[0].mxu0
      %v2592 = vpop.f32.mrb[0].mxu0
      %v2593 = vadd.f32 %v2360, %v2592
      %v2594 = vpop.f32.mrb[0].mxu0
      %2595 = vmatprep.mubr.bf16.mxu0 0
      %2596 = vmatmul.mubr.bf16.gmra.mrb[0].mxu0 %v1710
      %v2597 = vpop.f32.mrb[0].mxu0
      %v2598 = vadd.f32 %v2365, %v2597
      %v2599 = vpop.f32.mrb[0].mxu0
      %v2600 = vpop.f32.mrb[0].mxu0
      %v2601 = vadd.f32 %v2368, %v2600
      %v2602 = vpop.f32.mrb[0].mxu0
      %2603 = vmatprep.mubr.bf16.mxu0 0
      %2604 = vmatmul.mubr.bf16.gmra.mrb[0].mxu0 %v1713
      %v2605 = vpop.f32.mrb[0].mxu0
      %v2606 = vadd.f32 %v2373, %v2605
      %v2607 = vpop.f32.mrb[0].mxu0
      %v2608 = vpop.f32.mrb[0].mxu0
      %v2609 = vadd.f32 %v2376, %v2608
      %v2610 = vpop.f32.mrb[0].mxu0
      %2611 = vmatprep.mubr.bf16.mxu0 0
      %2612 = vmatmul.mubr.bf16.gmra.mrb[0].mxu0 %v1716
      %v2613 = vpop.f32.mrb[0].mxu0
      %v2614 = vadd.f32 %v2381, %v2613
      %v2615 = vpop.f32.mrb[0].mxu0
      %v2616 = vpop.f32.mrb[0].mxu0
      %v2617 = vadd.f32 %v2384, %v2616
      %v2618 = vpop.f32.mrb[0].mxu0
      %2619 = vmatprep.mubr.bf16.mxu0 0
      %2620 = vmatmul.mubr.bf16.gmra.mrb[0].mxu0 %v1719
      %v2621 = vpop.f32.mrb[0].mxu0
      %v2622 = vadd.f32 %v2389, %v2621
      %v2623 = vpop.f32.mrb[0].mxu0
      %v2624 = vpop.f32.mrb[0].mxu0
      %v2625 = vadd.f32 %v2392, %v2624
      %v2626 = vpop.f32.mrb[0].mxu0
      %2627 = vmatprep.mubr.bf16.mxu0 0
      %2628 = vmatmul.mubr.bf16.gmra.mrb[0].mxu0 %v1722
      %v2629 = vpop.f32.mrb[0].mxu0
      %v2630 = vadd.f32 %v2397, %v2629
      %v2631 = vpop.f32.mrb[0].mxu0
      %v2632 = vpop.f32.mrb[0].mxu0
      %v2633 = vadd.f32 %v2400, %v2632
      %v2634 = vpop.f32.mrb[0].mxu0
      %2635 = vmatprep.mubr.bf16.mxu0 0
      %2636 = vmatmul.mubr.bf16.gmra.mrb[0].mxu0 %v1725
      %v2637 = vpop.f32.mrb[0].mxu0
      %v2638 = vadd.f32 %v2405, %v2637
      %v2639 = vpop.f32.mrb[0].mxu0
      %v2640 = vpop.f32.mrb[0].mxu0
      %v2641 = vadd.f32 %v2408, %v2640
      %v2642 = vpop.f32.mrb[0].mxu0
      %2643 = vmatprep.mubr.bf16.mxu0 0
      %2644 = vmatmul.mubr.bf16.gmra.mrb[0].mxu0 %v1728
      %v2645 = vpop.f32.mrb[0].mxu0
      %v2646 = vadd.f32 %v2413, %v2645
      %v2647 = vpop.f32.mrb[0].mxu0
      %v2648 = vpop.f32.mrb[0].mxu0
      %v2649 = vadd.f32 %v2416, %v2648
      %v2650 = vpop.f32.mrb[0].mxu0
      %2651 = vmatprep.mubr.bf16.mxu0 0
      %2652 = vmatmul.mubr.bf16.gmra.mrb[0].mxu0 %v1731
      %v2653 = vpop.f32.mrb[0].mxu0
      %v2654 = vadd.f32 %v2421, %v2653
      %v2655 = vpop.f32.mrb[0].mxu0
      %v2656 = vpop.f32.mrb[0].mxu0
      %v2657 = vadd.f32 %v2424, %v2656
      %v2658 = vpop.f32.mrb[0].mxu0
      %2659 = vmatprep.mubr.bf16.mxu0 0
      %2660 = vmatmul.mubr.bf16.gmra.mrb[0].mxu0 %v1734
      %v2661 = vpop.f32.mrb[0].mxu0
      %v2662 = vadd.f32 %v2429, %v2661
      %v2663 = vpop.f32.mrb[0].mxu0
      %v2664 = vpop.f32.mrb[0].mxu0
      %v2665 = vadd.f32 %v2432, %v2664
      %v2666 = vpop.f32.mrb[0].mxu0
      %2667 = vdwg.mxu0
      %v2668 = vmax.f32 %v2470, 0.0
      %v2669 = vmax.f32 %v2473, 0.0
      %v2670 = vmax.f32 %v2478, 0.0
      %v2671 = vmax.f32 %v2481, 0.0
      %v2672 = vmax.f32 %v2486, 0.0
      %v2673 = vmax.f32 %v2489, 0.0
      %v2674 = vmax.f32 %v2494, 0.0
      %v2675 = vmax.f32 %v2497, 0.0
      %v2676 = vmax.f32 %v2502, 0.0
      %v2677 = vmax.f32 %v2505, 0.0
      %v2678 = vmax.f32 %v2510, 0.0
      %v2679 = vmax.f32 %v2513, 0.0
      %v2680 = vmax.f32 %v2518, 0.0
      %v2681 = vmax.f32 %v2521, 0.0
      %v2682 = vmax.f32 %v2526, 0.0
      %v2683 = vmax.f32 %v2529, 0.0
      %v2684 = vmax.f32 %v2534, 0.0
      %v2685 = vmax.f32 %v2537, 0.0
      %v2686 = vmax.f32 %v2542, 0.0
      %v2687 = vmax.f32 %v2545, 0.0
      %v2688 = vmax.f32 %v2550, 0.0
      %v2689 = vmax.f32 %v2553, 0.0
      %v2690 = vmax.f32 %v2558, 0.0
      %v2691 = vmax.f32 %v2561, 0.0
      %v2692 = vmax.f32 %v2566, 0.0
      %v2693 = vmax.f32 %v2569, 0.0
      %v2694 = vmax.f32 %v2574, 0.0
      %v2695 = vmax.f32 %v2577, 0.0
      %v2696 = vmax.f32 %v2582, 0.0
      %v2697 = vmax.f32 %v2585, 0.0
      %v2698 = vmax.f32 %v2590, 0.0
      %v2699 = vmax.f32 %v2593, 0.0
      %v2700 = vmax.f32 %v2598, 0.0
      %v2701 = vmax.f32 %v2601, 0.0
      %v2702 = vmax.f32 %v2606, 0.0
      %v2703 = vmax.f32 %v2609, 0.0
      %v2704 = vmax.f32 %v2614, 0.0
      %v2705 = vmax.f32 %v2617, 0.0
      %v2706 = vmax.f32 %v2622, 0.0
      %v2707 = vmax.f32 %v2625, 0.0
      %v2708 = vmax.f32 %v2630, 0.0
      %v2709 = vmax.f32 %v2633, 0.0
      %v2710 = vmax.f32 %v2638, 0.0
      %v2711 = vmax.f32 %v2641, 0.0
      %v2712 = vmax.f32 %v2646, 0.0
      %v2713 = vmax.f32 %v2649, 0.0
      %v2714 = vmax.f32 %v2654, 0.0
      %v2715 = vmax.f32 %v2657, 0.0
      %v2716 = vmax.f32 %v2662, 0.0
      %v2717 = vmax.f32 %v2665, 0.0
      %v2718 = vpack.c.bf16 %v2669, %v2668
      %v2719 = vpack.c.bf16 %v2671, %v2670
      %v2720 = vpack.c.bf16 %v2673, %v2672
      %v2721 = vpack.c.bf16 %v2675, %v2674
      %v2722 = vpack.c.bf16 %v2677, %v2676
      %v2723 = vpack.c.bf16 %v2679, %v2678
      %v2724 = vpack.c.bf16 %v2681, %v2680
      %v2725 = vpack.c.bf16 %v2683, %v2682
      %v2726 = vpack.c.bf16 %v2685, %v2684
      %v2727 = vpack.c.bf16 %v2687, %v2686
      %v2728 = vpack.c.bf16 %v2689, %v2688
      %v2729 = vpack.c.bf16 %v2691, %v2690
      %v2730 = vpack.c.bf16 %v2693, %v2692
      %v2731 = vpack.c.bf16 %v2695, %v2694
      %v2732 = vpack.c.bf16 %v2697, %v2696
      %v2733 = vpack.c.bf16 %v2699, %v2698
      %v2734 = vpack.c.bf16 %v2701, %v2700
      %v2735 = vpack.c.bf16 %v2703, %v2702
      %v2736 = vpack.c.bf16 %v2705, %v2704
      %v2737 = vpack.c.bf16 %v2707, %v2706
      %v2738 = vpack.c.bf16 %v2709, %v2708
      %v2739 = vpack.c.bf16 %v2711, %v2710
      %v2740 = vpack.c.bf16 %v2713, %v2712
      %v2741 = vpack.c.bf16 %v2715, %v2714
      %v2742 = vpack.c.bf16 %v2717, %v2716
      %v2768 = vunpack.c.l.b16 %v2718
      %v2769 = vunpack.c.h.b16 %v2718
      %v2770 = vunpack.c.l.b16 %v2719
      %v2771 = vunpack.c.h.b16 %v2719
      %v2772 = vunpack.c.l.b16 %v2720
      %v2773 = vunpack.c.h.b16 %v2720
      %v2774 = vunpack.c.l.b16 %v2721
      %v2775 = vunpack.c.h.b16 %v2721
      %v2776 = vunpack.c.l.b16 %v2722
      %v2777 = vunpack.c.h.b16 %v2722
      %v2778 = vunpack.c.l.b16 %v2723
      %v2779 = vunpack.c.h.b16 %v2723
      %v2780 = vunpack.c.l.b16 %v2724
      %v2781 = vunpack.c.h.b16 %v2724
      %v2782 = vunpack.c.l.b16 %v2725
      %v2783 = vunpack.c.h.b16 %v2725
      %v2784 = vunpack.c.l.b16 %v2726
      %v2785 = vunpack.c.h.b16 %v2726
      %v2786 = vunpack.c.l.b16 %v2727
      %v2787 = vunpack.c.h.b16 %v2727
      %v2788 = vunpack.c.l.b16 %v2728
      %v2789 = vunpack.c.h.b16 %v2728
      %v2790 = vunpack.c.l.b16 %v2729
      %v2791 = vunpack.c.h.b16 %v2729
      %v2792 = vunpack.c.l.b16 %v2730
      %v2793 = vunpack.c.h.b16 %v2730
      %v2794 = vunpack.c.l.b16 %v2731
      %v2795 = vunpack.c.h.b16 %v2731
      %v2796 = vunpack.c.l.b16 %v2732
      %v2797 = vunpack.c.h.b16 %v2732
      %v2798 = vunpack.c.l.b16 %v2733
      %v2799 = vunpack.c.h.b16 %v2733
      %v2800 = vunpack.c.l.b16 %v2734
      %v2801 = vunpack.c.h.b16 %v2734
      %v2802 = vunpack.c.l.b16 %v2735
      %v2803 = vunpack.c.h.b16 %v2735
      %v2804 = vunpack.c.l.b16 %v2736
      %v2805 = vunpack.c.h.b16 %v2736
      %v2806 = vunpack.c.l.b16 %v2737
      %v2807 = vunpack.c.h.b16 %v2737
      %v2808 = vunpack.c.l.b16 %v2738
      %v2809 = vunpack.c.h.b16 %v2738
      %v2810 = vunpack.c.l.b16 %v2739
      %v2811 = vunpack.c.h.b16 %v2739
      %v2812 = vunpack.c.l.b16 %v2740
      %v2813 = vunpack.c.h.b16 %v2740
      %v2814 = vunpack.c.l.b16 %v2741
      %v2815 = vunpack.c.h.b16 %v2741
      %v2816 = vunpack.c.l.b16 %v2742
      %v2817 = vunpack.c.h.b16 %v2742
      %v2818 = vpack.c.b16 %v2768, %v2768
      %v2819 = vpack.c.b16 %v2769, %v2769
      %v2820 = vpack.c.b16 %v2770, %v2770
      %v2821 = vpack.c.b16 %v2771, %v2771
      %v2822 = vpack.c.b16 %v2772, %v2772
      %v2823 = vpack.c.b16 %v2773, %v2773
      %v2824 = vpack.c.b16 %v2774, %v2774
      %v2825 = vpack.c.b16 %v2775, %v2775
      %v2826 = vpack.c.b16 %v2776, %v2776
      %v2827 = vpack.c.b16 %v2777, %v2777
      %v2828 = vpack.c.b16 %v2778, %v2778
      %v2829 = vpack.c.b16 %v2779, %v2779
      %v2830 = vpack.c.b16 %v2780, %v2780
      %v2831 = vpack.c.b16 %v2781, %v2781
      %v2832 = vpack.c.b16 %v2782, %v2782
      %v2833 = vpack.c.b16 %v2783, %v2783
      %v2834 = vpack.c.b16 %v2784, %v2784
      %v2835 = vpack.c.b16 %v2785, %v2785
      %v2836 = vpack.c.b16 %v2786, %v2786
      %v2837 = vpack.c.b16 %v2787, %v2787
      %v2838 = vpack.c.b16 %v2788, %v2788
      %v2839 = vpack.c.b16 %v2789, %v2789
      %v2840 = vpack.c.b16 %v2790, %v2790
      %v2841 = vpack.c.b16 %v2791, %v2791
      %v2842 = vpack.c.b16 %v2792, %v2792
      %v2843 = vpack.c.b16 %v2793, %v2793
      %v2844 = vpack.c.b16 %v2794, %v2794
      %v2845 = vpack.c.b16 %v2795, %v2795
      %v2846 = vpack.c.b16 %v2796, %v2796
      %v2847 = vpack.c.b16 %v2797, %v2797
      %v2848 = vpack.c.b16 %v2798, %v2798
      %v2849 = vpack.c.b16 %v2799, %v2799
      %v2850 = vpack.c.b16 %v2800, %v2800
      %v2851 = vpack.c.b16 %v2801, %v2801
      %v2852 = vpack.c.b16 %v2802, %v2802
      %v2853 = vpack.c.b16 %v2803, %v2803
      %v2854 = vpack.c.b16 %v2804, %v2804
      %v2855 = vpack.c.b16 %v2805, %v2805
      %v2856 = vpack.c.b16 %v2806, %v2806
      %v2857 = vpack.c.b16 %v2807, %v2807
      %v2858 = vpack.c.b16 %v2808, %v2808
      %v2859 = vpack.c.b16 %v2809, %v2809
      %v2860 = vpack.c.b16 %v2810, %v2810
      %v2861 = vpack.c.b16 %v2811, %v2811
      %v2862 = vpack.c.b16 %v2812, %v2812
      %v2863 = vpack.c.b16 %v2813, %v2813
      %v2864 = vpack.c.b16 %v2814, %v2814
      %v2865 = vpack.c.b16 %v2815, %v2815
      %v2866 = vpack.c.b16 %v2816, %v2816
      %v2867 = vpack.c.b16 %v2817, %v2817
      %vm2918 = vcmask 257024
      %2919 = vst.msk [vmem:[%s175] sm:$0xf] %vm2918, %v2818
      %2920 = vst.msk [vmem:[%s175 + $0x4] sm:$0xf] %vm2918, %v2819
      %2921 = vst.msk [vmem:[%s175 + $0x8] sm:$0xf] %vm2918, %v2820
      %2922 = vst.msk [vmem:[%s175 + $0xc] sm:$0xf] %vm2918, %v2821
      %2923 = vst.msk [vmem:[%s175 + $0x10] sm:$0xf] %vm2918, %v2822
      %2924 = vst.msk [vmem:[%s175 + $0x14] sm:$0xf] %vm2918, %v2823
      %2925 = vst.msk [vmem:[%s175 + $0x18] sm:$0xf] %vm2918, %v2824
      %2926 = vst.msk [vmem:[%s175 + $0x1c] sm:$0xf] %vm2918, %v2825
      %2927 = vst.msk [vmem:[%s175 + $0x20] sm:$0xf] %vm2918, %v2826
      %2928 = vst.msk [vmem:[%s175 + $0x24] sm:$0xf] %vm2918, %v2827
      %2929 = vst.msk [vmem:[%s175 + $0x28] sm:$0xf] %vm2918, %v2828
      %2930 = vst.msk [vmem:[%s175 + $0x2c] sm:$0xf] %vm2918, %v2829
      %2931 = vst.msk [vmem:[%s175 + $0x30] sm:$0xf] %vm2918, %v2830
      %2932 = vst.msk [vmem:[%s175 + $0x34] sm:$0xf] %vm2918, %v2831
      %2933 = vst.msk [vmem:[%s175 + $0x38] sm:$0xf] %vm2918, %v2832
      %2934 = vst.msk [vmem:[%s175 + $0x3c] sm:$0xf] %vm2918, %v2833
      %2935 = vst.msk [vmem:[%s175 + $0x40] sm:$0xf] %vm2918, %v2834
      %2936 = vst.msk [vmem:[%s175 + $0x44] sm:$0xf] %vm2918, %v2835
      %2937 = vst.msk [vmem:[%s175 + $0x48] sm:$0xf] %vm2918, %v2836
      %2938 = vst.msk [vmem:[%s175 + $0x4c] sm:$0xf] %vm2918, %v2837
      %2939 = vst.msk [vmem:[%s175 + $0x50] sm:$0xf] %vm2918, %v2838
      %2940 = vst.msk [vmem:[%s175 + $0x54] sm:$0xf] %vm2918, %v2839
      %2941 = vst.msk [vmem:[%s175 + $0x58] sm:$0xf] %vm2918, %v2840
      %2942 = vst.msk [vmem:[%s175 + $0x5c] sm:$0xf] %vm2918, %v2841
      %2943 = vst.msk [vmem:[%s175 + $0x60] sm:$0xf] %vm2918, %v2842
      %2944 = vst.msk [vmem:[%s175 + $0x64] sm:$0xf] %vm2918, %v2843
      %2945 = vst.msk [vmem:[%s175 + $0x68] sm:$0xf] %vm2918, %v2844
      %2946 = vst.msk [vmem:[%s175 + $0x6c] sm:$0xf] %vm2918, %v2845
      %2947 = vst.msk [vmem:[%s175 + $0x70] sm:$0xf] %vm2918, %v2846
      %2948 = vst.msk [vmem:[%s175 + $0x74] sm:$0xf] %vm2918, %v2847
      %2949 = vst.msk [vmem:[%s175 + $0x78] sm:$0xf] %vm2918, %v2848
      %2950 = vst.msk [vmem:[%s175 + $0x7c] sm:$0xf] %vm2918, %v2849
      %2951 = vst.msk [vmem:[%s175 + $0x80] sm:$0xf] %vm2918, %v2850
      %2952 = vst.msk [vmem:[%s175 + $0x84] sm:$0xf] %vm2918, %v2851
      %2953 = vst.msk [vmem:[%s175 + $0x88] sm:$0xf] %vm2918, %v2852
      %2954 = vst.msk [vmem:[%s175 + $0x8c] sm:$0xf] %vm2918, %v2853
      %2955 = vst.msk [vmem:[%s175 + $0x90] sm:$0xf] %vm2918, %v2854
      %2956 = vst.msk [vmem:[%s175 + $0x94] sm:$0xf] %vm2918, %v2855
      %2957 = vst.msk [vmem:[%s175 + $0x98] sm:$0xf] %vm2918, %v2856
      %2958 = vst.msk [vmem:[%s175 + $0x9c] sm:$0xf] %vm2918, %v2857
      %2959 = vst.msk [vmem:[%s175 + $0xa0] sm:$0xf] %vm2918, %v2858
      %2960 = vst.msk [vmem:[%s175 + $0xa4] sm:$0xf] %vm2918, %v2859
      %2961 = vst.msk [vmem:[%s175 + $0xa8] sm:$0xf] %vm2918, %v2860
      %2962 = vst.msk [vmem:[%s175 + $0xac] sm:$0xf] %vm2918, %v2861
      %2963 = vst.msk [vmem:[%s175 + $0xb0] sm:$0xf] %vm2918, %v2862
      %2964 = vst.msk [vmem:[%s175 + $0xb4] sm:$0xf] %vm2918, %v2863
      %2965 = vst.msk [vmem:[%s175 + $0xb8] sm:$0xf] %vm2918, %v2864
      %2966 = vst.msk [vmem:[%s175 + $0xbc] sm:$0xf] %vm2918, %v2865
      %2967 = vst.msk [vmem:[%s175 + $0xc0] sm:$0xf] %vm2918, %v2866
      %2968 = vst.msk [vmem:[%s175 + $0xc4] sm:$0xf] %vm2918, %v2867
      %s2969 = smul.u32 50, %s14
      %p2970 = scmp.lt.s32.totalorder %s2969, 99
      %s2971 = scalar_select %p2970, %s2969, 99
      %s2972 = smul.addr %s2971, 4
      %s2973 = scalar_lea.vmem %s3, %s2972
      // Predicated region
      $region33: #{cnn_forward.6} parent=31 // pred_check
        %p2974 = pneg %p100
      $region34: #{cnn_forward.6} parent=31 // pred_check_branch
        %2976 = sbr.rel (%p2974) target = $region36
      $region35: #{cnn_forward.6} parent=31 // pred_region
        %s2977 = smul.u32 50, %s14
      $region36: #{cnn_forward.6} parent=31 // pred_fallthru
        _
    $region32: #{cnn_forward.6} parent=5 // pred_fallthru
      _
    %p2978 = scmp.le.s32.totalorder 2, %s9
    // Predicated region
    $region37: #{cnn_forward.6} parent=5 // pred_check
      %p2979 = pneg %p2978
    $region38: #{cnn_forward.6} parent=5 // pred_check_branch
      %2981 = sbr.rel (%p2979) target = $region40
    $region39: #{cnn_forward.6} parent=5 // pred_region
      %s2982 = ssub.s32 %s9, 2
      // Predicated region
      $region41: #{cnn_forward.6} parent=39 // pred_check
        %p2983 = pneg %p106
      $region42: #{cnn_forward.6} parent=39 // pred_check_branch
        %2985 = sbr.rel (%p2983) target = $region44
      $region43: #{cnn_forward.6} parent=39 // pred_region
        %s2986 = smul.u32 50, %s15
        %p2987 = scmp.lt.s32.totalorder %s2986, 99
        %s2988 = scalar_select %p2987, %s2986, 99
        %s2989 = smul.addr %s2988, 4
        %s2990 = scalar_lea.vmem %s3, %s2989
      $region44: #{cnn_forward.6} parent=39 // pred_fallthru
        _
    $region40: #{cnn_forward.6} parent=5 // pred_fallthru
      _
  $region6: #{cnn_forward.6} parent=0 // loop_footer
    %s13 = sadd.s32 1, %s9
  $region7: #{cnn_forward.6} parent=0 // loop_footer_branch
    %8 = sbr.rel target = $region3
  $region8: #{cnn_forward.6} parent=0 // loop_exit
    _

// kernel: cnn_forward.7
$region0: #{cnn_forward.7}
  #allocation0 [shape = 'u32[]', space=smem, size = 0x4, offset = 0x4, fixed_abs, tag = 'smem constant byte address 0x4 - core index']
  #allocation1 [shape = 'u32[144,128]{1,0:T(1,128)}', space=vmem, size = 0x12000, scoped, tag = 'internal scratch']
  %s0 = inlined_call_operand.vmem [shape: bf16[72,800], index: 0, kind: input, shape index: {}]
  %s1 = inlined_call_operand.vmem [shape: bf16[800,64], index: 1, kind: input, shape index: {}]
  %s2 = inlined_call_operand.vmem [shape: f32[1,64], index: 2, kind: input, shape index: {}]
  %s3 = inlined_call_operand.vmem [shape: bf16[72,64], index: 3, kind: output, shape index: {}]
  %s4 = sld [smem:[#allocation0]]
  $region89: #{cnn_forward.7} parent=0
    _
  %s6 = ssub.s32 1, %s4
  %s7 = scalar_select 0, %s6, %s4
  $region1: #{cnn_forward.7} parent=0
    #allocation2 [shape = 'u8[24576]{0}', space=vmem, size = 0x6000, scoped, tag = 'output window, operand 0']
    loop: start=0, step=1, limit=4
    $region2: #{cnn_forward.7} parent=1 // loop_pre_header
      _
    $region3: #{cnn_forward.7} parent=1 // loop_header
      %s9 = sphi 0, %s13
      %p10 = scmp.ge.s32.totalorder %s9, 4
      %s19 = sphi 0, %s21
      %s22 = sphi 0, %s19
      %s23 = sphi 0, %s22
      %s39 = sphi 0, %s23
      %s43 = sphi 0, %s43
      %s45 = sphi 0, %s43
      %s46 = sphi 0, %s45
      %s60 = sphi 0, %s46
      %s64 = sphi 0, %s64
      %s66 = sphi 0, %s64
      %s67 = sphi 0, %s66
      %s81 = sphi 0, %s67
      %s87 = sphi 0, %s89
      %s90 = sphi 0, %s87
      %s91 = sphi 0, %s90
      %s107 = sphi 0, %s91
    $region4: #{cnn_forward.7} parent=1 // loop_header_branch
      %12 = sbr.rel (%p10) target = $region8
    $region5: #{cnn_forward.7} parent=1 // loop_body
      %s14 = ssub.s32 %s9, 1
      %s15 = ssub.s32 %s9, 2
      %s16 = sadd.s32 %s9, 1
      %s17 = ssub.s32 %s9, %s16
      %p18 = scmp.eq.s32.totalorder %s17, 0
      %s20 = sadd.s32 %s19, 1
      %s21 = scalar_select %p18, %s19, %s20
      %p24 = pneg %p18
      %p25 = scmp.eq.s32.totalorder %s9, 1
      %p26 = por %p24, %p25
      %p27 = scmp.ne.s32.totalorder %s19, %s22
      %p28 = scmp.eq.s32.totalorder %s9, 0
      %p29 = por %p27, %p28
      %p30 = scmp.ne.s32.totalorder %s19, %s22
      %p31 = scmp.eq.s32.totalorder %s14, 1
      %p32 = por %p30, %p31
      %p33 = scmp.ne.s32.totalorder %s22, %s23
      %p34 = scmp.eq.s32.totalorder %s14, 0
      %p35 = por %p33, %p34
      %p36 = scmp.ne.s32.totalorder %s22, %s23
      %p37 = scmp.eq.s32.totalorder %s15, 1
      %p38 = por %p36, %p37
      %p40 = scmp.ne.s32.totalorder %s23, %s39
      %p41 = scmp.eq.s32.totalorder %s15, 0
      %p42 = por %p40, %p41
      %s44 = sadd.s32 %s43, 1
      %p47 = scmp.eq.s32.totalorder %s9, 1
      %p48 = scmp.ne.s32.totalorder %s43, %s45
      %p49 = scmp.eq.s32.totalorder %s9, 0
      %p50 = por %p48, %p49
      %p51 = scmp.ne.s32.totalorder %s43, %s45
      %p52 = scmp.eq.s32.totalorder %s14, 1
      %p53 = por %p51, %p52
      %p54 = scmp.ne.s32.totalorder %s45, %s46
      %p55 = scmp.eq.s32.totalorder %s14, 0
      %p56 = por %p54, %p55
      %p57 = scmp.ne.s32.totalorder %s45, %s46
      %p58 = scmp.eq.s32.totalorder %s15, 1
      %p59 = por %p57, %p58
      %p61 = scmp.ne.s32.totalorder %s46, %s60
      %p62 = scmp.eq.s32.totalorder %s15, 0
      %p63 = por %p61, %p62
      %s65 = sadd.s32 %s64, 1
      %p68 = scmp.eq.s32.totalorder %s9, 1
      %p69 = scmp.ne.s32.totalorder %s64, %s66
      %p70 = scmp.eq.s32.totalorder %s9, 0
      %p71 = por %p69, %p70
      %p72 = scmp.ne.s32.totalorder %s64, %s66
      %p73 = scmp.eq.s32.totalorder %s14, 1
      %p74 = por %p72, %p73
      %p75 = scmp.ne.s32.totalorder %s66, %s67
      %p76 = scmp.eq.s32.totalorder %s14, 0
      %p77 = por %p75, %p76
      %p78 = scmp.ne.s32.totalorder %s66, %s67
      %p79 = scmp.eq.s32.totalorder %s15, 1
      %p80 = por %p78, %p79
      %p82 = scmp.ne.s32.totalorder %s67, %s81
      %p83 = scmp.eq.s32.totalorder %s15, 0
      %p84 = por %p82, %p83
      %s85 = ssub.s32 %s9, %s16
      %p86 = scmp.eq.s32.totalorder %s85, 0
      %s88 = sadd.s32 %s87, 1
      %s89 = scalar_select %p86, %s87, %s88
      %p92 = pneg %p86
      %p93 = scmp.eq.s32.totalorder %s9, 1
      %p94 = por %p92, %p93
      %p95 = scmp.ne.s32.totalorder %s87, %s90
      %p96 = scmp.eq.s32.totalorder %s9, 0
      %p97 = por %p95, %p96
      %p98 = scmp.ne.s32.totalorder %s87, %s90
      %p99 = scmp.eq.s32.totalorder %s14, 1
      %p100 = por %p98, %p99
      %p101 = scmp.ne.s32.totalorder %s90, %s91
      %p102 = scmp.eq.s32.totalorder %s14, 0
      %p103 = por %p101, %p102
      %p104 = scmp.ne.s32.totalorder %s90, %s91
      %p105 = scmp.eq.s32.totalorder %s15, 1
      %p106 = por %p104, %p105
      %p108 = scmp.ne.s32.totalorder %s91, %s107
      %p109 = scmp.eq.s32.totalorder %s15, 0
      %p110 = por %p108, %p109
      %p111 = scmp.le.s32.totalorder 1, %s9
      %p112 = scmp.lt.s32.totalorder %s9, 3
      %p113 = pnand %p111, %p112
      %p114 = pneg %p113
      // Predicated region
      $region9: #{cnn_forward.7} parent=5 // pred_check
        _
      $region10: #{cnn_forward.7} parent=5 // pred_check_branch
        %116 = sbr.rel (%p113) target = $region12
      $region11: #{cnn_forward.7} parent=5 // pred_region
        %s117 = ssub.s32 %s9, 1
        // Predicated region
        $region13: #{cnn_forward.7} parent=11 // pred_check
          %p118 = pneg %p56
        $region14: #{cnn_forward.7} parent=11 // pred_check_branch
          %120 = sbr.rel (%p118) target = $region16
        $region15: #{cnn_forward.7} parent=11 // pred_region
          _
        $region16: #{cnn_forward.7} parent=11 // pred_fallthru
          _
        // Predicated region
        $region17: #{cnn_forward.7} parent=11 // pred_check
          %p121 = pneg %p77
        $region18: #{cnn_forward.7} parent=11 // pred_check_branch
          %123 = sbr.rel (%p121) target = $region20
        $region19: #{cnn_forward.7} parent=11 // pred_region
          _
        $region20: #{cnn_forward.7} parent=11 // pred_fallthru
          _
      $region12: #{cnn_forward.7} parent=5 // pred_fallthru
        _
      %p124 = scmp.lt.s32.totalorder %s9, 2
      // Predicated region
      $region21: #{cnn_forward.7} parent=5 // pred_check
        %p125 = pneg %p124
      $region22: #{cnn_forward.7} parent=5 // pred_check_branch
        %127 = sbr.rel (%p125) target = $region24
      $region23: #{cnn_forward.7} parent=5 // pred_region
        // Predicated region
        $region25: #{cnn_forward.7} parent=23 // pred_check
          %p128 = pneg %p29
        $region26: #{cnn_forward.7} parent=23 // pred_check_branch
          %130 = sbr.rel (%p128) target = $region28
        $region27: #{cnn_forward.7} parent=23 // pred_region
          %s131 = smul.u32 6, %s9
          %s132 = ssub.s32 9, %s131
          %p133 = scmp.lt.s32.totalorder %s132, 6
          %s134 = scalar_select %p133, %s132, 6
          %s135 = smul.u32 64, %s134
          %s136 = smul.u32 %s135, 7
          %p137 = scmp.lt.s32.totalorder %s131, 8
          %s138 = scalar_select %p137, %s131, 8
          %s139 = smul.addr %s138, 7
          %s140 = smul.addr %s139, 4
          %s141 = scalar_lea.vmem %s0, %s140
          %s142 = smul.u32 6, %s9
          %s143 = ssub.s32 9, %s142
          %p144 = scmp.lt.s32.totalorder %s143, 6
          %s145 = scalar_select %p144, %s143, 6
          %s146 = smul.u32 64, %s145
          %s147 = smul.u32 %s146, 7
        $region28: #{cnn_forward.7} parent=23 // pred_fallthru
          _
      $region24: #{cnn_forward.7} parent=5 // pred_fallthru
        _
      %p148 = scmp.le.s32.totalorder 1, %s9
      %p149 = scmp.lt.s32.totalorder %s9, 3
      %p150 = pnand %p148, %p149
      %p151 = pneg %p150
      // Predicated region
      $region29: #{cnn_forward.7} parent=5 // pred_check
        _
      $region30: #{cnn_forward.7} parent=5 // pred_check_branch
        %153 = sbr.rel (%p150) target = $region32
      $region31: #{cnn_forward.7} parent=5 // pred_region
        %s154 = ssub.s32 %s9, 1
        %s155 = smul.u32 6, %s14
        %s156 = ssub.s32 9, %s155
        %p157 = scmp.lt.s32.totalorder %s156, 6
        %s158 = scalar_select %p157, %s156, 6
        %s159 = smul.u32 64, %s158
        %s160 = smul.u32 %s159, 7
        %p161 = scmp.lt.s32.totalorder %s155, 8
        %s162 = scalar_select %p161, %s155, 8
        %s163 = smul.addr %s162, 7
        %s164 = smul.addr %s163, 4
        %s165 = scalar_lea.vmem %s0, %s164
        %p166 = pneg %p35
        %p167 = pneg %p32
        %p168 = pneg %p56
        %p169 = pneg %p53
        %p170 = pneg %p77
        %p171 = pneg %p74
        %p172 = pneg %p103
        %p173 = pneg %p100
        %s174 = sand.u32 %s90, 1
        %s175 = sand.u32 %s90, 1
        %s176 = smul.addr %s175, 24
        %s177 = scalar_lea.vmem [#allocation2], %s176
        %s178 = smul.u32 6, %s14
        %s179 = ssub.s32 9, %s178
        %p180 = scmp.lt.s32.totalorder %s179, 6
        %s181 = scalar_select %p180, %s179, 6
        %s182 = smul.u32 64, %s181
        %s183 = smul.u32 %s182, 7
        %p184 = scmp.lt.s32.totalorder %s178, 8
        %s185 = scalar_select %p184, %s178, 8
        %s186 = smul.addr %s185, 7
        %s187 = smul.addr %s186, 4
        %s188 = scalar_lea.vmem %s0, %s187
        %s189 = smul.u32 6, %s14
        %s190 = ssub.s32 9, %s189
        %p191 = scmp.lt.s32.totalorder %s190, 6
        %s192 = scalar_select %p191, %s190, 6
        %s193 = smul.u32 64, %s192
        %s194 = smul.u32 %s193, 7
        %s195 = smul.u32 6, %s14
        %s196 = ssub.s32 9, %s195
        %p197 = scmp.lt.s32.totalorder %s196, 6
        %s198 = scalar_select %p197, %s196, 6
        %s199 = smul.u32 64, %s198
        %v201 = vld [vmem:[%s188] sm:$0xff]
        %v202 = vld [vmem:[%s188 + $0x8] sm:$0xff]
        %v203 = vld [vmem:[%s188 + $0x10] sm:$0xff]
        %v204 = vld [vmem:[%s188 + $0x18] sm:$0xf]
        %v205 = vld [vmem:[%s188 + $0x1c] sm:$0xff]
        %v206 = vld [vmem:[%s188 + $0x24] sm:$0xff]
        %v207 = vld [vmem:[%s188 + $0x2c] sm:$0xff]
        %v208 = vld [vmem:[%s188 + $0x34] sm:$0xf]
        %v209 = vld [vmem:[%s188 + $0x38] sm:$0xff]
        %v210 = vld [vmem:[%s188 + $0x40] sm:$0xff]
        %v211 = vld [vmem:[%s188 + $0x48] sm:$0xff]
        %v212 = vld [vmem:[%s188 + $0x50] sm:$0xf]
        %v213 = vld [vmem:[%s188 + $0x54] sm:$0xff]
        %v214 = vld [vmem:[%s188 + $0x5c] sm:$0xff]
        %v215 = vld [vmem:[%s188 + $0x64] sm:$0xff]
        %v216 = vld [vmem:[%s188 + $0x6c] sm:$0xf]
        %v217 = vld [vmem:[%s188 + $0x70] sm:$0xff]
        %v218 = vld [vmem:[%s188 + $0x78] sm:$0xff]
        %v219 = vld [vmem:[%s188 + $0x80] sm:$0xff]
        %v220 = vld [vmem:[%s188 + $0x88] sm:$0xf]
        %v221 = vld [vmem:[%s188 + $0x8c] sm:$0xff]
        %v222 = vld [vmem:[%s188 + $0x94] sm:$0xff]
        %v223 = vld [vmem:[%s188 + $0x9c] sm:$0xff]
        %v224 = vld [vmem:[%s188 + $0xa4] sm:$0xf]
        %v225 = vld [vmem:[%s1] sm:$0xf]
        %v226 = vld [vmem:[%s1 + $0x4] sm:$0xf]
        %v227 = vld [vmem:[%s1 + $0x8] sm:$0xf]
        %v228 = vld [vmem:[%s1 + $0xc] sm:$0xf]
        %v229 = vld [vmem:[%s1 + $0x10] sm:$0xf]
        %v230 = vld [vmem:[%s1 + $0x14] sm:$0xf]
        %v231 = vld [vmem:[%s1 + $0x18] sm:$0xf]
        %v232 = vld [vmem:[%s1 + $0x1c] sm:$0xf]
        %v233 = vld [vmem:[%s1 + $0x20] sm:$0xf]
        %v234 = vld [vmem:[%s1 + $0x24] sm:$0xf]
        %v235 = vld [vmem:[%s1 + $0x28] sm:$0xf]
        %v236 = vld [vmem:[%s1 + $0x2c] sm:$0xf]
        %v237 = vld [vmem:[%s1 + $0x30] sm:$0xf]
        %v238 = vld [vmem:[%s1 + $0x34] sm:$0xf]
        %v239 = vld [vmem:[%s1 + $0x38] sm:$0xf]
        %v240 = vld [vmem:[%s1 + $0x3c] sm:$0xf]
        %v241 = vld [vmem:[%s1 + $0x40] sm:$0xf]
        %v242 = vld [vmem:[%s1 + $0x44] sm:$0xf]
        %v243 = vld [vmem:[%s1 + $0x48] sm:$0xf]
        %v244 = vld [vmem:[%s1 + $0x4c] sm:$0xf]
        %v245 = vld [vmem:[%s1 + $0x50] sm:$0xf]
        %v246 = vld [vmem:[%s1 + $0x54] sm:$0xf]
        %v247 = vld [vmem:[%s1 + $0x58] sm:$0xf]
        %v248 = vld [vmem:[%s1 + $0x5c] sm:$0xf]
        %v249 = vld [vmem:[%s1 + $0x60] sm:$0xf]
        %v250 = vld [vmem:[%s1 + $0x64] sm:$0xf]
        %v251 = vld [vmem:[%s1 + $0x68] sm:$0xf]
        %v252 = vld [vmem:[%s1 + $0x6c] sm:$0xf]
        %v253 = vld [vmem:[%s1 + $0x70] sm:$0xf]
        %v254 = vld [vmem:[%s1 + $0x74] sm:$0xf]
        %v255 = vld [vmem:[%s1 + $0x78] sm:$0xf]
        %v256 = vld [vmem:[%s1 + $0x7c] sm:$0xf]
        %v257 = vld [vmem:[%s1 + $0x80] sm:$0xf]
        %v258 = vld [vmem:[%s1 + $0x84] sm:$0xf]
        %v259 = vld [vmem:[%s1 + $0x88] sm:$0xf]
        %v260 = vld [vmem:[%s1 + $0x8c] sm:$0xf]
        %v261 = vld [vmem:[%s1 + $0x90] sm:$0xf]
        %v262 = vld [vmem:[%s1 + $0x94] sm:$0xf]
        %v263 = vld [vmem:[%s1 + $0x98] sm:$0xf]
        %v264 = vld [vmem:[%s1 + $0x9c] sm:$0xf]
        %v265 = vld [vmem:[%s1 + $0xa0] sm:$0xf]
        %v266 = vld [vmem:[%s1 + $0xa4] sm:$0xf]
        %v267 = vld [vmem:[%s1 + $0xa8] sm:$0xf]
        %v268 = vld [vmem:[%s1 + $0xac] sm:$0xf]
        %v269 = vld [vmem:[%s1 + $0xb0] sm:$0xf]
        %v270 = vld [vmem:[%s1 + $0xb4] sm:$0xf]
        %v271 = vld [vmem:[%s1 + $0xb8] sm:$0xf]
        %v272 = vld [vmem:[%s1 + $0xbc] sm:$0xf]
        %v273 = vld [vmem:[%s1 + $0xc0] sm:$0xf]
        %v274 = vld [vmem:[%s1 + $0xc4] sm:$0xf]
        %v275 = vld [vmem:[%s1 + $0xc8] sm:$0xf]
        %v276 = vld [vmem:[%s1 + $0xcc] sm:$0xf]
        %v277 = vld [vmem:[%s1 + $0xd0] sm:$0xf]
        %v278 = vld [vmem:[%s1 + $0xd4] sm:$0xf]
        %v279 = vld [vmem:[%s1 + $0xd8] sm:$0xf]
        %v280 = vld [vmem:[%s1 + $0xdc] sm:$0xf]
        %v281 = vld [vmem:[%s1 + $0xe0] sm:$0xf]
        %v282 = vld [vmem:[%s1 + $0xe4] sm:$0xf]
        %v283 = vld [vmem:[%s1 + $0xe8] sm:$0xf]
        %v284 = vld [vmem:[%s1 + $0xec] sm:$0xf]
        %v285 = vld [vmem:[%s1 + $0xf0] sm:$0xf]
        %v286 = vld [vmem:[%s1 + $0xf4] sm:$0xf]
        %v287 = vld [vmem:[%s1 + $0xf8] sm:$0xf]
        %v288 = vld [vmem:[%s1 + $0xfc] sm:$0xf]
        %v289 = vld [vmem:[%s1 + $0x100] sm:$0xf]
        %v290 = vld [vmem:[%s1 + $0x104] sm:$0xf]
        %v291 = vld [vmem:[%s1 + $0x108] sm:$0xf]
        %v292 = vld [vmem:[%s1 + $0x10c] sm:$0xf]
        %v293 = vld [vmem:[%s1 + $0x110] sm:$0xf]
        %v294 = vld [vmem:[%s1 + $0x114] sm:$0xf]
        %v295 = vld [vmem:[%s1 + $0x118] sm:$0xf]
        %v296 = vld [vmem:[%s1 + $0x11c] sm:$0xf]
        %v297 = vld [vmem:[%s1 + $0x120] sm:$0xf]
        %v298 = vld [vmem:[%s1 + $0x124] sm:$0xf]
        %v299 = vld [vmem:[%s1 + $0x128] sm:$0xf]
        %v300 = vld [vmem:[%s1 + $0x12c] sm:$0xf]
        %v301 = vld [vmem:[%s1 + $0x130] sm:$0xf]
        %v302 = vld [vmem:[%s1 + $0x134] sm:$0xf]
        %v303 = vld [vmem:[%s1 + $0x138] sm:$0xf]
        %v304 = vld [vmem:[%s1 + $0x13c] sm:$0xf]
        %v305 = vld [vmem:[%s1 + $0x140] sm:$0xf]
        %v306 = vld [vmem:[%s1 + $0x144] sm:$0xf]
        %v307 = vld [vmem:[%s1 + $0x148] sm:$0xf]
        %v308 = vld [vmem:[%s1 + $0x14c] sm:$0xf]
        %v309 = vld [vmem:[%s1 + $0x150] sm:$0xf]
        %v310 = vld [vmem:[%s1 + $0x154] sm:$0xf]
        %v311 = vld [vmem:[%s1 + $0x158] sm:$0xf]
        %v312 = vld [vmem:[%s1 + $0x15c] sm:$0xf]
        %v313 = vld [vmem:[%s1 + $0x160] sm:$0xf]
        %v314 = vld [vmem:[%s1 + $0x164] sm:$0xf]
        %v315 = vld [vmem:[%s1 + $0x168] sm:$0xf]
        %v316 = vld [vmem:[%s1 + $0x16c] sm:$0xf]
        %v317 = vld [vmem:[%s1 + $0x170] sm:$0xf]
        %v318 = vld [vmem:[%s1 + $0x174] sm:$0xf]
        %v319 = vld [vmem:[%s1 + $0x178] sm:$0xf]
        %v320 = vld [vmem:[%s1 + $0x17c] sm:$0xf]
        %v321 = vld [vmem:[%s1 + $0x180] sm:$0xf]
        %v322 = vld [vmem:[%s1 + $0x184] sm:$0xf]
        %v323 = vld [vmem:[%s1 + $0x188] sm:$0xf]
        %v324 = vld [vmem:[%s1 + $0x18c] sm:$0xf]
        %v325 = vld [vmem:[%s2] sm:$0x1]
        %v327 = vlaneseq
        %v328 = vshrl.u32 %v327, 7
        %v329 = vsub.s32 0, %v328
        %v330 = vrot.slane %v325, %v329
        %v356 = vunpack.c.l.b16 %v201
        %v357 = vunpack.c.h.b16 %v201
        %v358 = vunpack.c.l.b16 %v202
        %v359 = vunpack.c.h.b16 %v202
        %v360 = vunpack.c.l.b16 %v203
        %v361 = vunpack.c.h.b16 %v203
        %v362 = vunpack.c.l.b16 %v204
        %v363 = vunpack.c.l.b16 %v205
        %v364 = vunpack.c.h.b16 %v205
        %v365 = vunpack.c.l.b16 %v206
        %v366 = vunpack.c.h.b16 %v206
        %v367 = vunpack.c.l.b16 %v207
        %v368 = vunpack.c.h.b16 %v207
        %v369 = vunpack.c.l.b16 %v208
        %v370 = vunpack.c.l.b16 %v209
        %v371 = vunpack.c.h.b16 %v209
        %v372 = vunpack.c.l.b16 %v210
        %v373 = vunpack.c.h.b16 %v210
        %v374 = vunpack.c.l.b16 %v211
        %v375 = vunpack.c.h.b16 %v211
        %v376 = vunpack.c.l.b16 %v212
        %v377 = vunpack.c.l.b16 %v213
        %v378 = vunpack.c.h.b16 %v213
        %v379 = vunpack.c.l.b16 %v214
        %v380 = vunpack.c.h.b16 %v214
        %v381 = vunpack.c.l.b16 %v215
        %v382 = vunpack.c.h.b16 %v215
        %v383 = vunpack.c.l.b16 %v216
        %v384 = vunpack.c.l.b16 %v217
        %v385 = vunpack.c.h.b16 %v217
        %v386 = vunpack.c.l.b16 %v218
        %v387 = vunpack.c.h.b16 %v218
        %v388 = vunpack.c.l.b16 %v219
        %v389 = vunpack.c.h.b16 %v219
        %v390 = vunpack.c.l.b16 %v220
        %v391 = vunpack.c.l.b16 %v221
        %v392 = vunpack.c.h.b16 %v221
        %v393 = vunpack.c.l.b16 %v222
        %v394 = vunpack.c.h.b16 %v222
        %v395 = vunpack.c.l.b16 %v223
        %v396 = vunpack.c.h.b16 %v223
        %v397 = vunpack.c.l.b16 %v224
        %v398 = vpack.c.b16 %v363, %v356
        %v399 = vpack.c.b16 %v364, %v357
        %v400 = vpack.c.b16 %v365, %v358
        %v401 = vpack.c.b16 %v366, %v359
        %v402 = vpack.c.b16 %v367, %v360
        %v403 = vpack.c.b16 %v368, %v361
        %v404 = vpack.c.b16 %v369, %v362
        %v405 = vpack.c.b16 %v377, %v370
        %v406 = vpack.c.b16 %v378, %v371
        %v407 = vpack.c.b16 %v379, %v372
        %v408 = vpack.c.b16 %v380, %v373
        %v409 = vpack.c.b16 %v381, %v374
        %v410 = vpack.c.b16 %v382, %v375
        %v411 = vpack.c.b16 %v383, %v376
        %v412 = vpack.c.b16 %v391, %v384
        %v413 = vpack.c.b16 %v392, %v385
        %v414 = vpack.c.b16 %v393, %v386
        %v415 = vpack.c.b16 %v394, %v387
        %v416 = vpack.c.b16 %v395, %v388
        %v417 = vpack.c.b16 %v396, %v389
        %v418 = vpack.c.b16 %v397, %v390
        %v537 = vunpack.c.l.b16 %v225
        %v538 = vunpack.c.l.b16 %v226
        %v539 = vunpack.c.l.b16 %v227
        %v540 = vunpack.c.l.b16 %v228
        %v541 = vunpack.c.l.b16 %v229
        %v542 = vunpack.c.l.b16 %v230
        %v543 = vunpack.c.l.b16 %v231
        %v544 = vunpack.c.l.b16 %v232
        %v545 = vunpack.c.l.b16 %v233
        %v546 = vunpack.c.l.b16 %v234
        %v547 = vunpack.c.l.b16 %v235
        %v548 = vunpack.c.l.b16 %v236
        %v549 = vunpack.c.l.b16 %v237
        %v550 = vunpack.c.l.b16 %v238
        %v551 = vunpack.c.l.b16 %v239
        %v552 = vunpack.c.l.b16 %v240
        %v553 = vunpack.c.l.b16 %v241
        %v554 = vunpack.c.l.b16 %v242
        %v555 = vunpack.c.l.b16 %v243
        %v556 = vunpack.c.l.b16 %v244
        %v557 = vunpack.c.l.b16 %v245
        %v558 = vunpack.c.l.b16 %v246
        %v559 = vunpack.c.l.b16 %v247
        %v560 = vunpack.c.l.b16 %v248
        %v561 = vunpack.c.l.b16 %v249
        %v562 = vunpack.c.l.b16 %v250
        %v563 = vunpack.c.l.b16 %v251
        %v564 = vunpack.c.l.b16 %v252
        %v565 = vunpack.c.l.b16 %v253
        %v566 = vunpack.c.l.b16 %v254
        %v567 = vunpack.c.l.b16 %v255
        %v568 = vunpack.c.l.b16 %v256
        %v569 = vunpack.c.l.b16 %v257
        %v570 = vunpack.c.l.b16 %v258
        %v571 = vunpack.c.l.b16 %v259
        %v572 = vunpack.c.l.b16 %v260
        %v573 = vunpack.c.l.b16 %v261
        %v574 = vunpack.c.l.b16 %v262
        %v575 = vunpack.c.l.b16 %v263
        %v576 = vunpack.c.l.b16 %v264
        %v577 = vunpack.c.l.b16 %v265
        %v578 = vunpack.c.l.b16 %v266
        %v579 = vunpack.c.l.b16 %v267
        %v580 = vunpack.c.l.b16 %v268
        %v581 = vunpack.c.l.b16 %v269
        %v582 = vunpack.c.l.b16 %v270
        %v583 = vunpack.c.l.b16 %v271
        %v584 = vunpack.c.l.b16 %v272
        %v585 = vunpack.c.l.b16 %v273
        %v586 = vunpack.c.l.b16 %v274
        %v587 = vunpack.c.l.b16 %v275
        %v588 = vunpack.c.l.b16 %v276
        %v589 = vunpack.c.l.b16 %v277
        %v590 = vunpack.c.l.b16 %v278
        %v591 = vunpack.c.l.b16 %v279
        %v592 = vunpack.c.l.b16 %v280
        %v593 = vunpack.c.l.b16 %v281
        %v594 = vunpack.c.l.b16 %v282
        %v595 = vunpack.c.l.b16 %v283
        %v596 = vunpack.c.l.b16 %v284
        %v597 = vunpack.c.l.b16 %v285
        %v598 = vunpack.c.l.b16 %v286
        %v599 = vunpack.c.l.b16 %v287
        %v600 = vunpack.c.l.b16 %v288
        %v601 = vunpack.c.l.b16 %v289
        %v602 = vunpack.c.l.b16 %v290
        %v603 = vunpack.c.l.b16 %v291
        %v604 = vunpack.c.l.b16 %v292
        %v605 = vunpack.c.l.b16 %v293
        %v606 = vunpack.c.l.b16 %v294
        %v607 = vunpack.c.l.b16 %v295
        %v608 = vunpack.c.l.b16 %v296
        %v609 = vunpack.c.l.b16 %v297
        %v610 = vunpack.c.l.b16 %v298
        %v611 = vunpack.c.l.b16 %v299
        %v612 = vunpack.c.l.b16 %v300
        %v613 = vunpack.c.l.b16 %v301
        %v614 = vunpack.c.l.b16 %v302
        %v615 = vunpack.c.l.b16 %v303
        %v616 = vunpack.c.l.b16 %v304
        %v617 = vunpack.c.l.b16 %v305
        %v618 = vunpack.c.l.b16 %v306
        %v619 = vunpack.c.l.b16 %v307
        %v620 = vunpack.c.l.b16 %v308
        %v621 = vunpack.c.l.b16 %v309
        %v622 = vunpack.c.l.b16 %v310
        %v623 = vunpack.c.l.b16 %v311
        %v624 = vunpack.c.l.b16 %v312
        %v625 = vunpack.c.l.b16 %v313
        %v626 = vunpack.c.l.b16 %v314
        %v627 = vunpack.c.l.b16 %v315
        %v628 = vunpack.c.l.b16 %v316
        %v629 = vunpack.c.l.b16 %v317
        %v630 = vunpack.c.l.b16 %v318
        %v631 = vunpack.c.l.b16 %v319
        %v632 = vunpack.c.l.b16 %v320
        %v633 = vunpack.c.l.b16 %v321
        %v634 = vunpack.c.l.b16 %v322
        %v635 = vunpack.c.l.b16 %v323
        %v636 = vunpack.c.l.b16 %v324
        %v637 = vpack.c.b16 %v538, %v537
        %v638 = vpack.c.b16 %v540, %v539
        %v639 = vpack.c.b16 %v542, %v541
        %v640 = vpack.c.b16 %v544, %v543
        %v641 = vpack.c.b16 %v546, %v545
        %v642 = vpack.c.b16 %v548, %v547
        %v643 = vpack.c.b16 %v550, %v549
        %v644 = vpack.c.b16 %v552, %v551
        %v645 = vpack.c.b16 %v554, %v553
        %v646 = vpack.c.b16 %v556, %v555
        %v647 = vpack.c.b16 %v558, %v557
        %v648 = vpack.c.b16 %v560, %v559
        %v649 = vpack.c.b16 %v562, %v561
        %v650 = vpack.c.b16 %v564, %v563
        %v651 = vpack.c.b16 %v566, %v565
        %v652 = vpack.c.b16 %v568, %v567
        %v653 = vpack.c.b16 %v570, %v569
        %v654 = vpack.c.b16 %v572, %v571
        %v655 = vpack.c.b16 %v574, %v573
        %v656 = vpack.c.b16 %v576, %v575
        %v657 = vpack.c.b16 %v578, %v577
        %v658 = vpack.c.b16 %v580, %v579
        %v659 = vpack.c.b16 %v582, %v581
        %v660 = vpack.c.b16 %v584, %v583
        %v661 = vpack.c.b16 %v586, %v585
        %v662 = vpack.c.b16 %v588, %v587
        %v663 = vpack.c.b16 %v590, %v589
        %v664 = vpack.c.b16 %v592, %v591
        %v665 = vpack.c.b16 %v594, %v593
        %v666 = vpack.c.b16 %v596, %v595
        %v667 = vpack.c.b16 %v598, %v597
        %v668 = vpack.c.b16 %v600, %v599
        %v669 = vpack.c.b16 %v602, %v601
        %v670 = vpack.c.b16 %v604, %v603
        %v671 = vpack.c.b16 %v606, %v605
        %v672 = vpack.c.b16 %v608, %v607
        %v673 = vpack.c.b16 %v610, %v609
        %v674 = vpack.c.b16 %v612, %v611
        %v675 = vpack.c.b16 %v614, %v613
        %v676 = vpack.c.b16 %v616, %v615
        %v677 = vpack.c.b16 %v618, %v617
        %v678 = vpack.c.b16 %v620, %v619
        %v679 = vpack.c.b16 %v622, %v621
        %v680 = vpack.c.b16 %v624, %v623
        %v681 = vpack.c.b16 %v626, %v625
        %v682 = vpack.c.b16 %v628, %v627
        %v683 = vpack.c.b16 %v630, %v629
        %v684 = vpack.c.b16 %v632, %v631
        %v685 = vpack.c.b16 %v634, %v633
        %v686 = vpack.c.b16 %v636, %v635
        %vm737 = vcmask 261120
        %v739 = vsel %vm737, %v404, 0
        %v742 = vsel %vm737, %v411, 0
        %v745 = vsel %vm737, %v418, 0
        %747 = vmatprep.subr.bf16.mxu0 0
        %748 = vmatpush1.bf16.msra.mxu0 %v637
        %749 = vmatprep.subr.bf16.mxu0 0
        %750 = vmatpush1.bf16.msra.mxu0 %v638
        %751 = vmatprep.subr.bf16.mxu0 0
        %752 = vmatpush1.bf16.msra.mxu0 %v639
        %753 = vmatprep.subr.bf16.mxu0 0
        %754 = vmatpush1.bf16.msra.mxu0 %v640
        %755 = vmatprep.subr.bf16.mxu0 0
        %756 = vmatpush1.bf16.msra.mxu0 %v641
        %757 = vmatprep.subr.bf16.mxu0 0
        %758 = vmatpush1.bf16.msra.mxu0 %v642
        %759 = vmatprep.subr.bf16.mxu0 0
        %760 = vmatpush1.bf16.msra.mxu0 %v643
        %761 = vmatprep.subr.bf16.mxu0 0
        %762 = vmatpush1.bf16.msra.mxu0 %v644
        %763 = vmatprep.subr.bf16.mxu0 0
        %764 = vmatpush1.bf16.msra.mxu0 %v645
        %765 = vmatprep.subr.bf16.mxu0 0
        %766 = vmatpush1.bf16.msra.mxu0 %v646
        %767 = vmatprep.subr.bf16.mxu0 0
        %768 = vmatpush1.bf16.msra.mxu0 %v647
        %769 = vmatprep.subr.bf16.mxu0 0
        %770 = vmatpush1.bf16.msra.mxu0 %v648
        %771 = vmatprep.subr.bf16.mxu0 0
        %772 = vmatpush1.bf16.msra.mxu0 %v649
        %773 = vmatprep.subr.bf16.mxu0 0
        %774 = vmatpush1.bf16.msra.mxu0 %v650
        %775 = vmatprep.subr.bf16.mxu0 0
        %776 = vmatpush1.bf16.msra.mxu0 %v651
        %777 = vmatprep.subr.bf16.mxu0 0
        %778 = vmatpush1.bf16.msra.mxu0 %v652
        %779 = vmatprep.mubr.bf16.mxu0 %v399
        %780 = vmatmul.mubr.bf16.gmra.mrb[0].mxu0 %v398
        %v781 = vpop.f32.mrb[0].mxu0
        %v782 = vadd.f32 %v330, %v781
        %v783 = vpop.f32.mrb[0].mxu0
        %v784 = vpop.f32.mrb[0].mxu0
        %v785 = vadd.f32 %v330, %v784
        %v786 = vpop.f32.mrb[0].mxu0
        %787 = vmatprep.mubr.bf16.mxu0 %v406
        %788 = vmatmul.mubr.bf16.gmra.mrb[0].mxu0 %v405
        %v789 = vpop.f32.mrb[0].mxu0
        %v790 = vadd.f32 %v330, %v789
        %v791 = vpop.f32.mrb[0].mxu0
        %v792 = vpop.f32.mrb[0].mxu0
        %v793 = vadd.f32 %v330, %v792
        %v794 = vpop.f32.mrb[0].mxu0
        %795 = vmatprep.mubr.bf16.mxu0 %v413
        %796 = vmatmul.mubr.bf16.gmra.mrb[0].mxu0 %v412
        %v797 = vpop.f32.mrb[0].mxu0
        %v798 = vadd.f32 %v330, %v797
        %v799 = vpop.f32.mrb[0].mxu0
        %v800 = vpop.f32.mrb[0].mxu0
        %v801 = vadd.f32 %v330, %v800
        %v802 = vpop.f32.mrb[0].mxu0
        %803 = vdwg.mxu0
        %804 = vmatprep.subr.bf16.mxu0 0
        %805 = vmatpush1.bf16.msra.mxu0 %v653
        %806 = vmatprep.subr.bf16.mxu0 0
        %807 = vmatpush1.bf16.msra.mxu0 %v654
        %808 = vmatprep.subr.bf16.mxu0 0
        %809 = vmatpush1.bf16.msra.mxu0 %v655
        %810 = vmatprep.subr.bf16.mxu0 0
        %811 = vmatpush1.bf16.msra.mxu0 %v656
        %812 = vmatprep.subr.bf16.mxu0 0
        %813 = vmatpush1.bf16.msra.mxu0 %v657
        %814 = vmatprep.subr.bf16.mxu0 0
        %815 = vmatpush1.bf16.msra.mxu0 %v658
        %816 = vmatprep.subr.bf16.mxu0 0
        %817 = vmatpush1.bf16.msra.mxu0 %v659
        %818 = vmatprep.subr.bf16.mxu0 0
        %819 = vmatpush1.bf16.msra.mxu0 %v660
        %820 = vmatprep.subr.bf16.mxu0 0
        %821 = vmatpush1.bf16.msra.mxu0 %v661
        %822 = vmatprep.subr.bf16.mxu0 0
        %823 = vmatpush1.bf16.msra.mxu0 %v662
        %824 = vmatprep.subr.bf16.mxu0 0
        %825 = vmatpush1.bf16.msra.mxu0 %v663
        %826 = vmatprep.subr.bf16.mxu0 0
        %827 = vmatpush1.bf16.msra.mxu0 %v664
        %828 = vmatprep.subr.bf16.mxu0 0
        %829 = vmatpush1.bf16.msra.mxu0 %v665
        %830 = vmatprep.subr.bf16.mxu0 0
        %831 = vmatpush1.bf16.msra.mxu0 %v666
        %832 = vmatprep.subr.bf16.mxu0 0
        %833 = vmatpush1.bf16.msra.mxu0 %v667
        %834 = vmatprep.subr.bf16.mxu0 0
        %835 = vmatpush1.bf16.msra.mxu0 %v668
        %836 = vmatprep.mubr.bf16.mxu0 %v401
        %837 = vmatmul.mubr.bf16.gmra.mrb[0].mxu0 %v400
        %v838 = vpop.f32.mrb[0].mxu0
        %v839 = vadd.f32 %v782, %v838
        %v840 = vpop.f32.mrb[0].mxu0
        %v841 = vpop.f32.mrb[0].mxu0
        %v842 = vadd.f32 %v785, %v841
        %v843 = vpop.f32.mrb[0].mxu0
        %844 = vmatprep.mubr.bf16.mxu0 %v408
        %845 = vmatmul.mubr.bf16.gmra.mrb[0].mxu0 %v407
        %v846 = vpop.f32.mrb[0].mxu0
        %v847 = vadd.f32 %v790, %v846
        %v848 = vpop.f32.mrb[0].mxu0
        %v849 = vpop.f32.mrb[0].mxu0
        %v850 = vadd.f32 %v793, %v849
        %v851 = vpop.f32.mrb[0].mxu0
        %852 = vmatprep.mubr.bf16.mxu0 %v415
        %853 = vmatmul.mubr.bf16.gmra.mrb[0].mxu0 %v414
        %v854 = vpop.f32.mrb[0].mxu0
        %v855 = vadd.f32 %v798, %v854
        %v856 = vpop.f32.mrb[0].mxu0
        %v857 = vpop.f32.mrb[0].mxu0
        %v858 = vadd.f32 %v801, %v857
        %v859 = vpop.f32.mrb[0].mxu0
        %860 = vdwg.mxu0
        %861 = vmatprep.subr.bf16.mxu0 0
        %862 = vmatpush1.bf16.msra.mxu0 %v669
        %863 = vmatprep.subr.bf16.mxu0 0
        %864 = vmatpush1.bf16.msra.mxu0 %v670
        %865 = vmatprep.subr.bf16.mxu0 0
        %866 = vmatpush1.bf16.msra.mxu0 %v671
        %867 = vmatprep.subr.bf16.mxu0 0
        %868 = vmatpush1.bf16.msra.mxu0 %v672
        %869 = vmatprep.subr.bf16.mxu0 0
        %870 = vmatpush1.bf16.msra.mxu0 %v673
        %871 = vmatprep.subr.bf16.mxu0 0
        %872 = vmatpush1.bf16.msra.mxu0 %v674
        %873 = vmatprep.subr.bf16.mxu0 0
        %874 = vmatpush1.bf16.msra.mxu0 %v675
        %875 = vmatprep.subr.bf16.mxu0 0
        %876 = vmatpush1.bf16.msra.mxu0 %v676
        %877 = vmatprep.subr.bf16.mxu0 0
        %878 = vmatpush1.bf16.msra.mxu0 %v677
        %879 = vmatprep.subr.bf16.mxu0 0
        %880 = vmatpush1.bf16.msra.mxu0 %v678
        %881 = vmatprep.subr.bf16.mxu0 0
        %882 = vmatpush1.bf16.msra.mxu0 %v679
        %883 = vmatprep.subr.bf16.mxu0 0
        %884 = vmatpush1.bf16.msra.mxu0 %v680
        %885 = vmatprep.subr.bf16.mxu0 0
        %886 = vmatpush1.bf16.msra.mxu0 %v681
        %887 = vmatprep.subr.bf16.mxu0 0
        %888 = vmatpush1.bf16.msra.mxu0 %v682
        %889 = vmatprep.subr.bf16.mxu0 0
        %890 = vmatpush1.bf16.msra.mxu0 %v683
        %891 = vmatprep.subr.bf16.mxu0 0
        %892 = vmatpush1.bf16.msra.mxu0 %v684
        %893 = vmatprep.mubr.bf16.mxu0 %v403
        %894 = vmatmul.mubr.bf16.gmra.mrb[0].mxu0 %v402
        %v895 = vpop.f32.mrb[0].mxu0
        %v896 = vadd.f32 %v839, %v895
        %v897 = vpop.f32.mrb[0].mxu0
        %v898 = vpop.f32.mrb[0].mxu0
        %v899 = vadd.f32 %v842, %v898
        %v900 = vpop.f32.mrb[0].mxu0
        %901 = vmatprep.mubr.bf16.mxu0 %v410
        %902 = vmatmul.mubr.bf16.gmra.mrb[0].mxu0 %v409
        %v903 = vpop.f32.mrb[0].mxu0
        %v904 = vadd.f32 %v847, %v903
        %v905 = vpop.f32.mrb[0].mxu0
        %v906 = vpop.f32.mrb[0].mxu0
        %v907 = vadd.f32 %v850, %v906
        %v908 = vpop.f32.mrb[0].mxu0
        %909 = vmatprep.mubr.bf16.mxu0 %v417
        %910 = vmatmul.mubr.bf16.gmra.mrb[0].mxu0 %v416
        %v911 = vpop.f32.mrb[0].mxu0
        %v912 = vadd.f32 %v855, %v911
        %v913 = vpop.f32.mrb[0].mxu0
        %v914 = vpop.f32.mrb[0].mxu0
        %v915 = vadd.f32 %v858, %v914
        %v916 = vpop.f32.mrb[0].mxu0
        %917 = vdwg.mxu0
        %918 = vmatprep.subr.bf16.mxu0 0
        %919 = vmatpush1.bf16.msra.mxu0 %v685
        %920 = vmatprep.subr.bf16.mxu0 0
        %921 = vmatpush1.bf16.msra.mxu0 %v686
        %922 = vmatprep.subr.bf16.mxu0 0
        %923 = vmatpush1.bf16.msra.mxu0 0
        %924 = vmatprep.subr.bf16.mxu0 0
        %925 = vmatpush1.bf16.msra.mxu0 0
        %926 = vmatprep.subr.bf16.mxu0 0
        %927 = vmatpush1.bf16.msra.mxu0 0
        %928 = vmatprep.subr.bf16.mxu0 0
        %929 = vmatpush1.bf16.msra.mxu0 0
        %930 = vmatprep.subr.bf16.mxu0 0
        %931 = vmatpush1.bf16.msra.mxu0 0
        %932 = vmatprep.subr.bf16.mxu0 0
        %933 = vmatpush1.bf16.msra.mxu0 0
        %934 = vmatprep.subr.bf16.mxu0 0
        %935 = vmatpush1.bf16.msra.mxu0 0
        %936 = vmatprep.subr.bf16.mxu0 0
        %937 = vmatpush1.bf16.msra.mxu0 0
        %938 = vmatprep.subr.bf16.mxu0 0
        %939 = vmatpush1.bf16.msra.mxu0 0
        %940 = vmatprep.subr.bf16.mxu0 0
        %941 = vmatpush1.bf16.msra.mxu0 0
        %942 = vmatprep.subr.bf16.mxu0 0
        %943 = vmatpush1.bf16.msra.mxu0 0
        %944 = vmatprep.subr.bf16.mxu0 0
        %945 = vmatpush1.bf16.msra.mxu0 0
        %946 = vmatprep.subr.bf16.mxu0 0
        %947 = vmatpush1.bf16.msra.mxu0 0
        %948 = vmatprep.subr.bf16.mxu0 0
        %949 = vmatpush1.bf16.msra.mxu0 0
        %950 = vmatprep.mubr.bf16.mxu0 0
        %951 = vmatmul.mubr.bf16.gmra.mrb[0].mxu0 %v739
        %v952 = vpop.f32.mrb[0].mxu0
        %v953 = vadd.f32 %v896, %v952
        %v954 = vpop.f32.mrb[0].mxu0
        %v955 = vpop.f32.mrb[0].mxu0
        %v956 = vadd.f32 %v899, %v955
        %v957 = vpop.f32.mrb[0].mxu0
        %958 = vmatprep.mubr.bf16.mxu0 0
        %959 = vmatmul.mubr.bf16.gmra.mrb[0].mxu0 %v742
        %v960 = vpop.f32.mrb[0].mxu0
        %v961 = vadd.f32 %v904, %v960
        %v962 = vpop.f32.mrb[0].mxu0
        %v963 = vpop.f32.mrb[0].mxu0
        %v964 = vadd.f32 %v907, %v963
        %v965 = vpop.f32.mrb[0].mxu0
        %966 = vmatprep.mubr.bf16.mxu0 0
        %967 = vmatmul.mubr.bf16.gmra.mrb[0].mxu0 %v745
        %v968 = vpop.f32.mrb[0].mxu0
        %v969 = vadd.f32 %v912, %v968
        %v970 = vpop.f32.mrb[0].mxu0
        %v971 = vpop.f32.mrb[0].mxu0
        %v972 = vadd.f32 %v915, %v971
        %v973 = vpop.f32.mrb[0].mxu0
        %974 = vdwg.mxu0
        %v975 = vmax.f32 %v953, 0.0
        %v976 = vmax.f32 %v956, 0.0
        %v977 = vmax.f32 %v961, 0.0
        %v978 = vmax.f32 %v964, 0.0
        %v979 = vmax.f32 %v969, 0.0
        %v980 = vmax.f32 %v972, 0.0
        %v981 = vpack.c.bf16 %v976, %v975
        %v982 = vpack.c.bf16 %v978, %v977
        %v983 = vpack.c.bf16 %v980, %v979
        %v987 = vunpack.c.l.b16 %v981
        %v988 = vunpack.c.h.b16 %v981
        %v989 = vunpack.c.l.b16 %v982
        %v990 = vunpack.c.h.b16 %v982
        %v991 = vunpack.c.l.b16 %v983
        %v992 = vunpack.c.h.b16 %v983
        %v993 = vpack.c.b16 %v987, %v987
        %v994 = vpack.c.b16 %v988, %v988
        %v995 = vpack.c.b16 %v989, %v989
        %v996 = vpack.c.b16 %v990, %v990
        %v997 = vpack.c.b16 %v991, %v991
        %v998 = vpack.c.b16 %v992, %v992
        %vm1005 = vcmask 519168
        %1006 = vst.msk [vmem:[%s177] sm:$0xf] %vm1005, %v993
        %1007 = vst.msk [vmem:[%s177 + $0x4] sm:$0xf] %vm1005, %v994
        %1008 = vst.msk [vmem:[%s177 + $0x8] sm:$0xf] %vm1005, %v995
        %1009 = vst.msk [vmem:[%s177 + $0xc] sm:$0xf] %vm1005, %v996
        %1010 = vst.msk [vmem:[%s177 + $0x10] sm:$0xf] %vm1005, %v997
        %1011 = vst.msk [vmem:[%s177 + $0x14] sm:$0xf] %vm1005, %v998
        %s1012 = sand.u32 %s90, 1
        %s1013 = sand.u32 %s90, 1
        %s1014 = smul.addr %s1013, 24
        %s1015 = scalar_lea.vmem [#allocation2], %s1014
        // Predicated region
        $region33: #{cnn_forward.7} parent=31 // pred_check
          %p1016 = pneg %p100
        $region34: #{cnn_forward.7} parent=31 // pred_check_branch
          %1018 = sbr.rel (%p1016) target = $region36
        $region35: #{cnn_forward.7} parent=31 // pred_region
          %s1019 = smul.u32 6, %s14
          %s1020 = ssub.s32 9, %s1019
          %p1021 = scmp.lt.s32.totalorder %s1020, 6
          %s1022 = scalar_select %p1021, %s1020, 6
          %s1023 = smul.u32 64, %s1022
          %p1024 = scmp.ne.s32.totalorder 0, %s1023
          %s1025 = smul.addr %s1019, 4
          %s1026 = scalar_lea.vmem %s3, %s1025
          // Predicated region
          $region37: #{cnn_forward.7} parent=35 // pred_check
            %p1027 = pneg %p1024
          $region38: #{cnn_forward.7} parent=35 // pred_check_branch
            %1029 = sbr.rel (%p1027) target = $region40
          $region39: #{cnn_forward.7} parent=35 // pred_region
            // Predicated region
            $region41: #{cnn_forward.7} parent=39 // pred_check
              _
            $region42: #{cnn_forward.7} parent=39 // pred_check_branch
              %1031 = sbr.rel target = $region44
            $region43: #{cnn_forward.7} parent=39 // pred_region
              // Predicated region
              $region63: #{cnn_forward.7} parent=43 // pred_check
                _
              $region64: #{cnn_forward.7} parent=43 // pred_check_branch
                %1091 = sbr.rel (0) target = $region66
              $region65: #{cnn_forward.7} parent=43 // pred_region
                %s1093 = sdiv.u32.pop %s1022, 6
                %s1094 = srem.u32.pop %s1022, 6
                // While loop
                $region67: #{cnn_forward.7} parent=65 // loop_pre_header
                  _
                $region68: #{cnn_forward.7} parent=65 // loop_header
                  %s1096 = sphi 0, %s1098
                  %p1097 = scmp.ge.s32.totalorder %s1096, %s1093
                  %s1101 = sphi 0, %s1118
                  %s1102 = sphi %s1015, %s1121
                  %s1103 = sphi %s1026, %s1122
                $region69: #{cnn_forward.7} parent=65 // loop_header_branch
                  %1100 = sbr.rel (%p1097) target = $region73
                $region70: #{cnn_forward.7} parent=65 // loop_body
                  %v1104 = vld [vmem:[%s1102] sm:$0xf]
                  %1105 = vst [vmem:[%s1103] sm:$0xf] %v1104
                  %v1106 = vld [vmem:[%s1102 + $0x4] sm:$0xf]
                  %1107 = vst [vmem:[%s1103 + $0x4] sm:$0xf] %v1106
                  %v1108 = vld [vmem:[%s1102 + $0x8] sm:$0xf]
                  %1109 = vst [vmem:[%s1103 + $0x8] sm:$0xf] %v1108
                  %v1110 = vld [vmem:[%s1102 + $0xc] sm:$0xf]
                  %1111 = vst [vmem:[%s1103 + $0xc] sm:$0xf] %v1110
                  %v1112 = vld [vmem:[%s1102 + $0x10] sm:$0xf]
                  %1113 = vst [vmem:[%s1103 + $0x10] sm:$0xf] %v1112
                  %v1114 = vld [vmem:[%s1102 + $0x14] sm:$0xf]
                  %1115 = vst [vmem:[%s1103 + $0x14] sm:$0xf] %v1114
                  %s1116 = sadd.s32 1, %s1101
                  %p1117 = scmp.ge.s32.totalorder %s1116, %s1093
                  %s1118 = scalar_select %p1117, 0, %s1116
                  %s1119 = smul.u32 %s1118, 24
                  %s1120 = smul.u32 %s1118, 24
                  %s1121 = scalar_lea.vmem %s1015, %s1119 [#allocation2]
                  %s1122 = scalar_lea.vmem %s1026, %s1120
                $region71: #{cnn_forward.7} parent=65 // loop_footer
                  %s1098 = sadd.s32 %s1096, 1
                $region72: #{cnn_forward.7} parent=65 // loop_footer_branch
                  %1095 = sbr.rel target = $region68
                $region73: #{cnn_forward.7} parent=65 // loop_exit
                  _
                %s1123 = sdiv.u32.pop %s1022, 6
                %s1124 = srem.u32.pop %s1022, 6
                %s1125 = smul.u32 %s1123, 6
                %s1126 = smul.u32 4, %s1125
                %s1127 = scalar_lea.vmem %s1015, %s1126 [#allocation2]
                %s1128 = smul.u32 4, %s1125
                %s1129 = scalar_lea.vmem %s1026, %s1128
                // While loop
                $region74: #{cnn_forward.7} parent=65 // loop_pre_header
                  _
                $region75: #{cnn_forward.7} parent=65 // loop_header
                  %s1131 = sphi 0, %s1133
                  %p1132 = scmp.ge.s32.totalorder %s1131, %s1124
                  %s1136 = sphi 0, %s1143
                  %s1137 = sphi %s1127, %s1146
                  %s1138 = sphi %s1129, %s1147
                $region76: #{cnn_forward.7} parent=65 // loop_header_branch
                  %1135 = sbr.rel (%p1132) target = $region80
                $region77: #{cnn_forward.7} parent=65 // loop_body
                  %v1139 = vld [vmem:[%s1137] sm:$0xf]
                  %1140 = vst [vmem:[%s1138] sm:$0xf] %v1139
                  %s1141 = sadd.s32 1, %s1136
                  %p1142 = scmp.ge.s32.totalorder %s1141, %s1124
                  %s1143 = scalar_select %p1142, 0, %s1141
                  %s1144 = smul.u32 %s1143, 4
                  %s1145 = smul.u32 %s1143, 4
                  %s1146 = scalar_lea.vmem %s1127, %s1144 [#allocation2]
                  %s1147 = scalar_lea.vmem %s1129, %s1145
                $region78: #{cnn_forward.7} parent=65 // loop_footer
                  %s1133 = sadd.s32 %s1131, 1
                $region79: #{cnn_forward.7} parent=65 // loop_footer_branch
                  %1130 = sbr.rel target = $region75
                $region80: #{cnn_forward.7} parent=65 // loop_exit
                  _
              $region66: #{cnn_forward.7} parent=43 // pred_fallthru
                _
            $region44: #{cnn_forward.7} parent=39 // pred_fallthru
              _
            // Predicated region
            $region45: #{cnn_forward.7} parent=39 // pred_check
              _
            $region46: #{cnn_forward.7} parent=39 // pred_check_branch
              %1033 = sbr.rel (0) target = $region48
            $region47: #{cnn_forward.7} parent=39 // pred_region
              %s1035 = sdiv.u32.pop %s1022, 6
              %s1036 = srem.u32.pop %s1022, 6
              // While loop
              $region49: #{cnn_forward.7} parent=47 // loop_pre_header
                _
              $region50: #{cnn_forward.7} parent=47 // loop_header
                %s1038 = sphi 0, %s1040
                %p1039 = scmp.ge.s32.totalorder %s1038, %s1035
                %s1043 = sphi 0, %s1060
                %s1044 = sphi %s1015, %s1063
                %s1045 = sphi %s1026, %s1064
              $region51: #{cnn_forward.7} parent=47 // loop_header_branch
                %1042 = sbr.rel (%p1039) target = $region55
              $region52: #{cnn_forward.7} parent=47 // loop_body
                %v1046 = vld [vmem:[%s1044] sm:$0xf]
                %1047 = vst [vmem:[%s1045] sm:$0xf] %v1046
                %v1048 = vld [vmem:[%s1044 + $0x4] sm:$0xf]
                %1049 = vst [vmem:[%s1045 + $0x4] sm:$0xf] %v1048
                %v1050 = vld [vmem:[%s1044 + $0x8] sm:$0xf]
                %1051 = vst [vmem:[%s1045 + $0x8] sm:$0xf] %v1050
                %v1052 = vld [vmem:[%s1044 + $0xc] sm:$0xf]
                %1053 = vst [vmem:[%s1045 + $0xc] sm:$0xf] %v1052
                %v1054 = vld [vmem:[%s1044 + $0x10] sm:$0xf]
                %1055 = vst [vmem:[%s1045 + $0x10] sm:$0xf] %v1054
                %v1056 = vld [vmem:[%s1044 + $0x14] sm:$0xf]
                %1057 = vst [vmem:[%s1045 + $0x14] sm:$0xf] %v1056
                %s1058 = sadd.s32 1, %s1043
                %p1059 = scmp.ge.s32.totalorder %s1058, %s1035
                %s1060 = scalar_select %p1059, 0, %s1058
                %s1061 = smul.u32 %s1060, 24
                %s1062 = smul.u32 %s1060, 24
                %s1063 = scalar_lea.vmem %s1015, %s1061 [#allocation2]
                %s1064 = scalar_lea.vmem %s1026, %s1062
              $region53: #{cnn_forward.7} parent=47 // loop_footer
                %s1040 = sadd.s32 %s1038, 1
              $region54: #{cnn_forward.7} parent=47 // loop_footer_branch
                %1037 = sbr.rel target = $region50
              $region55: #{cnn_forward.7} parent=47 // loop_exit
                _
              %s1065 = sdiv.u32.pop %s1022, 6
              %s1066 = srem.u32.pop %s1022, 6
              %s1067 = smul.u32 %s1065, 6
              %s1068 = smul.u32 4, %s1067
              %s1069 = scalar_lea.vmem %s1015, %s1068 [#allocation2]
              %s1070 = smul.u32 4, %s1067
              %s1071 = scalar_lea.vmem %s1026, %s1070
              // While loop
              $region56: #{cnn_forward.7} parent=47 // loop_pre_header
                _
              $region57: #{cnn_forward.7} parent=47 // loop_header
                %s1073 = sphi 0, %s1075
                %p1074 = scmp.ge.s32.totalorder %s1073, %s1066
                %s1078 = sphi 0, %s1085
                %s1079 = sphi %s1069, %s1088
                %s1080 = sphi %s1071, %s1089
              $region58: #{cnn_forward.7} parent=47 // loop_header_branch
                %1077 = sbr.rel (%p1074) target = $region62
              $region59: #{cnn_forward.7} parent=47 // loop_body
                %v1081 = vld [vmem:[%s1079] sm:$0xf]
                %1082 = vst [vmem:[%s1080] sm:$0xf] %v1081
                %s1083 = sadd.s32 1, %s1078
                %p1084 = scmp.ge.s32.totalorder %s1083, %s1066
                %s1085 = scalar_select %p1084, 0, %s1083
                %s1086 = smul.u32 %s1085, 4
                %s1087 = smul.u32 %s1085, 4
                %s1088 = scalar_lea.vmem %s1069, %s1086 [#allocation2]
                %s1089 = scalar_lea.vmem %s1071, %s1087
              $region60: #{cnn_forward.7} parent=47 // loop_footer
                %s1075 = sadd.s32 %s1073, 1
              $region61: #{cnn_forward.7} parent=47 // loop_footer_branch
                %1072 = sbr.rel target = $region57
              $region62: #{cnn_forward.7} parent=47 // loop_exit
                _
            $region48: #{cnn_forward.7} parent=39 // pred_fallthru
              _
          $region40: #{cnn_forward.7} parent=35 // pred_fallthru
            _
          %1148 = vnop
        $region36: #{cnn_forward.7} parent=31 // pred_fallthru
          _
      $region32: #{cnn_forward.7} parent=5 // pred_fallthru
        _
      %p1149 = scmp.le.s32.totalorder 2, %s9
      // Predicated region
      $region81: #{cnn_forward.7} parent=5 // pred_check
        %p1150 = pneg %p1149
      $region82: #{cnn_forward.7} parent=5 // pred_check_branch
        %1152 = sbr.rel (%p1150) target = $region84
      $region83: #{cnn_forward.7} parent=5 // pred_region
        %s1153 = ssub.s32 %s9, 2
        // Predicated region
        $region85: #{cnn_forward.7} parent=83 // pred_check
          %p1154 = pneg %p106
        $region86: #{cnn_forward.7} parent=83 // pred_check_branch
          %1156 = sbr.rel (%p1154) target = $region88
        $region87: #{cnn_forward.7} parent=83 // pred_region
          %s1157 = sand.u32 %s91, 1
          %s1158 = sand.u32 %s91, 1
          %s1159 = smul.addr %s1158, 24
          %s1160 = scalar_lea.vmem [#allocation2], %s1159
        $region88: #{cnn_forward.7} parent=83 // pred_fallthru
          _
      $region84: #{cnn_forward.7} parent=5 // pred_fallthru
        _
    $region6: #{cnn_forward.7} parent=1 // loop_footer
      %s13 = sadd.s32 1, %s9
    $region7: #{cnn_forward.7} parent=1 // loop_footer_branch
      %8 = sbr.rel target = $region3
    $region8: #{cnn_forward.7} parent=1 // loop_exit
      _

// kernel: cnn_forward.9
$region0: #{cnn_forward.9}
  #allocation0 [shape = 'u32[]', space=smem, size = 0x4, offset = 0x4, fixed_abs, tag = 'smem constant byte address 0x4 - core index']
  #allocation1 [shape = 'u32[144,128]{1,0:T(1,128)}', space=vmem, size = 0x12000, scoped, tag = 'internal scratch']
  %s0 = inlined_call_operand.vmem [shape: bf16[2,256], index: 0, kind: input, shape index: {}]
  %s1 = inlined_call_operand.vmem [shape: bf16[256,128], index: 1, kind: input, shape index: {}]
  %s2 = inlined_call_operand.vmem [shape: f32[1,128], index: 2, kind: input, shape index: {}]
  %s3 = inlined_call_operand.hbm [shape: f32[2,128], index: 3, kind: output, shape index: {}]
  %s4 = sld [smem:[#allocation0]]
  $region22: #{cnn_forward.9} parent=0
    _
  %s6 = ssub.s32 1, %s4
  %s7 = scalar_select 0, %s6, %s4
  $region1: #{cnn_forward.9} parent=0
    #allocation2 [shape = 'u8[1024]{0}', space=vmem, size = 0x400, scoped, tag = 'output window, operand 0, single buffered']
    #allocation3 [shape = 's32[1]{0}', space=sflag, size = 0x4, scoped, tag = 'scoped memory for cnn_forward.9']
    %8 = vsyncpa [#allocation3], 0
    // Predicated region
    $region2: #{cnn_forward.9} parent=1 // pred_check
      _
    $region3: #{cnn_forward.9} parent=1 // pred_check_branch
      %10 = sbr.rel (0) target = $region5
    $region4: #{cnn_forward.9} parent=1 // pred_region
      _
    $region5: #{cnn_forward.9} parent=1 // pred_fallthru
      _
    // Predicated region
    $region6: #{cnn_forward.9} parent=1 // pred_check
      _
    $region7: #{cnn_forward.9} parent=1 // pred_check_branch
      %12 = sbr.rel (0) target = $region9
    $region8: #{cnn_forward.9} parent=1 // pred_region
      _
    $region9: #{cnn_forward.9} parent=1 // pred_fallthru
      _
    // Predicated region
    $region10: #{cnn_forward.9} parent=1 // pred_check
      _
    $region11: #{cnn_forward.9} parent=1 // pred_check_branch
      %14 = sbr.rel (0) target = $region13
    $region12: #{cnn_forward.9} parent=1 // pred_region
      _
    $region13: #{cnn_forward.9} parent=1 // pred_fallthru
      _
    %v16 = vld [vmem:[%s0] sm:$0x3]
    %v17 = vld [vmem:[%s1] sm:$0xf]
    %v18 = vld [vmem:[%s1 + $0x4] sm:$0xf]
    %v19 = vld [vmem:[%s1 + $0x8] sm:$0xf]
    %v20 = vld [vmem:[%s1 + $0xc] sm:$0xf]
    %v21 = vld [vmem:[%s1 + $0x10] sm:$0xf]
    %v22 = vld [vmem:[%s1 + $0x14] sm:$0xf]
    %v23 = vld [vmem:[%s1 + $0x18] sm:$0xf]
    %v24 = vld [vmem:[%s1 + $0x1c] sm:$0xf]
    %v25 = vld [vmem:[%s1 + $0x20] sm:$0xf]
    %v26 = vld [vmem:[%s1 + $0x24] sm:$0xf]
    %v27 = vld [vmem:[%s1 + $0x28] sm:$0xf]
    %v28 = vld [vmem:[%s1 + $0x2c] sm:$0xf]
    %v29 = vld [vmem:[%s1 + $0x30] sm:$0xf]
    %v30 = vld [vmem:[%s1 + $0x34] sm:$0xf]
    %v31 = vld [vmem:[%s1 + $0x38] sm:$0xf]
    %v32 = vld [vmem:[%s1 + $0x3c] sm:$0xf]
    %v33 = vld [vmem:[%s1 + $0x40] sm:$0xf]
    %v34 = vld [vmem:[%s1 + $0x44] sm:$0xf]
    %v35 = vld [vmem:[%s1 + $0x48] sm:$0xf]
    %v36 = vld [vmem:[%s1 + $0x4c] sm:$0xf]
    %v37 = vld [vmem:[%s1 + $0x50] sm:$0xf]
    %v38 = vld [vmem:[%s1 + $0x54] sm:$0xf]
    %v39 = vld [vmem:[%s1 + $0x58] sm:$0xf]
    %v40 = vld [vmem:[%s1 + $0x5c] sm:$0xf]
    %v41 = vld [vmem:[%s1 + $0x60] sm:$0xf]
    %v42 = vld [vmem:[%s1 + $0x64] sm:$0xf]
    %v43 = vld [vmem:[%s1 + $0x68] sm:$0xf]
    %v44 = vld [vmem:[%s1 + $0x6c] sm:$0xf]
    %v45 = vld [vmem:[%s1 + $0x70] sm:$0xf]
    %v46 = vld [vmem:[%s1 + $0x74] sm:$0xf]
    %v47 = vld [vmem:[%s1 + $0x78] sm:$0xf]
    %v48 = vld [vmem:[%s1 + $0x7c] sm:$0xf]
    %v49 = vld [vmem:[%s2] sm:$0x1]
    %v51 = vlaneseq
    %v52 = vshrl.u32 %v51, 7
    %v53 = vsub.s32 0, %v52
    %v54 = vrot.slane %v49, %v53
    %v58 = vunpack.c.l.s4 1966171168
    %v59 = vunpack.c.0.s8 %v58
    %v60 = vlaneseq
    %v61 = vshrl.u32 %v60, 7
    %v62 = vsub.s32 %v59, %v61
    %v63 = vrot.slane %v16, %v62
    %v64 = vcombine.high %v63, %v63
    %v66 = vunpack.c.l.s4 1966171168
    %v67 = vunpack.c.0.s8 %v66
    %v68 = vlaneseq
    %v69 = vshrl.u32 %v68, 7
    %v70 = vsub.s32 %v67, %v69
    %v71 = vrot.slane %v63, %v70
    %v73 = vunpack.c.l.s4 1966171168
    %v74 = vunpack.c.0.s8 %v73
    %v75 = vlaneseq
    %v76 = vshrl.u32 %v75, 7
    %v77 = vsub.s32 %v74, %v76
    %v78 = vrot.slane %v64, %v77
    %v113 = vunpack.c.l.b16 %v17
    %v114 = vunpack.c.l.b16 %v18
    %v115 = vunpack.c.l.b16 %v19
    %v116 = vunpack.c.l.b16 %v20
    %v117 = vunpack.c.l.b16 %v21
    %v118 = vunpack.c.l.b16 %v22
    %v119 = vunpack.c.l.b16 %v23
    %v120 = vunpack.c.l.b16 %v24
    %v121 = vunpack.c.l.b16 %v25
    %v122 = vunpack.c.l.b16 %v26
    %v123 = vunpack.c.l.b16 %v27
    %v124 = vunpack.c.l.b16 %v28
    %v125 = vunpack.c.l.b16 %v29
    %v126 = vunpack.c.l.b16 %v30
    %v127 = vunpack.c.l.b16 %v31
    %v128 = vunpack.c.l.b16 %v32
    %v129 = vunpack.c.l.b16 %v33
    %v130 = vunpack.c.l.b16 %v34
    %v131 = vunpack.c.l.b16 %v35
    %v132 = vunpack.c.l.b16 %v36
    %v133 = vunpack.c.l.b16 %v37
    %v134 = vunpack.c.l.b16 %v38
    %v135 = vunpack.c.l.b16 %v39
    %v136 = vunpack.c.l.b16 %v40
    %v137 = vunpack.c.l.b16 %v41
    %v138 = vunpack.c.l.b16 %v42
    %v139 = vunpack.c.l.b16 %v43
    %v140 = vunpack.c.l.b16 %v44
    %v141 = vunpack.c.l.b16 %v45
    %v142 = vunpack.c.l.b16 %v46
    %v143 = vunpack.c.l.b16 %v47
    %v144 = vunpack.c.l.b16 %v48
    %v145 = vpack.c.b16 %v114, %v113
    %v146 = vpack.c.b16 %v116, %v115
    %v147 = vpack.c.b16 %v118, %v117
    %v148 = vpack.c.b16 %v120, %v119
    %v149 = vpack.c.b16 %v122, %v121
    %v150 = vpack.c.b16 %v124, %v123
    %v151 = vpack.c.b16 %v126, %v125
    %v152 = vpack.c.b16 %v128, %v127
    %v153 = vpack.c.b16 %v130, %v129
    %v154 = vpack.c.b16 %v132, %v131
    %v155 = vpack.c.b16 %v134, %v133
    %v156 = vpack.c.b16 %v136, %v135
    %v157 = vpack.c.b16 %v138, %v137
    %v158 = vpack.c.b16 %v140, %v139
    %v159 = vpack.c.b16 %v142, %v141
    %v160 = vpack.c.b16 %v144, %v143
    %177 = vmatprep.subr.bf16.mxu0 0
    %178 = vmatpush1.bf16.msra.mxu0 %v145
    %179 = vmatprep.subr.bf16.mxu0 0
    %180 = vmatpush1.bf16.msra.mxu0 %v146
    %181 = vmatprep.subr.bf16.mxu0 0
    %182 = vmatpush1.bf16.msra.mxu0 %v147
    %183 = vmatprep.subr.bf16.mxu0 0
    %184 = vmatpush1.bf16.msra.mxu0 %v148
    %185 = vmatprep.subr.bf16.mxu0 0
    %186 = vmatpush1.bf16.msra.mxu0 %v149
    %187 = vmatprep.subr.bf16.mxu0 0
    %188 = vmatpush1.bf16.msra.mxu0 %v150
    %189 = vmatprep.subr.bf16.mxu0 0
    %190 = vmatpush1.bf16.msra.mxu0 %v151
    %191 = vmatprep.subr.bf16.mxu0 0
    %192 = vmatpush1.bf16.msra.mxu0 %v152
    %193 = vmatprep.subr.bf16.mxu0 0
    %194 = vmatpush1.bf16.msra.mxu0 %v153
    %195 = vmatprep.subr.bf16.mxu0 0
    %196 = vmatpush1.bf16.msra.mxu0 %v154
    %197 = vmatprep.subr.bf16.mxu0 0
    %198 = vmatpush1.bf16.msra.mxu0 %v155
    %199 = vmatprep.subr.bf16.mxu0 0
    %200 = vmatpush1.bf16.msra.mxu0 %v156
    %201 = vmatprep.subr.bf16.mxu0 0
    %202 = vmatpush1.bf16.msra.mxu0 %v157
    %203 = vmatprep.subr.bf16.mxu0 0
    %204 = vmatpush1.bf16.msra.mxu0 %v158
    %205 = vmatprep.subr.bf16.mxu0 0
    %206 = vmatpush1.bf16.msra.mxu0 %v159
    %207 = vmatprep.subr.bf16.mxu0 0
    %208 = vmatpush1.bf16.msra.mxu0 %v160
    %209 = vmatprep.mubr.bf16.mxu0 %v78
    %210 = vmatmul.mubr.bf16.gmra.mrb[0].mxu0 %v71
    %v211 = vpop.f32.mrb[0].mxu0
    %v212 = vadd.f32 %v54, %v211
    %v213 = vpop.f32.mrb[0].mxu0
    %v214 = vpop.f32.mrb[0].mxu0
    %v215 = vpop.f32.mrb[0].mxu0
    %216 = vdwg.mxu0
    %217 = vst [vmem:[#allocation2] sm:$0x3] %v212
    // Predicated region
    $region14: #{cnn_forward.9} parent=1 // pred_check
      _
    $region15: #{cnn_forward.9} parent=1 // pred_check_branch
      %219 = sbr.rel (0) target = $region17
    $region16: #{cnn_forward.9} parent=1 // pred_region
      %s221 = ssub.s32 32, 32
      %222 = vsyncadd [#allocation3], %s221
      %s224 = sshll.u32 [#allocation2], 4
      %s225 = int_to_ptr.vmem [resolvable:$true] %s224
      %227 = dma.vmem_to_hbm [thread:$0]  %s225, 32, %s3, [#allocation3]
    $region17: #{cnn_forward.9} parent=1 // pred_fallthru
      _
    // Predicated region
    $region18: #{cnn_forward.9} parent=1 // pred_check
      _
    $region19: #{cnn_forward.9} parent=1 // pred_check_branch
      %229 = sbr.rel (0) target = $region21
    $region20: #{cnn_forward.9} parent=1 // pred_region
      %230 = dma.done [#allocation3], 32
    $region21: #{cnn_forward.9} parent=1 // pred_fallthru
      _
    %231 = vsyncpa [#allocation3], 1

// kernel: cnn_forward.8
$region0: #{cnn_forward.8}
  #allocation0 [shape = 'u32[]', space=smem, size = 0x4, offset = 0x4, fixed_abs, tag = 'smem constant byte address 0x4 - core index']
  #allocation1 [shape = 'u32[144,128]{1,0:T(1,128)}', space=vmem, size = 0x12000, scoped, tag = 'internal scratch']
  %s0 = inlined_call_operand.vmem [shape: bf16[2,576], index: 0, kind: input, shape index: {}]
  %s1 = inlined_call_operand.vmem [shape: bf16[576,256], index: 1, kind: input, shape index: {}]
  %s2 = inlined_call_operand.vmem [shape: f32[1,256], index: 2, kind: input, shape index: {}]
  %s3 = inlined_call_operand.vmem [shape: f32[2,256], index: 3, kind: output, shape index: {}]
  %s4 = sld [smem:[#allocation0]]
  $region22: #{cnn_forward.8} parent=0
    _
  %s6 = ssub.s32 1, %s4
  %s7 = scalar_select 0, %s6, %s4
  // Predicated region
  $region2: #{cnn_forward.8} parent=0 // pred_check
    _
  $region3: #{cnn_forward.8} parent=0 // pred_check_branch
    %9 = sbr.rel (0) target = $region5
  $region4: #{cnn_forward.8} parent=0 // pred_region
    _
  $region5: #{cnn_forward.8} parent=0 // pred_fallthru
    _
  // Predicated region
  $region6: #{cnn_forward.8} parent=0 // pred_check
    _
  $region7: #{cnn_forward.8} parent=0 // pred_check_branch
    %11 = sbr.rel (0) target = $region9
  $region8: #{cnn_forward.8} parent=0 // pred_region
    _
  $region9: #{cnn_forward.8} parent=0 // pred_fallthru
    _
  // Predicated region
  $region10: #{cnn_forward.8} parent=0 // pred_check
    _
  $region11: #{cnn_forward.8} parent=0 // pred_check_branch
    %13 = sbr.rel (0) target = $region13
  $region12: #{cnn_forward.8} parent=0 // pred_region
    _
  $region13: #{cnn_forward.8} parent=0 // pred_fallthru
    _
  %v15 = vld [vmem:[%s0] sm:$0x1f]
  %v16 = vld [vmem:[%s1] sm:$0xff]
  %v17 = vld [vmem:[%s1 + $0x8] sm:$0xff]
  %v18 = vld [vmem:[%s1 + $0x10] sm:$0xff]
  %v19 = vld [vmem:[%s1 + $0x18] sm:$0xff]
  %v20 = vld [vmem:[%s1 + $0x20] sm:$0xff]
  %v21 = vld [vmem:[%s1 + $0x28] sm:$0xff]
  %v22 = vld [vmem:[%s1 + $0x30] sm:$0xff]
  %v23 = vld [vmem:[%s1 + $0x38] sm:$0xff]
  %v24 = vld [vmem:[%s1 + $0x40] sm:$0xff]
  %v25 = vld [vmem:[%s1 + $0x48] sm:$0xff]
  %v26 = vld [vmem:[%s1 + $0x50] sm:$0xff]
  %v27 = vld [vmem:[%s1 + $0x58] sm:$0xff]
  %v28 = vld [vmem:[%s1 + $0x60] sm:$0xff]
  %v29 = vld [vmem:[%s1 + $0x68] sm:$0xff]
  %v30 = vld [vmem:[%s1 + $0x70] sm:$0xff]
  %v31 = vld [vmem:[%s1 + $0x78] sm:$0xff]
  %v32 = vld [vmem:[%s1 + $0x80] sm:$0xff]
  %v33 = vld [vmem:[%s1 + $0x88] sm:$0xff]
  %v34 = vld [vmem:[%s1 + $0x90] sm:$0xff]
  %v35 = vld [vmem:[%s1 + $0x98] sm:$0xff]
  %v36 = vld [vmem:[%s1 + $0xa0] sm:$0xff]
  %v37 = vld [vmem:[%s1 + $0xa8] sm:$0xff]
  %v38 = vld [vmem:[%s1 + $0xb0] sm:$0xff]
  %v39 = vld [vmem:[%s1 + $0xb8] sm:$0xff]
  %v40 = vld [vmem:[%s1 + $0xc0] sm:$0xff]
  %v41 = vld [vmem:[%s1 + $0xc8] sm:$0xff]
  %v42 = vld [vmem:[%s1 + $0xd0] sm:$0xff]
  %v43 = vld [vmem:[%s1 + $0xd8] sm:$0xff]
  %v44 = vld [vmem:[%s1 + $0xe0] sm:$0xff]
  %v45 = vld [vmem:[%s1 + $0xe8] sm:$0xff]
  %v46 = vld [vmem:[%s1 + $0xf0] sm:$0xff]
  %v47 = vld [vmem:[%s1 + $0xf8] sm:$0xff]
  %v48 = vld [vmem:[%s1 + $0x100] sm:$0xff]
  %v49 = vld [vmem:[%s1 + $0x108] sm:$0xff]
  %v50 = vld [vmem:[%s1 + $0x110] sm:$0xff]
  %v51 = vld [vmem:[%s1 + $0x118] sm:$0xff]
  %v52 = vld [vmem:[%s1 + $0x120] sm:$0xff]
  %v53 = vld [vmem:[%s1 + $0x128] sm:$0xff]
  %v54 = vld [vmem:[%s1 + $0x130] sm:$0xff]
  %v55 = vld [vmem:[%s1 + $0x138] sm:$0xff]
  %v56 = vld [vmem:[%s1 + $0x140] sm:$0xff]
  %v57 = vld [vmem:[%s1 + $0x148] sm:$0xff]
  %v58 = vld [vmem:[%s1 + $0x150] sm:$0xff]
  %v59 = vld [vmem:[%s1 + $0x158] sm:$0xff]
  %v60 = vld [vmem:[%s1 + $0x160] sm:$0xff]
  %v61 = vld [vmem:[%s1 + $0x168] sm:$0xff]
  %v62 = vld [vmem:[%s1 + $0x170] sm:$0xff]
  %v63 = vld [vmem:[%s1 + $0x178] sm:$0xff]
  %v64 = vld [vmem:[%s1 + $0x180] sm:$0xff]
  %v65 = vld [vmem:[%s1 + $0x188] sm:$0xff]
  %v66 = vld [vmem:[%s1 + $0x190] sm:$0xff]
  %v67 = vld [vmem:[%s1 + $0x198] sm:$0xff]
  %v68 = vld [vmem:[%s1 + $0x1a0] sm:$0xff]
  %v69 = vld [vmem:[%s1 + $0x1a8] sm:$0xff]
  %v70 = vld [vmem:[%s1 + $0x1b0] sm:$0xff]
  %v71 = vld [vmem:[%s1 + $0x1b8] sm:$0xff]
  %v72 = vld [vmem:[%s1 + $0x1c0] sm:$0xff]
  %v73 = vld [vmem:[%s1 + $0x1c8] sm:$0xff]
  %v74 = vld [vmem:[%s1 + $0x1d0] sm:$0xff]
  %v75 = vld [vmem:[%s1 + $0x1d8] sm:$0xff]
  %v76 = vld [vmem:[%s1 + $0x1e0] sm:$0xff]
  %v77 = vld [vmem:[%s1 + $0x1e8] sm:$0xff]
  %v78 = vld [vmem:[%s1 + $0x1f0] sm:$0xff]
  %v79 = vld [vmem:[%s1 + $0x1f8] sm:$0xff]
  %v80 = vld [vmem:[%s1 + $0x200] sm:$0xff]
  %v81 = vld [vmem:[%s1 + $0x208] sm:$0xff]
  %v82 = vld [vmem:[%s1 + $0x210] sm:$0xff]
  %v83 = vld [vmem:[%s1 + $0x218] sm:$0xff]
  %v84 = vld [vmem:[%s1 + $0x220] sm:$0xff]
  %v85 = vld [vmem:[%s1 + $0x228] sm:$0xff]
  %v86 = vld [vmem:[%s1 + $0x230] sm:$0xff]
  %v87 = vld [vmem:[%s1 + $0x238] sm:$0xff]
  %v88 = vld [vmem:[%s2] sm:$0x3]
  %v90 = vlaneseq
  %v91 = vshrl.u32 %v90, 7
  %v92 = vsub.s32 0, %v91
  %v93 = vrot.slane %v88, %v92
  %v94 = vlaneseq
  %v95 = vshrl.u32 %v94, 7
  %v96 = vsub.s32 1, %v95
  %v97 = vrot.slane %v88, %v96
  %v101 = vcombine.high %v15, %v15
  %v103 = vunpack.c.l.s4 1966171168
  %v104 = vunpack.c.0.s8 %v103
  %v105 = vlaneseq
  %v106 = vshrl.u32 %v105, 7
  %v107 = vsub.s32 %v104, %v106
  %v108 = vrot.slane %v15, %v107
  %v110 = vunpack.c.l.s4 1966171168
  %v111 = vunpack.c.0.s8 %v110
  %v112 = vlaneseq
  %v113 = vshrl.u32 %v112, 7
  %v114 = vsub.s32 %v111, %v113
  %v115 = vrot.slane %v101, %v114
  %v116 = vcombine.high %v108, %v108
  %v118 = vunpack.c.l.s4 1966171168
  %v119 = vunpack.c.0.s8 %v118
  %v120 = vlaneseq
  %v121 = vshrl.u32 %v120, 7
  %v122 = vsub.s32 %v119, %v121
  %v123 = vrot.slane %v108, %v122
  %v125 = vunpack.c.l.s4 1966171168
  %v126 = vunpack.c.0.s8 %v125
  %v127 = vlaneseq
  %v128 = vshrl.u32 %v127, 7
  %v129 = vsub.s32 %v126, %v128
  %v130 = vrot.slane %v115, %v129
  %v132 = vunpack.c.l.s4 1966171168
  %v133 = vunpack.c.0.s8 %v132
  %v134 = vlaneseq
  %v135 = vshrl.u32 %v134, 7
  %v136 = vsub.s32 %v133, %v135
  %v137 = vrot.slane %v116, %v136
  %v138 = vcombine.high %v123, %v123
  %v139 = vcombine.high %v137, %v137
  %v216 = vunpack.c.l.b16 %v16
  %v217 = vunpack.c.h.b16 %v16
  %v218 = vunpack.c.l.b16 %v17
  %v219 = vunpack.c.h.b16 %v17
  %v220 = vunpack.c.l.b16 %v18
  %v221 = vunpack.c.h.b16 %v18
  %v222 = vunpack.c.l.b16 %v19
  %v223 = vunpack.c.h.b16 %v19
  %v224 = vunpack.c.l.b16 %v20
  %v225 = vunpack.c.h.b16 %v20
  %v226 = vunpack.c.l.b16 %v21
  %v227 = vunpack.c.h.b16 %v21
  %v228 = vunpack.c.l.b16 %v22
  %v229 = vunpack.c.h.b16 %v22
  %v230 = vunpack.c.l.b16 %v23
  %v231 = vunpack.c.h.b16 %v23
  %v232 = vunpack.c.l.b16 %v24
  %v233 = vunpack.c.h.b16 %v24
  %v234 = vunpack.c.l.b16 %v25
  %v235 = vunpack.c.h.b16 %v25
  %v236 = vunpack.c.l.b16 %v26
  %v237 = vunpack.c.h.b16 %v26
  %v238 = vunpack.c.l.b16 %v27
  %v239 = vunpack.c.h.b16 %v27
  %v240 = vunpack.c.l.b16 %v28
  %v241 = vunpack.c.h.b16 %v28
  %v242 = vunpack.c.l.b16 %v29
  %v243 = vunpack.c.h.b16 %v29
  %v244 = vunpack.c.l.b16 %v30
  %v245 = vunpack.c.h.b16 %v30
  %v246 = vunpack.c.l.b16 %v31
  %v247 = vunpack.c.h.b16 %v31
  %v248 = vunpack.c.l.b16 %v32
  %v249 = vunpack.c.h.b16 %v32
  %v250 = vunpack.c.l.b16 %v33
  %v251 = vunpack.c.h.b16 %v33
  %v252 = vunpack.c.l.b16 %v34
  %v253 = vunpack.c.h.b16 %v34
  %v254 = vunpack.c.l.b16 %v35
  %v255 = vunpack.c.h.b16 %v35
  %v256 = vunpack.c.l.b16 %v36
  %v257 = vunpack.c.h.b16 %v36
  %v258 = vunpack.c.l.b16 %v37
  %v259 = vunpack.c.h.b16 %v37
  %v260 = vunpack.c.l.b16 %v38
  %v261 = vunpack.c.h.b16 %v38
  %v262 = vunpack.c.l.b16 %v39
  %v263 = vunpack.c.h.b16 %v39
  %v264 = vunpack.c.l.b16 %v40
  %v265 = vunpack.c.h.b16 %v40
  %v266 = vunpack.c.l.b16 %v41
  %v267 = vunpack.c.h.b16 %v41
  %v268 = vunpack.c.l.b16 %v42
  %v269 = vunpack.c.h.b16 %v42
  %v270 = vunpack.c.l.b16 %v43
  %v271 = vunpack.c.h.b16 %v43
  %v272 = vunpack.c.l.b16 %v44
  %v273 = vunpack.c.h.b16 %v44
  %v274 = vunpack.c.l.b16 %v45
  %v275 = vunpack.c.h.b16 %v45
  %v276 = vunpack.c.l.b16 %v46
  %v277 = vunpack.c.h.b16 %v46
  %v278 = vunpack.c.l.b16 %v47
  %v279 = vunpack.c.h.b16 %v47
  %v280 = vunpack.c.l.b16 %v48
  %v281 = vunpack.c.h.b16 %v48
  %v282 = vunpack.c.l.b16 %v49
  %v283 = vunpack.c.h.b16 %v49
  %v284 = vunpack.c.l.b16 %v50
  %v285 = vunpack.c.h.b16 %v50
  %v286 = vunpack.c.l.b16 %v51
  %v287 = vunpack.c.h.b16 %v51
  %v288 = vunpack.c.l.b16 %v52
  %v289 = vunpack.c.h.b16 %v52
  %v290 = vunpack.c.l.b16 %v53
  %v291 = vunpack.c.h.b16 %v53
  %v292 = vunpack.c.l.b16 %v54
  %v293 = vunpack.c.h.b16 %v54
  %v294 = vunpack.c.l.b16 %v55
  %v295 = vunpack.c.h.b16 %v55
  %v296 = vunpack.c.l.b16 %v56
  %v297 = vunpack.c.h.b16 %v56
  %v298 = vunpack.c.l.b16 %v57
  %v299 = vunpack.c.h.b16 %v57
  %v300 = vunpack.c.l.b16 %v58
  %v301 = vunpack.c.h.b16 %v58
  %v302 = vunpack.c.l.b16 %v59
  %v303 = vunpack.c.h.b16 %v59
  %v304 = vunpack.c.l.b16 %v60
  %v305 = vunpack.c.h.b16 %v60
  %v306 = vunpack.c.l.b16 %v61
  %v307 = vunpack.c.h.b16 %v61
  %v308 = vunpack.c.l.b16 %v62
  %v309 = vunpack.c.h.b16 %v62
  %v310 = vunpack.c.l.b16 %v63
  %v311 = vunpack.c.h.b16 %v63
  %v312 = vunpack.c.l.b16 %v64
  %v313 = vunpack.c.h.b16 %v64
  %v314 = vunpack.c.l.b16 %v65
  %v315 = vunpack.c.h.b16 %v65
  %v316 = vunpack.c.l.b16 %v66
  %v317 = vunpack.c.h.b16 %v66
  %v318 = vunpack.c.l.b16 %v67
  %v319 = vunpack.c.h.b16 %v67
  %v320 = vunpack.c.l.b16 %v68
  %v321 = vunpack.c.h.b16 %v68
  %v322 = vunpack.c.l.b16 %v69
  %v323 = vunpack.c.h.b16 %v69
  %v324 = vunpack.c.l.b16 %v70
  %v325 = vunpack.c.h.b16 %v70
  %v326 = vunpack.c.l.b16 %v71
  %v327 = vunpack.c.h.b16 %v71
  %v328 = vunpack.c.l.b16 %v72
  %v329 = vunpack.c.h.b16 %v72
  %v330 = vunpack.c.l.b16 %v73
  %v331 = vunpack.c.h.b16 %v73
  %v332 = vunpack.c.l.b16 %v74
  %v333 = vunpack.c.h.b16 %v74
  %v334 = vunpack.c.l.b16 %v75
  %v335 = vunpack.c.h.b16 %v75
  %v336 = vunpack.c.l.b16 %v76
  %v337 = vunpack.c.h.b16 %v76
  %v338 = vunpack.c.l.b16 %v77
  %v339 = vunpack.c.h.b16 %v77
  %v340 = vunpack.c.l.b16 %v78
  %v341 = vunpack.c.h.b16 %v78
  %v342 = vunpack.c.l.b16 %v79
  %v343 = vunpack.c.h.b16 %v79
  %v344 = vunpack.c.l.b16 %v80
  %v345 = vunpack.c.h.b16 %v80
  %v346 = vunpack.c.l.b16 %v81
  %v347 = vunpack.c.h.b16 %v81
  %v348 = vunpack.c.l.b16 %v82
  %v349 = vunpack.c.h.b16 %v82
  %v350 = vunpack.c.l.b16 %v83
  %v351 = vunpack.c.h.b16 %v83
  %v352 = vunpack.c.l.b16 %v84
  %v353 = vunpack.c.h.b16 %v84
  %v354 = vunpack.c.l.b16 %v85
  %v355 = vunpack.c.h.b16 %v85
  %v356 = vunpack.c.l.b16 %v86
  %v357 = vunpack.c.h.b16 %v86
  %v358 = vunpack.c.l.b16 %v87
  %v359 = vunpack.c.h.b16 %v87
  %v360 = vpack.c.b16 %v218, %v216
  %v361 = vpack.c.b16 %v219, %v217
  %v362 = vpack.c.b16 %v222, %v220
  %v363 = vpack.c.b16 %v223, %v221
  %v364 = vpack.c.b16 %v226, %v224
  %v365 = vpack.c.b16 %v227, %v225
  %v366 = vpack.c.b16 %v230, %v228
  %v367 = vpack.c.b16 %v231, %v229
  %v368 = vpack.c.b16 %v234, %v232
  %v369 = vpack.c.b16 %v235, %v233
  %v370 = vpack.c.b16 %v238, %v236
  %v371 = vpack.c.b16 %v239, %v237
  %v372 = vpack.c.b16 %v242, %v240
  %v373 = vpack.c.b16 %v243, %v241
  %v374 = vpack.c.b16 %v246, %v244
  %v375 = vpack.c.b16 %v247, %v245
  %v376 = vpack.c.b16 %v250, %v248
  %v377 = vpack.c.b16 %v251, %v249
  %v378 = vpack.c.b16 %v254, %v252
  %v379 = vpack.c.b16 %v255, %v253
  %v380 = vpack.c.b16 %v258, %v256
  %v381 = vpack.c.b16 %v259, %v257
  %v382 = vpack.c.b16 %v262, %v260
  %v383 = vpack.c.b16 %v263, %v261
  %v384 = vpack.c.b16 %v266, %v264
  %v385 = vpack.c.b16 %v267, %v265
  %v386 = vpack.c.b16 %v270, %v268
  %v387 = vpack.c.b16 %v271, %v269
  %v388 = vpack.c.b16 %v274, %v272
  %v389 = vpack.c.b16 %v275, %v273
  %v390 = vpack.c.b16 %v278, %v276
  %v391 = vpack.c.b16 %v279, %v277
  %v392 = vpack.c.b16 %v282, %v280
  %v393 = vpack.c.b16 %v283, %v281
  %v394 = vpack.c.b16 %v286, %v284
  %v395 = vpack.c.b16 %v287, %v285
  %v396 = vpack.c.b16 %v290, %v288
  %v397 = vpack.c.b16 %v291, %v289
  %v398 = vpack.c.b16 %v294, %v292
  %v399 = vpack.c.b16 %v295, %v293
  %v400 = vpack.c.b16 %v298, %v296
  %v401 = vpack.c.b16 %v299, %v297
  %v402 = vpack.c.b16 %v302, %v300
  %v403 = vpack.c.b16 %v303, %v301
  %v404 = vpack.c.b16 %v306, %v304
  %v405 = vpack.c.b16 %v307, %v305
  %v406 = vpack.c.b16 %v310, %v308
  %v407 = vpack.c.b16 %v311, %v309
  %v408 = vpack.c.b16 %v314, %v312
  %v409 = vpack.c.b16 %v315, %v313
  %v410 = vpack.c.b16 %v318, %v316
  %v411 = vpack.c.b16 %v319, %v317
  %v412 = vpack.c.b16 %v322, %v320
  %v413 = vpack.c.b16 %v323, %v321
  %v414 = vpack.c.b16 %v326, %v324
  %v415 = vpack.c.b16 %v327, %v325
  %v416 = vpack.c.b16 %v330, %v328
  %v417 = vpack.c.b16 %v331, %v329
  %v418 = vpack.c.b16 %v334, %v332
  %v419 = vpack.c.b16 %v335, %v333
  %v420 = vpack.c.b16 %v338, %v336
  %v421 = vpack.c.b16 %v339, %v337
  %v422 = vpack.c.b16 %v342, %v340
  %v423 = vpack.c.b16 %v343, %v341
  %v424 = vpack.c.b16 %v346, %v344
  %v425 = vpack.c.b16 %v347, %v345
  %v426 = vpack.c.b16 %v350, %v348
  %v427 = vpack.c.b16 %v351, %v349
  %v428 = vpack.c.b16 %v354, %v352
  %v429 = vpack.c.b16 %v355, %v353
  %v430 = vpack.c.b16 %v358, %v356
  %v431 = vpack.c.b16 %v359, %v357
  %vm504 = vcmask 523264
  %v506 = vsel %vm504, %v130, 0
  %508 = vmatprep.subr.bf16.mxu0 %v361
  %509 = vmatpush1.bf16.msra.mxu0 %v360
  %510 = vmatprep.subr.bf16.mxu0 %v363
  %511 = vmatpush1.bf16.msra.mxu0 %v362
  %512 = vmatprep.subr.bf16.mxu0 %v365
  %513 = vmatpush1.bf16.msra.mxu0 %v364
  %514 = vmatprep.subr.bf16.mxu0 %v367
  %515 = vmatpush1.bf16.msra.mxu0 %v366
  %516 = vmatprep.subr.bf16.mxu0 %v369
  %517 = vmatpush1.bf16.msra.mxu0 %v368
  %518 = vmatprep.subr.bf16.mxu0 %v371
  %519 = vmatpush1.bf16.msra.mxu0 %v370
  %520 = vmatprep.subr.bf16.mxu0 %v373
  %521 = vmatpush1.bf16.msra.mxu0 %v372
  %522 = vmatprep.subr.bf16.mxu0 %v375
  %523 = vmatpush1.bf16.msra.mxu0 %v374
  %524 = vmatprep.subr.bf16.mxu0 %v377
  %525 = vmatpush1.bf16.msra.mxu0 %v376
  %526 = vmatprep.subr.bf16.mxu0 %v379
  %527 = vmatpush1.bf16.msra.mxu0 %v378
  %528 = vmatprep.subr.bf16.mxu0 %v381
  %529 = vmatpush1.bf16.msra.mxu0 %v380
  %530 = vmatprep.subr.bf16.mxu0 %v383
  %531 = vmatpush1.bf16.msra.mxu0 %v382
  %532 = vmatprep.subr.bf16.mxu0 %v385
  %533 = vmatpush1.bf16.msra.mxu0 %v384
  %534 = vmatprep.subr.bf16.mxu0 %v387
  %535 = vmatpush1.bf16.msra.mxu0 %v386
  %536 = vmatprep.subr.bf16.mxu0 %v389
  %537 = vmatpush1.bf16.msra.mxu0 %v388
  %538 = vmatprep.subr.bf16.mxu0 %v391
  %539 = vmatpush1.bf16.msra.mxu0 %v390
  %540 = vmatprep.mubr.bf16.mxu0 %v137
  %541 = vmatmul.mubr.bf16.gmra.mrb[0].mxu0 %v123
  %v542 = vpop.f32.mrb[0].mxu0
  %v543 = vadd.f32 %v93, %v542
  %v544 = vpop.f32.mrb[0].mxu0
  %v545 = vadd.f32 %v97, %v544
  %v546 = vpop.f32.mrb[0].mxu0
  %v547 = vpop.f32.mrb[0].mxu0
  %548 = vdwg.mxu0
  %549 = vmatprep.subr.bf16.mxu0 %v393
  %550 = vmatpush1.bf16.msra.mxu0 %v392
  %551 = vmatprep.subr.bf16.mxu0 %v395
  %552 = vmatpush1.bf16.msra.mxu0 %v394
  %553 = vmatprep.subr.bf16.mxu0 %v397
  %554 = vmatpush1.bf16.msra.mxu0 %v396
  %555 = vmatprep.subr.bf16.mxu0 %v399
  %556 = vmatpush1.bf16.msra.mxu0 %v398
  %557 = vmatprep.subr.bf16.mxu0 %v401
  %558 = vmatpush1.bf16.msra.mxu0 %v400
  %559 = vmatprep.subr.bf16.mxu0 %v403
  %560 = vmatpush1.bf16.msra.mxu0 %v402
  %561 = vmatprep.subr.bf16.mxu0 %v405
  %562 = vmatpush1.bf16.msra.mxu0 %v404
  %563 = vmatprep.subr.bf16.mxu0 %v407
  %564 = vmatpush1.bf16.msra.mxu0 %v406
  %565 = vmatprep.subr.bf16.mxu0 %v409
  %566 = vmatpush1.bf16.msra.mxu0 %v408
  %567 = vmatprep.subr.bf16.mxu0 %v411
  %568 = vmatpush1.bf16.msra.mxu0 %v410
  %569 = vmatprep.subr.bf16.mxu0 %v413
  %570 = vmatpush1.bf16.msra.mxu0 %v412
  %571 = vmatprep.subr.bf16.mxu0 %v415
  %572 = vmatpush1.bf16.msra.mxu0 %v414
  %573 = vmatprep.subr.bf16.mxu0 %v417
  %574 = vmatpush1.bf16.msra.mxu0 %v416
  %575 = vmatprep.subr.bf16.mxu0 %v419
  %576 = vmatpush1.bf16.msra.mxu0 %v418
  %577 = vmatprep.subr.bf16.mxu0 %v421
  %578 = vmatpush1.bf16.msra.mxu0 %v420
  %579 = vmatprep.subr.bf16.mxu0 %v423
  %580 = vmatpush1.bf16.msra.mxu0 %v422
  %581 = vmatprep.mubr.bf16.mxu0 %v139
  %582 = vmatmul.mubr.bf16.gmra.mrb[0].mxu0 %v138
  %v583 = vpop.f32.mrb[0].mxu0
  %v584 = vadd.f32 %v543, %v583
  %v585 = vpop.f32.mrb[0].mxu0
  %v586 = vadd.f32 %v545, %v585
  %v587 = vpop.f32.mrb[0].mxu0
  %v588 = vpop.f32.mrb[0].mxu0
  %589 = vdwg.mxu0
  %590 = vmatprep.subr.bf16.mxu0 %v425
  %591 = vmatpush1.bf16.msra.mxu0 %v424
  %592 = vmatprep.subr.bf16.mxu0 %v427
  %593 = vmatpush1.bf16.msra.mxu0 %v426
  %594 = vmatprep.subr.bf16.mxu0 %v429
  %595 = vmatpush1.bf16.msra.mxu0 %v428
  %596 = vmatprep.subr.bf16.mxu0 %v431
  %597 = vmatpush1.bf16.msra.mxu0 %v430
  %598 = vmatprep.subr.bf16.mxu0 0
  %599 = vmatpush1.bf16.msra.mxu0 0
  %600 = vmatprep.subr.bf16.mxu0 0
  %601 = vmatpush1.bf16.msra.mxu0 0
  %602 = vmatprep.subr.bf16.mxu0 0
  %603 = vmatpush1.bf16.msra.mxu0 0
  %604 = vmatprep.subr.bf16.mxu0 0
  %605 = vmatpush1.bf16.msra.mxu0 0
  %606 = vmatprep.subr.bf16.mxu0 0
  %607 = vmatpush1.bf16.msra.mxu0 0
  %608 = vmatprep.subr.bf16.mxu0 0
  %609 = vmatpush1.bf16.msra.mxu0 0
  %610 = vmatprep.subr.bf16.mxu0 0
  %611 = vmatpush1.bf16.msra.mxu0 0
  %612 = vmatprep.subr.bf16.mxu0 0
  %613 = vmatpush1.bf16.msra.mxu0 0
  %614 = vmatprep.subr.bf16.mxu0 0
  %615 = vmatpush1.bf16.msra.mxu0 0
  %616 = vmatprep.subr.bf16.mxu0 0
  %617 = vmatpush1.bf16.msra.mxu0 0
  %618 = vmatprep.subr.bf16.mxu0 0
  %619 = vmatpush1.bf16.msra.mxu0 0
  %620 = vmatprep.subr.bf16.mxu0 0
  %621 = vmatpush1.bf16.msra.mxu0 0
  %622 = vmatprep.mubr.bf16.mxu0 0
  %623 = vmatmul.mubr.bf16.gmra.mrb[0].mxu0 %v506
  %v624 = vpop.f32.mrb[0].mxu0
  %v625 = vadd.f32 %v584, %v624
  %v626 = vpop.f32.mrb[0].mxu0
  %v627 = vadd.f32 %v586, %v626
  %v628 = vpop.f32.mrb[0].mxu0
  %v629 = vpop.f32.mrb[0].mxu0
  %630 = vdwg.mxu0
  %v631 = vmax.f32 %v625, 0.0
  %v632 = vmax.f32 %v627, 0.0
  %v635 = vcombine.low %v631, %v632
  %v637 = vunpack.c.l.s4 1983009808
  %v638 = vunpack.c.0.s8 %v637
  %v639 = vlaneseq
  %v640 = vshrl.u32 %v639, 7
  %v641 = vsub.s32 %v638, %v640
  %v642 = vrot.slane %v635, %v641
  %644 = vst [vmem:[%s3] sm:$0xf] %v642
  // Predicated region
  $region14: #{cnn_forward.8} parent=0 // pred_check
    _
  $region15: #{cnn_forward.8} parent=0 // pred_check_branch
    %646 = sbr.rel (0) target = $region17
  $region16: #{cnn_forward.8} parent=0 // pred_region
    _
  $region17: #{cnn_forward.8} parent=0 // pred_fallthru
    _
  // Predicated region
  $region18: #{cnn_forward.8} parent=0 // pred_check
    _
  $region19: #{cnn_forward.8} parent=0 // pred_check_branch
    %648 = sbr.rel (0) target = $region21
  $region20: #{cnn_forward.8} parent=0 // pred_region
    _
  $region21: #{cnn_forward.8} parent=0 // pred_fallthru
    _

</llo_original>
